<compile_context>
chip_gen: v7x
topology: tpu7x:2x2x1
jax: 0.10.0
libtpu: 0.0.40
codegen_flags: <defaults>
</compile_context>

<pallas_src>
import math
import functools

import jax
import jax.numpy as jnp
from jax.experimental import pallas as pl
from jax.experimental.pallas import tpu as pltpu

# ----------------------- small synthetic ViT config -------------------------
PATCH = 16              # ViT-B/16 patch size (kept)
IMG = 32                # image side  -> 2x2 = 4 patches
CHANNELS = 3
HIDDEN = 128            # vit hidden_dim (scaled from 768; multiple of 128 = lane-dense)
HEADS = 4
HEAD_DIM = HIDDEN // HEADS
MLP_DIM = 256           # scaled from 3072
LAYERS = 2              # scaled from 12
NUM_POINTS = 16         # scaled from 500
FC_HIDDEN = 256         # scaled from 1024
OUT_PAD = 128           # NUM_POINTS*3 = 48 padded to 128 for lane-dense stores
LN_EPS = 1e-6           # torchvision ViT LayerNorm eps
DTYPE = jnp.float32     # residual stream / activations
WDTYPE = jnp.bfloat16   # matmul weights (MXU-native)

SEQ = (IMG // PATCH) ** 2 + 1          # patches + CLS token
CPP = CHANNELS * PATCH * PATCH         # flattened patch features (multiple of 128)


# ------------------------------ Pallas kernel --------------------------------
def _layernorm(x, g, b, eps):
    mu = jnp.mean(x, axis=-1, keepdims=True)
    var = jnp.mean((x - mu) ** 2, axis=-1, keepdims=True)
    return (x - mu) * jax.lax.rsqrt(var + eps) * g + b


def _fused_vit_pc_kernel(
        # patch embedding (constant over the layer axis)
        patch_ref, pw_ref, add_ref,
        # per-layer weights (leading LAYERS axis, indexed by grid axis 1)
        ln1g_ref, ln1b_ref, wqkv_ref, bqkv_ref, wout_ref, bout_ref,
        ln2g_ref, ln2b_ref, w1_ref, b1_ref, w2_ref, b2_ref,
        # point-cloud head (constant)
        lnfg_ref, lnfb_ref, fc1w_ref, fc1b_ref, fc2w_ref, fc2b_ref,
        # output + VMEM-resident residual stream
        pc_ref, seq_ref,
        *, heads, scale, eps, layers):
    """One grid step = one (batch image, encoder layer). The residual stream stays
    in the seq_ref VMEM scratch for the whole layer loop of a given image."""
    l = pl.program_id(1)

    # ---- first layer step: patch embedding (conv_proj as matmul) -> VMEM seq ----
    @pl.when(l == 0)
    def _():
        xp = patch_ref[0].astype(jnp.bfloat16)                      # (S, C*P*P); row 0 zeros (CLS slot)
        seq_ref[...] = (jnp.dot(xp, pw_ref[...],
                                preferred_element_type=jnp.float32)
                        + add_ref[...])                             # [cls | conv bias] + pos, pre-folded

    x = seq_ref[...]                                                # (S, D) f32 residual stream
    S, D = x.shape
    dh = D // heads

    # ---- attention block: LN1 -> QKV -> per-head SDPA -> out-proj -> +residual ----
    h = _layernorm(x, ln1g_ref[0], ln1b_ref[0], eps)
    qkv = jnp.dot(h.astype(jnp.bfloat16), wqkv_ref[0],
                  preferred_element_type=jnp.float32) + bqkv_ref[0]  # (S, 3D)
    wout = wout_ref[0]                                               # (D, D) bf16, VMEM-resident
    proj = jnp.zeros((S, D), jnp.float32)
    # All heads unrolled inside this grid step (lane slices — avoids lane->sublane
    # reshapes). Out-projection folded per head:
    #   concat_h(o_h) @ Wout == sum_h o_h @ Wout[h*dh:(h+1)*dh, :].
    # TODO(synk): at real ViT-B scale (S=197, dh=64) rework to a head-major layout /
    # multi-head MXU passes — dh=32 contraction uses only 1/8 of the 256-deep MXU.
    for hd in range(heads):
        qh = (qkv[:, hd * dh:(hd + 1) * dh] * scale).astype(jnp.bfloat16)     # pre-scaled q
        kh = qkv[:, D + hd * dh:D + (hd + 1) * dh].astype(jnp.bfloat16)
        vh = qkv[:, 2 * D + hd * dh:2 * D + (hd + 1) * dh].astype(jnp.bfloat16)
        s = jax.lax.dot_general(qh, kh, (((1,), (1,)), ((), ())),
                                preferred_element_type=jnp.float32)           # (S, S)
        m = jnp.max(s, axis=-1, keepdims=True)
        p = jnp.exp(s - m)
        p = p * pl.reciprocal(jnp.sum(p, axis=-1, keepdims=True), approx=True)  # EUP divide
        oh = jnp.dot(p.astype(jnp.bfloat16), vh, preferred_element_type=jnp.float32)
        proj = proj + jnp.dot(oh.astype(jnp.bfloat16),
                              wout[hd * dh:(hd + 1) * dh, :],
                              preferred_element_type=jnp.float32)
    x = x + proj + bout_ref[0]

    # ---- MLP block: LN2 -> MLP1(+GELU) -> MLP2 -> +residual ----
    h = _layernorm(x, ln2g_ref[0], ln2b_ref[0], eps)
    h = jnp.dot(h.astype(jnp.bfloat16), w1_ref[0],
                preferred_element_type=jnp.float32) + b1_ref[0]
    # TODO(synk): torch nn.GELU() default is the exact erf form; tanh approximation
    # is used here for a guaranteed TPU EUP lowering.
    h = jax.nn.gelu(h, approximate=True)
    h = jnp.dot(h.astype(jnp.bfloat16), w2_ref[0],
                preferred_element_type=jnp.float32) + b2_ref[0]
    x = x + h
    seq_ref[...] = x                                                 # residual stays in VMEM

    # ---- last layer step: final LN on CLS row + point-cloud head, one HBM store ----
    @pl.when(l == layers - 1)
    def _():
        cls = x[0:1, :]                                              # final LN is per-token -> exact
        f = _layernorm(cls, lnfg_ref[...], lnfb_ref[...], eps)
        hh = jnp.dot(f.astype(jnp.bfloat16), fc1w_ref[...],
                     preferred_element_type=jnp.float32) + fc1b_ref[...]
        hh = jnp.maximum(hh, 0.0)
        y = jnp.dot(hh.astype(jnp.bfloat16), fc2w_ref[...],
                    preferred_element_type=jnp.float32) + fc2b_ref[...]
        pc_ref[0] = y.astype(pc_ref.dtype)                           # (1, OUT_PAD) lane-dense store


# ------------------------------ kernel wrapper -------------------------------
def _const_spec(shape):
    """Weight resident in VMEM across all grid steps (constant block index)."""
    return pl.BlockSpec(shape, lambda b, l: (0,) * len(shape))


def _layer_spec(shape):
    """Per-layer weight: stacked along a leading LAYERS axis, indexed by grid axis 1."""
    return pl.BlockSpec((1,) + shape, lambda b, l: (l,) + (0,) * len(shape))


def fused_vit_pointcloud(p, patches_seq, embed_add):
    B, S, cpp = patches_seq.shape
    D = HIDDEN
    kernel = functools.partial(_fused_vit_pc_kernel, heads=HEADS,
                               scale=1.0 / math.sqrt(HEAD_DIM), eps=LN_EPS,
                               layers=LAYERS)

    # Whole-call cost estimate (flops / transcendentals / bytes over the full grid).
    per_layer_flops = 2 * S * (D * 3 * D + 2 * S * D + D * D + 2 * D * MLP_DIM)
    flops = B * (LAYERS * per_layer_flops
                 + 2 * S * cpp * D
                 + 2 * (D * FC_HIDDEN + FC_HIDDEN * OUT_PAD))
    transcendentals = B * LAYERS * (HEADS * S * S + S * MLP_DIM) + B * FC_HIDDEN
    bytes_accessed = (4 * B * S * cpp + 2 * cpp * D + 4 * S * D
                      + LAYERS * 2 * (3 * D * D + D * D + 2 * D * MLP_DIM)
                      + LAYERS * 4 * (3 * D + 5 * D + MLP_DIM)
                      + 2 * (D * FC_HIDDEN + FC_HIDDEN * OUT_PAD)
                      + 4 * (FC_HIDDEN + OUT_PAD)
                      + 4 * B * OUT_PAD)

    out = pl.pallas_call(
        kernel,
        out_shape=jax.ShapeDtypeStruct((B, 1, OUT_PAD), DTYPE),
        grid=(B, LAYERS),
        in_specs=[
            # patch embedding inputs (constant over the layer axis)
            pl.BlockSpec((1, S, cpp), lambda b, l: (b, 0, 0)),
            _const_spec((cpp, D)),
            _const_spec((S, D)),
            # per-layer weights (double-buffered across the layer axis by Pallas)
            _layer_spec((1, D)), _layer_spec((1, D)),
            _layer_spec((D, 3 * D)), _layer_spec((1, 3 * D)),
            _layer_spec((D, D)), _layer_spec((1, D)),
            _layer_spec((1, D)), _layer_spec((1, D)),
            _layer_spec((D, MLP_DIM)), _layer_spec((1, MLP_DIM)),
            _layer_spec((MLP_DIM, D)), _layer_spec((1, D)),
            # point-cloud head weights (constant)
            _const_spec((1, D)), _const_spec((1, D)),
            _const_spec((D, FC_HIDDEN)), _const_spec((1, FC_HIDDEN)),
            _const_spec((FC_HIDDEN, OUT_PAD)), _const_spec((1, OUT_PAD)),
        ],
        # Output block index is constant across the layer axis -> written once, at
        # the last layer step, then flushed to HBM when the batch index changes.
        out_specs=pl.BlockSpec((1, 1, OUT_PAD), lambda b, l: (b, 0, 0)),
        scratch_shapes=[pltpu.VMEM((S, D), jnp.float32)],   # VMEM-resident residual stream
        compiler_params=pltpu.CompilerParams(
            dimension_semantics=("parallel", "arbitrary"),
            vmem_limit_bytes=32 * 1024 * 1024),
        cost_estimate=pl.CostEstimate(flops=flops,
                                      transcendentals=transcendentals,
                                      bytes_accessed=bytes_accessed),
    )(patches_seq, p["patch_w"], embed_add,
      p["ln1_g"], p["ln1_b"], p["w_qkv"], p["b_qkv"], p["w_out"], p["b_out"],
      p["ln2_g"], p["ln2_b"], p["w_mlp1"], p["b_mlp1"], p["w_mlp2"], p["b_mlp2"],
      p["ln_f_g"], p["ln_f_b"], p["fc1_w"], p["fc1_b"], p["fc2_w"], p["fc2_b"])
    return out


# ----------------------------- model (glue + kernel) -------------------------
def image_to_point_cloud(p, x):
    """PyTorch ImageToPointCloud.forward: features = vit(x); pc = fc(features)."""
    B, C, H, W = x.shape
    P = PATCH
    nH, nW = H // P, W // P
    nP = nH * nW

    # im2col for the stride-P conv_proj, patch features ordered (c, kh, kw) to match
    # the NCHW conv weight layout.
    # TODO(synk): at real 224x224 scale move this gather into the kernel via an
    # (nH, nW) grid / Element index_map to avoid the extra HBM round trip.
    patches = x.reshape(B, C, nH, P, nW, P).transpose(0, 2, 4, 1, 3, 5)
    patches = patches.reshape(B, nP, C * P * P)
    # Row 0 is a zero "patch" feeding the CLS slot, so the kernel does one matmul.
    patches_seq = jnp.concatenate(
        [jnp.zeros((B, 1, C * P * P), patches.dtype), patches], axis=1)      # (B, S, CPP)

    # cls token, conv_proj bias and positional embedding folded into one (S, D) add.
    pos = p["pos_embed"][0]                                                  # (S, D)
    embed_add = jnp.concatenate(
        [p["cls_token"][0],
         jnp.broadcast_to(p["patch_b"], (nP, HIDDEN))], axis=0) + pos        # (S, D)

    out = fused_vit_pointcloud(p, patches_seq, embed_add)                    # (B, 1, OUT_PAD)
    return out[:, 0, :NUM_POINTS * 3].reshape(-1, NUM_POINTS, 3)


# ------------------------------- parameters ----------------------------------
def init_params(key):
    def nrm(k, shape, dtype, scale=0.02):
        return (scale * jax.random.normal(k, shape, jnp.float32)).astype(dtype)

    ks = iter(jax.random.split(key, 16))
    out_dim = NUM_POINTS * 3
    # fc2 output lane-padded 48 -> 128 columns; padded columns are ZERO so the padded
    # output is safe for any consumer (wrapper slices them off anyway).
    fc2_w = jnp.zeros((FC_HIDDEN, OUT_PAD), jnp.float32)
    fc2_w = fc2_w.at[:, :out_dim].set(
        0.02 * jax.random.normal(next(ks), (FC_HIDDEN, out_dim), jnp.float32))

    p = {
        "patch_w": nrm(next(ks), (CPP, HIDDEN), WDTYPE),
        "patch_b": jnp.zeros((1, HIDDEN), DTYPE),
        "cls_token": nrm(next(ks), (1, 1, HIDDEN), DTYPE),
        "pos_embed": nrm(next(ks), (1, SEQ, HIDDEN), DTYPE),
        "ln_f_g": jnp.ones((1, HIDDEN), DTYPE),
        "ln_f_b": jnp.zeros((1, HIDDEN), DTYPE),
        "fc1_w": nrm(next(ks), (HIDDEN, FC_HIDDEN), WDTYPE),
        "fc1_b": jnp.zeros((1, FC_HIDDEN), DTYPE),
        "fc2_w": fc2_w.astype(WDTYPE),
        "fc2_b": jnp.zeros((1, OUT_PAD), DTYPE),
        # per-layer encoder weights stacked along a leading LAYERS axis so the fused
        # kernel indexes them with the layer grid axis.
        "ln1_g": jnp.ones((LAYERS, 1, HIDDEN), DTYPE),
        "ln1_b": jnp.zeros((LAYERS, 1, HIDDEN), DTYPE),
        "w_qkv": nrm(next(ks), (LAYERS, HIDDEN, 3 * HIDDEN), WDTYPE),
        "b_qkv": jnp.zeros((LAYERS, 1, 3 * HIDDEN), DTYPE),
        "w_out": nrm(next(ks), (LAYERS, HIDDEN, HIDDEN), WDTYPE),
        "b_out": jnp.zeros((LAYERS, 1, HIDDEN), DTYPE),
        "ln2_g": jnp.ones((LAYERS, 1, HIDDEN), DTYPE),
        "ln2_b": jnp.zeros((LAYERS, 1, HIDDEN), DTYPE),
        "w_mlp1": nrm(next(ks), (LAYERS, HIDDEN, MLP_DIM), WDTYPE),
        "b_mlp1": jnp.zeros((LAYERS, 1, MLP_DIM), DTYPE),
        "w_mlp2": nrm(next(ks), (LAYERS, MLP_DIM, HIDDEN), WDTYPE),
        "b_mlp2": jnp.zeros((LAYERS, 1, HIDDEN), DTYPE),
    }
    return p


# ---------------------------------- main --------------------------------------
if __name__ == "__main__":
    k_x, k_p = jax.random.split(jax.random.PRNGKey(0))
    x = jax.random.normal(k_x, (2, CHANNELS, IMG, IMG), DTYPE)
    params = init_params(k_p)

    forward = jax.jit(image_to_point_cloud)
    pc = jax.block_until_ready(forward(params, x))

    assert pc.shape == (2, NUM_POINTS, 3), pc.shape
    assert pc.dtype == DTYPE
    assert bool(jnp.all(jnp.isfinite(pc)))
    print("KERNEL_OK")
</pallas_src>

<mosaic_0001>
module attributes {stable_mosaic.version = 11 : i64} {
  func.func @_fused_vit_pc_kernel(%arg0: i32, %arg1: i32, %arg2: memref<1x5x768xf32, #tpu.memory_space<vmem>>, %arg3: memref<768x128xbf16, #tpu.memory_space<vmem>>, %arg4: memref<5x128xf32, #tpu.memory_space<vmem>>, %arg5: memref<1x1x128xf32, #tpu.memory_space<vmem>>, %arg6: memref<1x1x128xf32, #tpu.memory_space<vmem>>, %arg7: memref<1x128x384xbf16, #tpu.memory_space<vmem>>, %arg8: memref<1x1x384xf32, #tpu.memory_space<vmem>>, %arg9: memref<1x128x128xbf16, #tpu.memory_space<vmem>>, %arg10: memref<1x1x128xf32, #tpu.memory_space<vmem>>, %arg11: memref<1x1x128xf32, #tpu.memory_space<vmem>>, %arg12: memref<1x1x128xf32, #tpu.memory_space<vmem>>, %arg13: memref<1x128x256xbf16, #tpu.memory_space<vmem>>, %arg14: memref<1x1x256xf32, #tpu.memory_space<vmem>>, %arg15: memref<1x256x128xbf16, #tpu.memory_space<vmem>>, %arg16: memref<1x1x128xf32, #tpu.memory_space<vmem>>, %arg17: memref<1x128xf32, #tpu.memory_space<vmem>>, %arg18: memref<1x128xf32, #tpu.memory_space<vmem>>, %arg19: memref<128x256xbf16, #tpu.memory_space<vmem>>, %arg20: memref<1x256xf32, #tpu.memory_space<vmem>>, %arg21: memref<256x128xbf16, #tpu.memory_space<vmem>>, %arg22: memref<1x128xf32, #tpu.memory_space<vmem>>, %arg23: memref<1x1x128xf32, #tpu.memory_space<vmem>>, %arg24: memref<5x128xf32, #tpu.memory_space<vmem>>) attributes {dimension_semantics = [#tpu.dimension_semantics<parallel>, #tpu.dimension_semantics<arbitrary>], iteration_bounds = array<i64: 2, 2>, scalar_prefetch = 0 : i64, scratch_operands = 1 : i64, tpu.core_type = #tpu.core_type<tc>, window_params = [{transform_indices = @transform_0, window_bounds = array<i64: 1, 5, 768>}, {pipeline_mode = #tpu.pipeline_mode<synchronous>, transform_indices = @transform_1, window_bounds = array<i64: 768, 128>}, {pipeline_mode = #tpu.pipeline_mode<synchronous>, transform_indices = @transform_2, window_bounds = array<i64: 5, 128>}, {transform_indices = @transform_3, window_bounds = array<i64: 1, 1, 128>}, {transform_indices = @transform_4, window_bounds = array<i64: 1, 1, 128>}, {transform_indices = @transform_5, window_bounds = array<i64: 1, 128, 384>}, {transform_indices = @transform_6, window_bounds = array<i64: 1, 1, 384>}, {transform_indices = @transform_7, window_bounds = array<i64: 1, 128, 128>}, {transform_indices = @transform_8, window_bounds = array<i64: 1, 1, 128>}, {transform_indices = @transform_9, window_bounds = array<i64: 1, 1, 128>}, {transform_indices = @transform_10, window_bounds = array<i64: 1, 1, 128>}, {transform_indices = @transform_11, window_bounds = array<i64: 1, 128, 256>}, {transform_indices = @transform_12, window_bounds = array<i64: 1, 1, 256>}, {transform_indices = @transform_13, window_bounds = array<i64: 1, 256, 128>}, {transform_indices = @transform_14, window_bounds = array<i64: 1, 1, 128>}, {pipeline_mode = #tpu.pipeline_mode<synchronous>, transform_indices = @transform_15, window_bounds = array<i64: 1, 128>}, {pipeline_mode = #tpu.pipeline_mode<synchronous>, transform_indices = @transform_16, window_bounds = array<i64: 1, 128>}, {pipeline_mode = #tpu.pipeline_mode<synchronous>, transform_indices = @transform_17, window_bounds = array<i64: 128, 256>}, {pipeline_mode = #tpu.pipeline_mode<synchronous>, transform_indices = @transform_18, window_bounds = array<i64: 1, 256>}, {pipeline_mode = #tpu.pipeline_mode<synchronous>, transform_indices = @transform_19, window_bounds = array<i64: 256, 128>}, {pipeline_mode = #tpu.pipeline_mode<synchronous>, transform_indices = @transform_20, window_bounds = array<i64: 1, 128>}, {transform_indices = @transform_21, window_bounds = array<i64: 1, 1, 128>}]} {
    %c0_i32 = arith.constant 0 : i32
    %0 = arith.cmpi eq, %arg1, %c0_i32 : i32
    %1 = arith.extui %0 : i1 to i32
    %c0_i32_0 = arith.constant 0 : i32
    %2 = arith.cmpi ne, %1, %c0_i32_0 : i32
    scf.if %2 {
      %c0_82 = arith.constant 0 : index
      %c0_83 = arith.constant 0 : index
      %c0_84 = arith.constant 0 : index
      %206 = vector.load %arg2[%c0_82, %c0_83, %c0_84] : memref<1x5x768xf32, #tpu.memory_space<vmem>>, vector<1x5x768xf32>
      %207 = vector.shape_cast %206 : vector<1x5x768xf32> to vector<5x768xf32>
      %208 = arith.truncf %207 : vector<5x768xf32> to vector<5x768xbf16>
      %c0_85 = arith.constant 0 : index
      %c0_86 = arith.constant 0 : index
      %209 = vector.load %arg3[%c0_85, %c0_86] : memref<768x128xbf16, #tpu.memory_space<vmem>>, vector<768x128xbf16>
      %cst_87 = arith.constant dense<0.000000e+00> : vector<5x128xf32>
      %210 = tpu.matmul %208, %209, %cst_87 {dimension_numbers = #tpu.dot_dimension_numbers<[1], [0], [0], [1], [0, 0, 1, 1], [], []>} : vector<5x768xbf16>, vector<768x128xbf16>, vector<5x128xf32> -> vector<5x128xf32>
      %c0_88 = arith.constant 0 : index
      %c0_89 = arith.constant 0 : index
      %211 = vector.load %arg4[%c0_88, %c0_89] : memref<5x128xf32, #tpu.memory_space<vmem>>, vector<5x128xf32>
      %212 = arith.addf %210, %211 : vector<5x128xf32>
      %c0_90 = arith.constant 0 : index
      %c0_91 = arith.constant 0 : index
      %213 = vector.load %arg24[%c0_90, %c0_91] : memref<5x128xf32, #tpu.memory_space<vmem>>, vector<5x128xf32>
      tpu.vector_store %arg24[%c0_90, %c0_91], %212 {strides = array<i32>} : memref<5x128xf32, #tpu.memory_space<vmem>>, vector<5x128xf32>,
    } else {
    }
    %c0 = arith.constant 0 : index
    %c0_1 = arith.constant 0 : index
    %3 = vector.load %arg24[%c0, %c0_1] : memref<5x128xf32, #tpu.memory_space<vmem>>, vector<5x128xf32>
    %c0_2 = arith.constant 0 : index
    %c0_3 = arith.constant 0 : index
    %c0_4 = arith.constant 0 : index
    %4 = vector.load %arg5[%c0_2, %c0_3, %c0_4] : memref<1x1x128xf32, #tpu.memory_space<vmem>>, vector<1x1x128xf32>
    %5 = vector.shape_cast %4 : vector<1x1x128xf32> to vector<1x128xf32>
    %c0_5 = arith.constant 0 : index
    %c0_6 = arith.constant 0 : index
    %c0_7 = arith.constant 0 : index
    %6 = vector.load %arg6[%c0_5, %c0_6, %c0_7] : memref<1x1x128xf32, #tpu.memory_space<vmem>>, vector<1x1x128xf32>
    %7 = vector.shape_cast %6 : vector<1x1x128xf32> to vector<1x128xf32>
    %cst = arith.constant dense<0.000000e+00> : vector<5xf32>
    %8 = vector.multi_reduction <add>, %3, %cst [1] : vector<5x128xf32> to vector<5xf32>
    %9 = vector.shape_cast %8 : vector<5xf32> to vector<5x1xf32>
    %cst_8 = arith.constant 1.280000e+02 : f32
    %10 = vector.broadcast %cst_8 : f32 to vector<5x1xf32>
    %11 = arith.divf %9, %10 : vector<5x1xf32>
    %12 = vector.broadcast %11 : vector<5x1xf32> to vector<5x128xf32>
    %13 = arith.subf %3, %12 : vector<5x128xf32>
    %14 = arith.mulf %13, %13 : vector<5x128xf32>
    %cst_9 = arith.constant dense<0.000000e+00> : vector<5xf32>
    %15 = vector.multi_reduction <add>, %14, %cst_9 [1] : vector<5x128xf32> to vector<5xf32>
    %16 = vector.shape_cast %15 : vector<5xf32> to vector<5x1xf32>
    %cst_10 = arith.constant 1.280000e+02 : f32
    %17 = vector.broadcast %cst_10 : f32 to vector<5x1xf32>
    %18 = arith.divf %16, %17 : vector<5x1xf32>
    %19 = vector.broadcast %11 : vector<5x1xf32> to vector<5x128xf32>
    %20 = arith.subf %3, %19 : vector<5x128xf32>
    %cst_11 = arith.constant 9.99999997E-7 : f32
    %21 = vector.broadcast %cst_11 : f32 to vector<5x1xf32>
    %22 = arith.addf %18, %21 : vector<5x1xf32>
    %23 = math.rsqrt %22 : vector<5x1xf32>
    %24 = vector.broadcast %23 : vector<5x1xf32> to vector<5x128xf32>
    %25 = arith.mulf %20, %24 : vector<5x128xf32>
    %26 = vector.broadcast %5 : vector<1x128xf32> to vector<5x128xf32>
    %27 = arith.mulf %25, %26 : vector<5x128xf32>
    %28 = vector.broadcast %7 : vector<1x128xf32> to vector<5x128xf32>
    %29 = arith.addf %27, %28 : vector<5x128xf32>
    %30 = arith.truncf %29 : vector<5x128xf32> to vector<5x128xbf16>
    %c0_12 = arith.constant 0 : index
    %c0_13 = arith.constant 0 : index
    %c0_14 = arith.constant 0 : index
    %31 = vector.load %arg7[%c0_12, %c0_13, %c0_14] : memref<1x128x384xbf16, #tpu.memory_space<vmem>>, vector<1x128x384xbf16>
    %32 = vector.shape_cast %31 : vector<1x128x384xbf16> to vector<128x384xbf16>
    %cst_15 = arith.constant dense<0.000000e+00> : vector<5x384xf32>
    %33 = tpu.matmul %30, %32, %cst_15 {dimension_numbers = #tpu.dot_dimension_numbers<[1], [0], [0], [1], [0, 0, 1, 1], [], []>} : vector<5x128xbf16>, vector<128x384xbf16>, vector<5x384xf32> -> vector<5x384xf32>
    %c0_16 = arith.constant 0 : index
    %c0_17 = arith.constant 0 : index
    %c0_18 = arith.constant 0 : index
    %34 = vector.load %arg8[%c0_16, %c0_17, %c0_18] : memref<1x1x384xf32, #tpu.memory_space<vmem>>, vector<1x1x384xf32>
    %35 = vector.shape_cast %34 : vector<1x1x384xf32> to vector<1x384xf32>
    %36 = vector.broadcast %35 : vector<1x384xf32> to vector<5x384xf32>
    %37 = arith.addf %33, %36 : vector<5x384xf32>
    %c0_19 = arith.constant 0 : index
    %c0_20 = arith.constant 0 : index
    %c0_21 = arith.constant 0 : index
    %38 = vector.load %arg9[%c0_19, %c0_20, %c0_21] : memref<1x128x128xbf16, #tpu.memory_space<vmem>>, vector<1x128x128xbf16>
    %39 = vector.shape_cast %38 : vector<1x128x128xbf16> to vector<128x128xbf16>
    %cst_22 = arith.constant 0.000000e+00 : f32
    %40 = vector.broadcast %cst_22 : f32 to vector<5x128xf32>
    %41 = vector.extract_strided_slice %37 {offsets = [0, 0], sizes = [5, 32], strides = [1, 1]} : vector<5x384xf32> to vector<5x32xf32>
    %cst_23 = arith.constant 0.176776692 : f32
    %42 = vector.broadcast %cst_23 : f32 to vector<5x32xf32>
    %43 = arith.mulf %41, %42 : vector<5x32xf32>
    %44 = arith.truncf %43 : vector<5x32xf32> to vector<5x32xbf16>
    %45 = vector.extract_strided_slice %37 {offsets = [0, 128], sizes = [5, 32], strides = [1, 1]} : vector<5x384xf32> to vector<5x32xf32>
    %46 = arith.truncf %45 : vector<5x32xf32> to vector<5x32xbf16>
    %47 = vector.extract_strided_slice %37 {offsets = [0, 256], sizes = [5, 32], strides = [1, 1]} : vector<5x384xf32> to vector<5x32xf32>
    %48 = arith.truncf %47 : vector<5x32xf32> to vector<5x32xbf16>
    %cst_24 = arith.constant dense<0.000000e+00> : vector<5x5xf32>
    %49 = tpu.matmul %44, %46, %cst_24 {dimension_numbers = #tpu.dot_dimension_numbers<[1], [1], [0], [0], [0, 0, 1, 0], [], []>} : vector<5x32xbf16>, vector<5x32xbf16>, vector<5x5xf32> -> vector<5x5xf32>
    %cst_25 = arith.constant dense<0xFF800000> : vector<5xf32>
    %50 = vector.multi_reduction <maximumf>, %49, %cst_25 [1] : vector<5x5xf32> to vector<5xf32>
    %51 = vector.shape_cast %50 : vector<5xf32> to vector<5x1xf32>
    %52 = vector.broadcast %51 : vector<5x1xf32> to vector<5x5xf32>
    %53 = arith.subf %49, %52 : vector<5x5xf32>
    %54 = math.exp %53 : vector<5x5xf32>
    %cst_26 = arith.constant dense<0.000000e+00> : vector<5xf32>
    %55 = vector.multi_reduction <add>, %54, %cst_26 [1] : vector<5x5xf32> to vector<5xf32>
    %56 = vector.shape_cast %55 : vector<5xf32> to vector<5x1xf32>
    %57 = tpu.reciprocal %56 {approx = true} : vector<5x1xf32> -> vector<5x1xf32>
    %58 = vector.broadcast %57 : vector<5x1xf32> to vector<5x5xf32>
    %59 = arith.mulf %54, %58 : vector<5x5xf32>
    %60 = arith.truncf %59 : vector<5x5xf32> to vector<5x5xbf16>
    %cst_27 = arith.constant dense<0.000000e+00> : vector<5x32xf32>
    %61 = tpu.matmul %60, %48, %cst_27 {dimension_numbers = #tpu.dot_dimension_numbers<[1], [0], [0], [1], [0, 0, 1, 1], [], []>} : vector<5x5xbf16>, vector<5x32xbf16>, vector<5x32xf32> -> vector<5x32xf32>
    %62 = arith.truncf %61 : vector<5x32xf32> to vector<5x32xbf16>
    %63 = vector.extract_strided_slice %39 {offsets = [0, 0], sizes = [32, 128], strides = [1, 1]} : vector<128x128xbf16> to vector<32x128xbf16>
    %cst_28 = arith.constant dense<0.000000e+00> : vector<5x128xf32>
    %64 = tpu.matmul %62, %63, %cst_28 {dimension_numbers = #tpu.dot_dimension_numbers<[1], [0], [0], [1], [0, 0, 1, 1], [], []>} : vector<5x32xbf16>, vector<32x128xbf16>, vector<5x128xf32> -> vector<5x128xf32>
    %65 = arith.addf %40, %64 : vector<5x128xf32>
    %66 = vector.extract_strided_slice %37 {offsets = [0, 32], sizes = [5, 32], strides = [1, 1]} : vector<5x384xf32> to vector<5x32xf32>
    %cst_29 = arith.constant 0.176776692 : f32
    %67 = vector.broadcast %cst_29 : f32 to vector<5x32xf32>
    %68 = arith.mulf %66, %67 : vector<5x32xf32>
    %69 = arith.truncf %68 : vector<5x32xf32> to vector<5x32xbf16>
    %70 = vector.extract_strided_slice %37 {offsets = [0, 160], sizes = [5, 32], strides = [1, 1]} : vector<5x384xf32> to vector<5x32xf32>
    %71 = arith.truncf %70 : vector<5x32xf32> to vector<5x32xbf16>
    %72 = vector.extract_strided_slice %37 {offsets = [0, 288], sizes = [5, 32], strides = [1, 1]} : vector<5x384xf32> to vector<5x32xf32>
    %73 = arith.truncf %72 : vector<5x32xf32> to vector<5x32xbf16>
    %cst_30 = arith.constant dense<0.000000e+00> : vector<5x5xf32>
    %74 = tpu.matmul %69, %71, %cst_30 {dimension_numbers = #tpu.dot_dimension_numbers<[1], [1], [0], [0], [0, 0, 1, 0], [], []>} : vector<5x32xbf16>, vector<5x32xbf16>, vector<5x5xf32> -> vector<5x5xf32>
    %cst_31 = arith.constant dense<0xFF800000> : vector<5xf32>
    %75 = vector.multi_reduction <maximumf>, %74, %cst_31 [1] : vector<5x5xf32> to vector<5xf32>
    %76 = vector.shape_cast %75 : vector<5xf32> to vector<5x1xf32>
    %77 = vector.broadcast %76 : vector<5x1xf32> to vector<5x5xf32>
    %78 = arith.subf %74, %77 : vector<5x5xf32>
    %79 = math.exp %78 : vector<5x5xf32>
    %cst_32 = arith.constant dense<0.000000e+00> : vector<5xf32>
    %80 = vector.multi_reduction <add>, %79, %cst_32 [1] : vector<5x5xf32> to vector<5xf32>
    %81 = vector.shape_cast %80 : vector<5xf32> to vector<5x1xf32>
    %82 = tpu.reciprocal %81 {approx = true} : vector<5x1xf32> -> vector<5x1xf32>
    %83 = vector.broadcast %82 : vector<5x1xf32> to vector<5x5xf32>
    %84 = arith.mulf %79, %83 : vector<5x5xf32>
    %85 = arith.truncf %84 : vector<5x5xf32> to vector<5x5xbf16>
    %cst_33 = arith.constant dense<0.000000e+00> : vector<5x32xf32>
    %86 = tpu.matmul %85, %73, %cst_33 {dimension_numbers = #tpu.dot_dimension_numbers<[1], [0], [0], [1], [0, 0, 1, 1], [], []>} : vector<5x5xbf16>, vector<5x32xbf16>, vector<5x32xf32> -> vector<5x32xf32>
    %87 = arith.truncf %86 : vector<5x32xf32> to vector<5x32xbf16>
    %88 = vector.extract_strided_slice %39 {offsets = [32, 0], sizes = [32, 128], strides = [1, 1]} : vector<128x128xbf16> to vector<32x128xbf16>
    %cst_34 = arith.constant dense<0.000000e+00> : vector<5x128xf32>
    %89 = tpu.matmul %87, %88, %cst_34 {dimension_numbers = #tpu.dot_dimension_numbers<[1], [0], [0], [1], [0, 0, 1, 1], [], []>} : vector<5x32xbf16>, vector<32x128xbf16>, vector<5x128xf32> -> vector<5x128xf32>
    %90 = arith.addf %65, %89 : vector<5x128xf32>
    %91 = vector.extract_strided_slice %37 {offsets = [0, 64], sizes = [5, 32], strides = [1, 1]} : vector<5x384xf32> to vector<5x32xf32>
    %cst_35 = arith.constant 0.176776692 : f32
    %92 = vector.broadcast %cst_35 : f32 to vector<5x32xf32>
    %93 = arith.mulf %91, %92 : vector<5x32xf32>
    %94 = arith.truncf %93 : vector<5x32xf32> to vector<5x32xbf16>
    %95 = vector.extract_strided_slice %37 {offsets = [0, 192], sizes = [5, 32], strides = [1, 1]} : vector<5x384xf32> to vector<5x32xf32>
    %96 = arith.truncf %95 : vector<5x32xf32> to vector<5x32xbf16>
    %97 = vector.extract_strided_slice %37 {offsets = [0, 320], sizes = [5, 32], strides = [1, 1]} : vector<5x384xf32> to vector<5x32xf32>
    %98 = arith.truncf %97 : vector<5x32xf32> to vector<5x32xbf16>
    %cst_36 = arith.constant dense<0.000000e+00> : vector<5x5xf32>
    %99 = tpu.matmul %94, %96, %cst_36 {dimension_numbers = #tpu.dot_dimension_numbers<[1], [1], [0], [0], [0, 0, 1, 0], [], []>} : vector<5x32xbf16>, vector<5x32xbf16>, vector<5x5xf32> -> vector<5x5xf32>
    %cst_37 = arith.constant dense<0xFF800000> : vector<5xf32>
    %100 = vector.multi_reduction <maximumf>, %99, %cst_37 [1] : vector<5x5xf32> to vector<5xf32>
    %101 = vector.shape_cast %100 : vector<5xf32> to vector<5x1xf32>
    %102 = vector.broadcast %101 : vector<5x1xf32> to vector<5x5xf32>
    %103 = arith.subf %99, %102 : vector<5x5xf32>
    %104 = math.exp %103 : vector<5x5xf32>
    %cst_38 = arith.constant dense<0.000000e+00> : vector<5xf32>
    %105 = vector.multi_reduction <add>, %104, %cst_38 [1] : vector<5x5xf32> to vector<5xf32>
    %106 = vector.shape_cast %105 : vector<5xf32> to vector<5x1xf32>
    %107 = tpu.reciprocal %106 {approx = true} : vector<5x1xf32> -> vector<5x1xf32>
    %108 = vector.broadcast %107 : vector<5x1xf32> to vector<5x5xf32>
    %109 = arith.mulf %104, %108 : vector<5x5xf32>
    %110 = arith.truncf %109 : vector<5x5xf32> to vector<5x5xbf16>
    %cst_39 = arith.constant dense<0.000000e+00> : vector<5x32xf32>
    %111 = tpu.matmul %110, %98, %cst_39 {dimension_numbers = #tpu.dot_dimension_numbers<[1], [0], [0], [1], [0, 0, 1, 1], [], []>} : vector<5x5xbf16>, vector<5x32xbf16>, vector<5x32xf32> -> vector<5x32xf32>
    %112 = arith.truncf %111 : vector<5x32xf32> to vector<5x32xbf16>
    %113 = vector.extract_strided_slice %39 {offsets = [64, 0], sizes = [32, 128], strides = [1, 1]} : vector<128x128xbf16> to vector<32x128xbf16>
    %cst_40 = arith.constant dense<0.000000e+00> : vector<5x128xf32>
    %114 = tpu.matmul %112, %113, %cst_40 {dimension_numbers = #tpu.dot_dimension_numbers<[1], [0], [0], [1], [0, 0, 1, 1], [], []>} : vector<5x32xbf16>, vector<32x128xbf16>, vector<5x128xf32> -> vector<5x128xf32>
    %115 = arith.addf %90, %114 : vector<5x128xf32>
    %116 = vector.extract_strided_slice %37 {offsets = [0, 96], sizes = [5, 32], strides = [1, 1]} : vector<5x384xf32> to vector<5x32xf32>
    %cst_41 = arith.constant 0.176776692 : f32
    %117 = vector.broadcast %cst_41 : f32 to vector<5x32xf32>
    %118 = arith.mulf %116, %117 : vector<5x32xf32>
    %119 = arith.truncf %118 : vector<5x32xf32> to vector<5x32xbf16>
    %120 = vector.extract_strided_slice %37 {offsets = [0, 224], sizes = [5, 32], strides = [1, 1]} : vector<5x384xf32> to vector<5x32xf32>
    %121 = arith.truncf %120 : vector<5x32xf32> to vector<5x32xbf16>
    %122 = vector.extract_strided_slice %37 {offsets = [0, 352], sizes = [5, 32], strides = [1, 1]} : vector<5x384xf32> to vector<5x32xf32>
    %123 = arith.truncf %122 : vector<5x32xf32> to vector<5x32xbf16>
    %cst_42 = arith.constant dense<0.000000e+00> : vector<5x5xf32>
    %124 = tpu.matmul %119, %121, %cst_42 {dimension_numbers = #tpu.dot_dimension_numbers<[1], [1], [0], [0], [0, 0, 1, 0], [], []>} : vector<5x32xbf16>, vector<5x32xbf16>, vector<5x5xf32> -> vector<5x5xf32>
    %cst_43 = arith.constant dense<0xFF800000> : vector<5xf32>
    %125 = vector.multi_reduction <maximumf>, %124, %cst_43 [1] : vector<5x5xf32> to vector<5xf32>
    %126 = vector.shape_cast %125 : vector<5xf32> to vector<5x1xf32>
    %127 = vector.broadcast %126 : vector<5x1xf32> to vector<5x5xf32>
    %128 = arith.subf %124, %127 : vector<5x5xf32>
    %129 = math.exp %128 : vector<5x5xf32>
    %cst_44 = arith.constant dense<0.000000e+00> : vector<5xf32>
    %130 = vector.multi_reduction <add>, %129, %cst_44 [1] : vector<5x5xf32> to vector<5xf32>
    %131 = vector.shape_cast %130 : vector<5xf32> to vector<5x1xf32>
    %132 = tpu.reciprocal %131 {approx = true} : vector<5x1xf32> -> vector<5x1xf32>
    %133 = vector.broadcast %132 : vector<5x1xf32> to vector<5x5xf32>
    %134 = arith.mulf %129, %133 : vector<5x5xf32>
    %135 = arith.truncf %134 : vector<5x5xf32> to vector<5x5xbf16>
    %cst_45 = arith.constant dense<0.000000e+00> : vector<5x32xf32>
    %136 = tpu.matmul %135, %123, %cst_45 {dimension_numbers = #tpu.dot_dimension_numbers<[1], [0], [0], [1], [0, 0, 1, 1], [], []>} : vector<5x5xbf16>, vector<5x32xbf16>, vector<5x32xf32> -> vector<5x32xf32>
    %137 = arith.truncf %136 : vector<5x32xf32> to vector<5x32xbf16>
    %138 = vector.extract_strided_slice %39 {offsets = [96, 0], sizes = [32, 128], strides = [1, 1]} : vector<128x128xbf16> to vector<32x128xbf16>
    %cst_46 = arith.constant dense<0.000000e+00> : vector<5x128xf32>
    %139 = tpu.matmul %137, %138, %cst_46 {dimension_numbers = #tpu.dot_dimension_numbers<[1], [0], [0], [1], [0, 0, 1, 1], [], []>} : vector<5x32xbf16>, vector<32x128xbf16>, vector<5x128xf32> -> vector<5x128xf32>
    %140 = arith.addf %115, %139 : vector<5x128xf32>
    %141 = arith.addf %3, %140 : vector<5x128xf32>
    %c0_47 = arith.constant 0 : index
    %c0_48 = arith.constant 0 : index
    %c0_49 = arith.constant 0 : index
    %142 = vector.load %arg10[%c0_47, %c0_48, %c0_49] : memref<1x1x128xf32, #tpu.memory_space<vmem>>, vector<1x1x128xf32>
    %143 = vector.shape_cast %142 : vector<1x1x128xf32> to vector<1x128xf32>
    %144 = vector.broadcast %143 : vector<1x128xf32> to vector<5x128xf32>
    %145 = arith.addf %141, %144 : vector<5x128xf32>
    %c0_50 = arith.constant 0 : index
    %c0_51 = arith.constant 0 : index
    %c0_52 = arith.constant 0 : index
    %146 = vector.load %arg11[%c0_50, %c0_51, %c0_52] : memref<1x1x128xf32, #tpu.memory_space<vmem>>, vector<1x1x128xf32>
    %147 = vector.shape_cast %146 : vector<1x1x128xf32> to vector<1x128xf32>
    %c0_53 = arith.constant 0 : index
    %c0_54 = arith.constant 0 : index
    %c0_55 = arith.constant 0 : index
    %148 = vector.load %arg12[%c0_53, %c0_54, %c0_55] : memref<1x1x128xf32, #tpu.memory_space<vmem>>, vector<1x1x128xf32>
    %149 = vector.shape_cast %148 : vector<1x1x128xf32> to vector<1x128xf32>
    %cst_56 = arith.constant dense<0.000000e+00> : vector<5xf32>
    %150 = vector.multi_reduction <add>, %145, %cst_56 [1] : vector<5x128xf32> to vector<5xf32>
    %151 = vector.shape_cast %150 : vector<5xf32> to vector<5x1xf32>
    %cst_57 = arith.constant 1.280000e+02 : f32
    %152 = vector.broadcast %cst_57 : f32 to vector<5x1xf32>
    %153 = arith.divf %151, %152 : vector<5x1xf32>
    %154 = vector.broadcast %153 : vector<5x1xf32> to vector<5x128xf32>
    %155 = arith.subf %145, %154 : vector<5x128xf32>
    %156 = arith.mulf %155, %155 : vector<5x128xf32>
    %cst_58 = arith.constant dense<0.000000e+00> : vector<5xf32>
    %157 = vector.multi_reduction <add>, %156, %cst_58 [1] : vector<5x128xf32> to vector<5xf32>
    %158 = vector.shape_cast %157 : vector<5xf32> to vector<5x1xf32>
    %cst_59 = arith.constant 1.280000e+02 : f32
    %159 = vector.broadcast %cst_59 : f32 to vector<5x1xf32>
    %160 = arith.divf %158, %159 : vector<5x1xf32>
    %161 = vector.broadcast %153 : vector<5x1xf32> to vector<5x128xf32>
    %162 = arith.subf %145, %161 : vector<5x128xf32>
    %cst_60 = arith.constant 9.99999997E-7 : f32
    %163 = vector.broadcast %cst_60 : f32 to vector<5x1xf32>
    %164 = arith.addf %160, %163 : vector<5x1xf32>
    %165 = math.rsqrt %164 : vector<5x1xf32>
    %166 = vector.broadcast %165 : vector<5x1xf32> to vector<5x128xf32>
    %167 = arith.mulf %162, %166 : vector<5x128xf32>
    %168 = vector.broadcast %147 : vector<1x128xf32> to vector<5x128xf32>
    %169 = arith.mulf %167, %168 : vector<5x128xf32>
    %170 = vector.broadcast %149 : vector<1x128xf32> to vector<5x128xf32>
    %171 = arith.addf %169, %170 : vector<5x128xf32>
    %172 = arith.truncf %171 : vector<5x128xf32> to vector<5x128xbf16>
    %c0_61 = arith.constant 0 : index
    %c0_62 = arith.constant 0 : index
    %c0_63 = arith.constant 0 : index
    %173 = vector.load %arg13[%c0_61, %c0_62, %c0_63] : memref<1x128x256xbf16, #tpu.memory_space<vmem>>, vector<1x128x256xbf16>
    %174 = vector.shape_cast %173 : vector<1x128x256xbf16> to vector<128x256xbf16>
    %cst_64 = arith.constant dense<0.000000e+00> : vector<5x256xf32>
    %175 = tpu.matmul %172, %174, %cst_64 {dimension_numbers = #tpu.dot_dimension_numbers<[1], [0], [0], [1], [0, 0, 1, 1], [], []>} : vector<5x128xbf16>, vector<128x256xbf16>, vector<5x256xf32> -> vector<5x256xf32>
    %c0_65 = arith.constant 0 : index
    %c0_66 = arith.constant 0 : index
    %c0_67 = arith.constant 0 : index
    %176 = vector.load %arg14[%c0_65, %c0_66, %c0_67] : memref<1x1x256xf32, #tpu.memory_space<vmem>>, vector<1x1x256xf32>
    %177 = vector.shape_cast %176 : vector<1x1x256xf32> to vector<1x256xf32>
    %178 = vector.broadcast %177 : vector<1x256xf32> to vector<5x256xf32>
    %179 = arith.addf %175, %178 : vector<5x256xf32>
    %180 = arith.mulf %179, %179 : vector<5x256xf32>
    %181 = arith.mulf %179, %180 : vector<5x256xf32>
    %cst_68 = arith.constant 4.471500e-02 : f32
    %182 = vector.broadcast %cst_68 : f32 to vector<5x256xf32>
    %183 = arith.mulf %182, %181 : vector<5x256xf32>
    %184 = arith.addf %179, %183 : vector<5x256xf32>
    %cst_69 = arith.constant 0.797884583 : f32
    %185 = vector.broadcast %cst_69 : f32 to vector<5x256xf32>
    %186 = arith.mulf %185, %184 : vector<5x256xf32>
    %187 = math.tanh %186 : vector<5x256xf32>
    %cst_70 = arith.constant 1.000000e+00 : f32
    %188 = vector.broadcast %cst_70 : f32 to vector<5x256xf32>
    %189 = arith.addf %188, %187 : vector<5x256xf32>
    %cst_71 = arith.constant 5.000000e-01 : f32
    %190 = vector.broadcast %cst_71 : f32 to vector<5x256xf32>
    %191 = arith.mulf %190, %189 : vector<5x256xf32>
    %192 = arith.mulf %179, %191 : vector<5x256xf32>
    %193 = arith.truncf %192 : vector<5x256xf32> to vector<5x256xbf16>
    %c0_72 = arith.constant 0 : index
    %c0_73 = arith.constant 0 : index
    %c0_74 = arith.constant 0 : index
    %194 = vector.load %arg15[%c0_72, %c0_73, %c0_74] : memref<1x256x128xbf16, #tpu.memory_space<vmem>>, vector<1x256x128xbf16>
    %195 = vector.shape_cast %194 : vector<1x256x128xbf16> to vector<256x128xbf16>
    %cst_75 = arith.constant dense<0.000000e+00> : vector<5x128xf32>
    %196 = tpu.matmul %193, %195, %cst_75 {dimension_numbers = #tpu.dot_dimension_numbers<[1], [0], [0], [1], [0, 0, 1, 1], [], []>} : vector<5x256xbf16>, vector<256x128xbf16>, vector<5x128xf32> -> vector<5x128xf32>
    %c0_76 = arith.constant 0 : index
    %c0_77 = arith.constant 0 : index
    %c0_78 = arith.constant 0 : index
    %197 = vector.load %arg16[%c0_76, %c0_77, %c0_78] : memref<1x1x128xf32, #tpu.memory_space<vmem>>, vector<1x1x128xf32>
    %198 = vector.shape_cast %197 : vector<1x1x128xf32> to vector<1x128xf32>
    %199 = vector.broadcast %198 : vector<1x128xf32> to vector<5x128xf32>
    %200 = arith.addf %196, %199 : vector<5x128xf32>
    %201 = arith.addf %145, %200 : vector<5x128xf32>
    %c0_79 = arith.constant 0 : index
    %c0_80 = arith.constant 0 : index
    %202 = vector.load %arg24[%c0_79, %c0_80] : memref<5x128xf32, #tpu.memory_space<vmem>>, vector<5x128xf32>
    tpu.vector_store %arg24[%c0_79, %c0_80], %201 {strides = array<i32>} : memref<5x128xf32, #tpu.memory_space<vmem>>, vector<5x128xf32>,
    %c1_i32 = arith.constant 1 : i32
    %203 = arith.cmpi eq, %arg1, %c1_i32 : i32
    %204 = arith.extui %203 : i1 to i32
    %c0_i32_81 = arith.constant 0 : i32
    %205 = arith.cmpi ne, %204, %c0_i32_81 : i32
    scf.if %205 {
      %206 = vector.extract_strided_slice %201 {offsets = [0, 0], sizes = [1, 128], strides = [1, 1]} : vector<5x128xf32> to vector<1x128xf32>
      %c0_82 = arith.constant 0 : index
      %c0_83 = arith.constant 0 : index
      %207 = vector.load %arg17[%c0_82, %c0_83] : memref<1x128xf32, #tpu.memory_space<vmem>>, vector<1x128xf32>
      %c0_84 = arith.constant 0 : index
      %c0_85 = arith.constant 0 : index
      %208 = vector.load %arg18[%c0_84, %c0_85] : memref<1x128xf32, #tpu.memory_space<vmem>>, vector<1x128xf32>
      %cst_86 = arith.constant dense<0.000000e+00> : vector<1xf32>
      %209 = vector.multi_reduction <add>, %206, %cst_86 [1] : vector<1x128xf32> to vector<1xf32>
      %210 = vector.shape_cast %209 : vector<1xf32> to vector<1x1xf32>
      %cst_87 = arith.constant 1.280000e+02 : f32
      %211 = vector.broadcast %cst_87 : f32 to vector<1x1xf32>
      %212 = arith.divf %210, %211 : vector<1x1xf32>
      %213 = vector.broadcast %212 : vector<1x1xf32> to vector<1x128xf32>
      %214 = arith.subf %206, %213 : vector<1x128xf32>
      %215 = arith.mulf %214, %214 : vector<1x128xf32>
      %cst_88 = arith.constant dense<0.000000e+00> : vector<1xf32>
      %216 = vector.multi_reduction <add>, %215, %cst_88 [1] : vector<1x128xf32> to vector<1xf32>
      %217 = vector.shape_cast %216 : vector<1xf32> to vector<1x1xf32>
      %cst_89 = arith.constant 1.280000e+02 : f32
      %218 = vector.broadcast %cst_89 : f32 to vector<1x1xf32>
      %219 = arith.divf %217, %218 : vector<1x1xf32>
      %220 = vector.broadcast %212 : vector<1x1xf32> to vector<1x128xf32>
      %221 = arith.subf %206, %220 : vector<1x128xf32>
      %cst_90 = arith.constant 9.99999997E-7 : f32
      %222 = vector.broadcast %cst_90 : f32 to vector<1x1xf32>
      %223 = arith.addf %219, %222 : vector<1x1xf32>
      %224 = math.rsqrt %223 : vector<1x1xf32>
      %225 = vector.broadcast %224 : vector<1x1xf32> to vector<1x128xf32>
      %226 = arith.mulf %221, %225 : vector<1x128xf32>
      %227 = arith.mulf %226, %207 : vector<1x128xf32>
      %228 = arith.addf %227, %208 : vector<1x128xf32>
      %229 = arith.truncf %228 : vector<1x128xf32> to vector<1x128xbf16>
      %c0_91 = arith.constant 0 : index
      %c0_92 = arith.constant 0 : index
      %230 = vector.load %arg19[%c0_91, %c0_92] : memref<128x256xbf16, #tpu.memory_space<vmem>>, vector<128x256xbf16>
      %cst_93 = arith.constant dense<0.000000e+00> : vector<1x256xf32>
      %231 = tpu.matmul %229, %230, %cst_93 {dimension_numbers = #tpu.dot_dimension_numbers<[1], [0], [0], [1], [0, 0, 1, 1], [], []>} : vector<1x128xbf16>, vector<128x256xbf16>, vector<1x256xf32> -> vector<1x256xf32>
      %c0_94 = arith.constant 0 : index
      %c0_95 = arith.constant 0 : index
      %232 = vector.load %arg20[%c0_94, %c0_95] : memref<1x256xf32, #tpu.memory_space<vmem>>, vector<1x256xf32>
      %233 = arith.addf %231, %232 : vector<1x256xf32>
      %cst_96 = arith.constant 0.000000e+00 : f32
      %234 = vector.broadcast %cst_96 : f32 to vector<1x256xf32>
      %235 = arith.maximumf %233, %234 : vector<1x256xf32>
      %236 = arith.truncf %235 : vector<1x256xf32> to vector<1x256xbf16>
      %c0_97 = arith.constant 0 : index
      %c0_98 = arith.constant 0 : index
      %237 = vector.load %arg21[%c0_97, %c0_98] : memref<256x128xbf16, #tpu.memory_space<vmem>>, vector<256x128xbf16>
      %cst_99 = arith.constant dense<0.000000e+00> : vector<1x128xf32>
      %238 = tpu.matmul %236, %237, %cst_99 {dimension_numbers = #tpu.dot_dimension_numbers<[1], [0], [0], [1], [0, 0, 1, 1], [], []>} : vector<1x256xbf16>, vector<256x128xbf16>, vector<1x128xf32> -> vector<1x128xf32>
      %c0_100 = arith.constant 0 : index
      %c0_101 = arith.constant 0 : index
      %239 = vector.load %arg22[%c0_100, %c0_101] : memref<1x128xf32, #tpu.memory_space<vmem>>, vector<1x128xf32>
      %240 = arith.addf %238, %239 : vector<1x128xf32>
      %c0_102 = arith.constant 0 : index
      %c0_103 = arith.constant 0 : index
      %c0_104 = arith.constant 0 : index
      %241 = vector.load %arg23[%c0_102, %c0_103, %c0_104] : memref<1x1x128xf32, #tpu.memory_space<vmem>>, vector<1x1x128xf32>
      %242 = vector.shape_cast %241 : vector<1x1x128xf32> to vector<1x128xf32>
      %243 = vector.shape_cast %240 : vector<1x128xf32> to vector<1x1x128xf32>
      tpu.vector_store %arg23[%c0_102, %c0_103, %c0_104], %243 {strides = array<i32>} : memref<1x1x128xf32, #tpu.memory_space<vmem>>, vector<1x1x128xf32>,
    } else {
    }
    return
  }
  func.func @transform_0(%arg0: i32, %arg1: i32) -> (i32, i32, i32) {
    %c0_i32 = arith.constant 0 : i32
    %c0_i32_0 = arith.constant 0 : i32
    %c0_i32_1 = arith.constant 0 : i32
    return %arg0, %c0_i32, %c0_i32_0 : i32, i32, i32
  }
  func.func @transform_1(%arg0: i32, %arg1: i32) -> (i32, i32) {
    %c0_i32 = arith.constant 0 : i32
    %c0_i32_0 = arith.constant 0 : i32
    %c0_i32_1 = arith.constant 0 : i32
    return %c0_i32, %c0_i32_0 : i32, i32
  }
  func.func @transform_2(%arg0: i32, %arg1: i32) -> (i32, i32) {
    %c0_i32 = arith.constant 0 : i32
    %c0_i32_0 = arith.constant 0 : i32
    %c0_i32_1 = arith.constant 0 : i32
    return %c0_i32, %c0_i32_0 : i32, i32
  }
  func.func @transform_3(%arg0: i32, %arg1: i32) -> (i32, i32, i32) {
    %c0_i32 = arith.constant 0 : i32
    %c0_i32_0 = arith.constant 0 : i32
    %c0_i32_1 = arith.constant 0 : i32
    return %arg1, %c0_i32, %c0_i32_0 : i32, i32, i32
  }
  func.func @transform_4(%arg0: i32, %arg1: i32) -> (i32, i32, i32) {
    %c0_i32 = arith.constant 0 : i32
    %c0_i32_0 = arith.constant 0 : i32
    %c0_i32_1 = arith.constant 0 : i32
    return %arg1, %c0_i32, %c0_i32_0 : i32, i32, i32
  }
  func.func @transform_5(%arg0: i32, %arg1: i32) -> (i32, i32, i32) {
    %c0_i32 = arith.constant 0 : i32
    %c0_i32_0 = arith.constant 0 : i32
    %c0_i32_1 = arith.constant 0 : i32
    return %arg1, %c0_i32, %c0_i32_0 : i32, i32, i32
  }
  func.func @transform_6(%arg0: i32, %arg1: i32) -> (i32, i32, i32) {
    %c0_i32 = arith.constant 0 : i32
    %c0_i32_0 = arith.constant 0 : i32
    %c0_i32_1 = arith.constant 0 : i32
    return %arg1, %c0_i32, %c0_i32_0 : i32, i32, i32
  }
  func.func @transform_7(%arg0: i32, %arg1: i32) -> (i32, i32, i32) {
    %c0_i32 = arith.constant 0 : i32
    %c0_i32_0 = arith.constant 0 : i32
    %c0_i32_1 = arith.constant 0 : i32
    return %arg1, %c0_i32, %c0_i32_0 : i32, i32, i32
  }
  func.func @transform_8(%arg0: i32, %arg1: i32) -> (i32, i32, i32) {
    %c0_i32 = arith.constant 0 : i32
    %c0_i32_0 = arith.constant 0 : i32
    %c0_i32_1 = arith.constant 0 : i32
    return %arg1, %c0_i32, %c0_i32_0 : i32, i32, i32
  }
  func.func @transform_9(%arg0: i32, %arg1: i32) -> (i32, i32, i32) {
    %c0_i32 = arith.constant 0 : i32
    %c0_i32_0 = arith.constant 0 : i32
    %c0_i32_1 = arith.constant 0 : i32
    return %arg1, %c0_i32, %c0_i32_0 : i32, i32, i32
  }
  func.func @transform_10(%arg0: i32, %arg1: i32) -> (i32, i32, i32) {
    %c0_i32 = arith.constant 0 : i32
    %c0_i32_0 = arith.constant 0 : i32
    %c0_i32_1 = arith.constant 0 : i32
    return %arg1, %c0_i32, %c0_i32_0 : i32, i32, i32
  }
  func.func @transform_11(%arg0: i32, %arg1: i32) -> (i32, i32, i32) {
    %c0_i32 = arith.constant 0 : i32
    %c0_i32_0 = arith.constant 0 : i32
    %c0_i32_1 = arith.constant 0 : i32
    return %arg1, %c0_i32, %c0_i32_0 : i32, i32, i32
  }
  func.func @transform_12(%arg0: i32, %arg1: i32) -> (i32, i32, i32) {
    %c0_i32 = arith.constant 0 : i32
    %c0_i32_0 = arith.constant 0 : i32
    %c0_i32_1 = arith.constant 0 : i32
    return %arg1, %c0_i32, %c0_i32_0 : i32, i32, i32
  }
  func.func @transform_13(%arg0: i32, %arg1: i32) -> (i32, i32, i32) {
    %c0_i32 = arith.constant 0 : i32
    %c0_i32_0 = arith.constant 0 : i32
    %c0_i32_1 = arith.constant 0 : i32
    return %arg1, %c0_i32, %c0_i32_0 : i32, i32, i32
  }
  func.func @transform_14(%arg0: i32, %arg1: i32) -> (i32, i32, i32) {
    %c0_i32 = arith.constant 0 : i32
    %c0_i32_0 = arith.constant 0 : i32
    %c0_i32_1 = arith.constant 0 : i32
    return %arg1, %c0_i32, %c0_i32_0 : i32, i32, i32
  }
  func.func @transform_15(%arg0: i32, %arg1: i32) -> (i32, i32) {
    %c0_i32 = arith.constant 0 : i32
    %c0_i32_0 = arith.constant 0 : i32
    %c0_i32_1 = arith.constant 0 : i32
    return %c0_i32, %c0_i32_0 : i32, i32
  }
  func.func @transform_16(%arg0: i32, %arg1: i32) -> (i32, i32) {
    %c0_i32 = arith.constant 0 : i32
    %c0_i32_0 = arith.constant 0 : i32
    %c0_i32_1 = arith.constant 0 : i32
    return %c0_i32, %c0_i32_0 : i32, i32
  }
  func.func @transform_17(%arg0: i32, %arg1: i32) -> (i32, i32) {
    %c0_i32 = arith.constant 0 : i32
    %c0_i32_0 = arith.constant 0 : i32
    %c0_i32_1 = arith.constant 0 : i32
    return %c0_i32, %c0_i32_0 : i32, i32
  }
  func.func @transform_18(%arg0: i32, %arg1: i32) -> (i32, i32) {
    %c0_i32 = arith.constant 0 : i32
    %c0_i32_0 = arith.constant 0 : i32
    %c0_i32_1 = arith.constant 0 : i32
    return %c0_i32, %c0_i32_0 : i32, i32
  }
  func.func @transform_19(%arg0: i32, %arg1: i32) -> (i32, i32) {
    %c0_i32 = arith.constant 0 : i32
    %c0_i32_0 = arith.constant 0 : i32
    %c0_i32_1 = arith.constant 0 : i32
    return %c0_i32, %c0_i32_0 : i32, i32
  }
  func.func @transform_20(%arg0: i32, %arg1: i32) -> (i32, i32) {
    %c0_i32 = arith.constant 0 : i32
    %c0_i32_0 = arith.constant 0 : i32
    %c0_i32_1 = arith.constant 0 : i32
    return %c0_i32, %c0_i32_0 : i32, i32
  }
  func.func @transform_21(%arg0: i32, %arg1: i32) -> (i32, i32, i32) {
    %c0_i32 = arith.constant 0 : i32
    %c0_i32_0 = arith.constant 0 : i32
    %c0_i32_1 = arith.constant 0 : i32
    return %arg0, %c0_i32, %c0_i32_0 : i32, i32, i32
  }
}

</mosaic_0001>

<llo_original>
// kernel: squeeze.5
$region0: #{squeeze.5}
  %s0 = inlined_call_operand.vmem [shape: f32[2,48], index: 0, kind: input, shape index: {}]
  %s1 = inlined_call_operand.vmem [shape: f32[2,16,3], index: 1, kind: output, shape index: {}]
  $region1: #{squeeze.5} parent=0
    #allocation0 [shape = 'u8[4096]{0}', space=vmem, size = 0x1000, scoped, tag = 'scoped mem for input reshape']
    %s3 = sshllo.u32 0, 2
    %v4 = vld [vmem:[%s0] sm:%s3]
    %5 = vst [vmem:[#allocation0] sm:%s3] %v4
    %v6 = vld [vmem:[#allocation0] sm:$0x3]
    %vm7 = vcmask 23552
    %8 = vst.msk [vmem:[%s1] ss:$16 sm:$0x3] %vm7, %v6
    %v9 = vld [vmem:[#allocation0] sm:$0x3]
    %10 = vrot.lane.b32.xlu0 %v9, 125
    %v11 = vpop.permute.xlu0 %10
    %vm12 = vcmask 23552
    %s13 = scalar_lea.vmem %s1, 1
    %14 = vst.msk [vmem:[%s13] ss:$16 sm:$0x3] %vm12, %v11
    %v15 = vld [vmem:[#allocation0] sm:$0x3]
    %16 = vrot.lane.b32.xlu0 %v15, 122
    %v17 = vpop.permute.xlu0 %16
    %vm18 = vcmask 23552
    %s19 = scalar_lea.vmem %s1, 2
    %20 = vst.msk [vmem:[%s19] ss:$16 sm:$0x3] %vm18, %v17
    %v21 = vld [vmem:[#allocation0] sm:$0x3]
    %22 = vrot.lane.b32.xlu0 %v21, 119
    %v23 = vpop.permute.xlu0 %22
    %vm24 = vcmask 23552
    %s25 = scalar_lea.vmem %s1, 3
    %26 = vst.msk [vmem:[%s25] ss:$16 sm:$0x3] %vm24, %v23
    %v27 = vld [vmem:[#allocation0] sm:$0x3]
    %28 = vrot.lane.b32.xlu0 %v27, 116
    %v29 = vpop.permute.xlu0 %28
    %vm30 = vcmask 23552
    %s31 = scalar_lea.vmem %s1, 4
    %32 = vst.msk [vmem:[%s31] ss:$16 sm:$0x3] %vm30, %v29
    %v33 = vld [vmem:[#allocation0] sm:$0x3]
    %34 = vrot.lane.b32.xlu0 %v33, 113
    %v35 = vpop.permute.xlu0 %34
    %vm36 = vcmask 23552
    %s37 = scalar_lea.vmem %s1, 5
    %38 = vst.msk [vmem:[%s37] ss:$16 sm:$0x3] %vm36, %v35
    %v39 = vld [vmem:[#allocation0] sm:$0x3]
    %40 = vrot.lane.b32.xlu0 %v39, 110
    %v41 = vpop.permute.xlu0 %40
    %vm42 = vcmask 23552
    %s43 = scalar_lea.vmem %s1, 6
    %44 = vst.msk [vmem:[%s43] ss:$16 sm:$0x3] %vm42, %v41
    %v45 = vld [vmem:[#allocation0] sm:$0x3]
    %46 = vrot.lane.b32.xlu0 %v45, 107
    %v47 = vpop.permute.xlu0 %46
    %vm48 = vcmask 23552
    %s49 = scalar_lea.vmem %s1, 7
    %50 = vst.msk [vmem:[%s49] ss:$16 sm:$0x3] %vm48, %v47
    %v51 = vld [vmem:[#allocation0] sm:$0x3]
    %52 = vrot.lane.b32.xlu0 %v51, 104
    %v53 = vpop.permute.xlu0 %52
    %vm54 = vcmask 23552
    %s55 = scalar_lea.vmem %s1, 8
    %56 = vst.msk [vmem:[%s55] ss:$16 sm:$0x3] %vm54, %v53
    %v57 = vld [vmem:[#allocation0] sm:$0x3]
    %58 = vrot.lane.b32.xlu0 %v57, 101
    %v59 = vpop.permute.xlu0 %58
    %vm60 = vcmask 23552
    %s61 = scalar_lea.vmem %s1, 9
    %62 = vst.msk [vmem:[%s61] ss:$16 sm:$0x3] %vm60, %v59
    %v63 = vld [vmem:[#allocation0] sm:$0x3]
    %64 = vrot.lane.b32.xlu0 %v63, 98
    %v65 = vpop.permute.xlu0 %64
    %vm66 = vcmask 23552
    %s67 = scalar_lea.vmem %s1, 10
    %68 = vst.msk [vmem:[%s67] ss:$16 sm:$0x3] %vm66, %v65
    %v69 = vld [vmem:[#allocation0] sm:$0x3]
    %70 = vrot.lane.b32.xlu0 %v69, 95
    %v71 = vpop.permute.xlu0 %70
    %vm72 = vcmask 23552
    %s73 = scalar_lea.vmem %s1, 11
    %74 = vst.msk [vmem:[%s73] ss:$16 sm:$0x3] %vm72, %v71
    %v75 = vld [vmem:[#allocation0] sm:$0x3]
    %76 = vrot.lane.b32.xlu0 %v75, 92
    %v77 = vpop.permute.xlu0 %76
    %vm78 = vcmask 23552
    %s79 = scalar_lea.vmem %s1, 12
    %80 = vst.msk [vmem:[%s79] ss:$16 sm:$0x3] %vm78, %v77
    %v81 = vld [vmem:[#allocation0] sm:$0x3]
    %82 = vrot.lane.b32.xlu0 %v81, 89
    %v83 = vpop.permute.xlu0 %82
    %vm84 = vcmask 23552
    %s85 = scalar_lea.vmem %s1, 13
    %86 = vst.msk [vmem:[%s85] ss:$16 sm:$0x3] %vm84, %v83
    %v87 = vld [vmem:[#allocation0] sm:$0x3]
    %88 = vrot.lane.b32.xlu0 %v87, 86
    %v89 = vpop.permute.xlu0 %88
    %vm90 = vcmask 23552
    %s91 = scalar_lea.vmem %s1, 14
    %92 = vst.msk [vmem:[%s91] ss:$16 sm:$0x3] %vm90, %v89
    %v93 = vld [vmem:[#allocation0] sm:$0x3]
    %94 = vrot.lane.b32.xlu0 %v93, 83
    %v95 = vpop.permute.xlu0 %94
    %vm96 = vcmask 23552
    %s97 = scalar_lea.vmem %s1, 15
    %98 = vst.msk [vmem:[%s97] ss:$16 sm:$0x3] %vm96, %v95

// kernel: image_to_point_cloud.1
$region0: #{image_to_point_cloud.1}
  #allocation0 [shape = 'u32[]', space=smem, size = 0x4, offset = 0x4, fixed_abs, tag = 'smem constant byte address 0x4 - core index']
  #allocation1 [shape = 'u32[144,128]{1,0:T(1,128)}', space=vmem, size = 0x12000, scoped, tag = 'internal scratch']
  #allocation2 [shape = 'f32[5,128]{1,0:T(8,128)}', space=vmem, size = 0x1000, scoped, tag = 'scratch operand']
  %s0 = inlined_call_operand.vmem [shape: f32[2,5,768], index: 0, kind: input, shape index: {}]
  %s1 = inlined_call_operand.vmem [shape: bf16[768,128], index: 1, kind: input, shape index: {}]
  %s2 = inlined_call_operand.vmem [shape: f32[5,128], index: 2, kind: input, shape index: {}]
  %s3 = inlined_call_operand.vmem [shape: f32[2,1,128], index: 3, kind: input, shape index: {}]
  %s4 = inlined_call_operand.vmem [shape: f32[2,1,128], index: 4, kind: input, shape index: {}]
  %s5 = inlined_call_operand.vmem [shape: bf16[2,128,384], index: 5, kind: input, shape index: {}]
  %s6 = inlined_call_operand.vmem [shape: f32[2,1,384], index: 6, kind: input, shape index: {}]
  %s7 = inlined_call_operand.vmem [shape: bf16[2,128,128], index: 7, kind: input, shape index: {}]
  %s8 = inlined_call_operand.vmem [shape: f32[2,1,128], index: 8, kind: input, shape index: {}]
  %s9 = inlined_call_operand.vmem [shape: f32[2,1,128], index: 9, kind: input, shape index: {}]
  %s10 = inlined_call_operand.vmem [shape: f32[2,1,128], index: 10, kind: input, shape index: {}]
  %s11 = inlined_call_operand.vmem [shape: bf16[2,128,256], index: 11, kind: input, shape index: {}]
  %s12 = inlined_call_operand.vmem [shape: f32[2,1,256], index: 12, kind: input, shape index: {}]
  %s13 = inlined_call_operand.vmem [shape: bf16[2,256,128], index: 13, kind: input, shape index: {}]
  %s14 = inlined_call_operand.vmem [shape: f32[2,1,128], index: 14, kind: input, shape index: {}]
  %s15 = inlined_call_operand.vmem [shape: f32[1,128], index: 15, kind: input, shape index: {}]
  %s16 = inlined_call_operand.vmem [shape: f32[1,128], index: 16, kind: input, shape index: {}]
  %s17 = inlined_call_operand.vmem [shape: bf16[128,256], index: 17, kind: input, shape index: {}]
  %s18 = inlined_call_operand.vmem [shape: f32[1,256], index: 18, kind: input, shape index: {}]
  %s19 = inlined_call_operand.vmem [shape: bf16[256,128], index: 19, kind: input, shape index: {}]
  %s20 = inlined_call_operand.vmem [shape: f32[1,128], index: 20, kind: input, shape index: {}]
  %s21 = inlined_call_operand.vmem [shape: f32[2,1,128], index: 21, kind: output, shape index: {}]
  %s22 = sld [smem:[#allocation0]]
  $region125: #{image_to_point_cloud.1} parent=0
    _
  %s24 = ssub.s32 1, %s22
  %s25 = scalar_select 0, %s24, %s22
  loop: start=0, step=1, limit=6
  $region2: #{image_to_point_cloud.1} parent=0 // loop_pre_header
    _
  $region3: #{image_to_point_cloud.1} parent=0 // loop_header
    %s27 = sphi 0, %s31
    %p28 = scmp.ge.s32.totalorder %s27, 6
    %s34 = sphi 0, %s46
    %s35 = sphi 0, %s42
    %s36 = sphi 0, %s34
    %s37 = sphi 0, %s35
    %s38 = sphi 0, %s36
    %s39 = sphi 0, %s37
    %s49 = sphi 0, %s51
    %s52 = sphi 0, %s49
    %s53 = sphi 0, %s52
    %s69 = sphi 0, %s53
    %s73 = sphi 0, %s73
    %s75 = sphi 0, %s73
    %s76 = sphi 0, %s75
    %s90 = sphi 0, %s76
    %s94 = sphi 0, %s94
    %s96 = sphi 0, %s94
    %s97 = sphi 0, %s96
    %s111 = sphi 0, %s97
    %s117 = sphi 0, %s119
    %s120 = sphi 0, %s117
    %s121 = sphi 0, %s120
    %s137 = sphi 0, %s121
    %s143 = sphi 0, %s145
    %s146 = sphi 0, %s143
    %s147 = sphi 0, %s146
    %s163 = sphi 0, %s147
    %s169 = sphi 0, %s171
    %s172 = sphi 0, %s169
    %s173 = sphi 0, %s172
    %s189 = sphi 0, %s173
    %s195 = sphi 0, %s197
    %s198 = sphi 0, %s195
    %s199 = sphi 0, %s198
    %s215 = sphi 0, %s199
    %s221 = sphi 0, %s223
    %s224 = sphi 0, %s221
    %s225 = sphi 0, %s224
    %s241 = sphi 0, %s225
    %s247 = sphi 0, %s249
    %s250 = sphi 0, %s247
    %s251 = sphi 0, %s250
    %s267 = sphi 0, %s251
    %s273 = sphi 0, %s275
    %s276 = sphi 0, %s273
    %s277 = sphi 0, %s276
    %s293 = sphi 0, %s277
    %s299 = sphi 0, %s301
    %s302 = sphi 0, %s299
    %s303 = sphi 0, %s302
    %s319 = sphi 0, %s303
    %s325 = sphi 0, %s327
    %s328 = sphi 0, %s325
    %s329 = sphi 0, %s328
    %s345 = sphi 0, %s329
    %s351 = sphi 0, %s353
    %s354 = sphi 0, %s351
    %s355 = sphi 0, %s354
    %s371 = sphi 0, %s355
    %s377 = sphi 0, %s379
    %s380 = sphi 0, %s377
    %s381 = sphi 0, %s380
    %s397 = sphi 0, %s381
    %s403 = sphi 0, %s405
    %s406 = sphi 0, %s403
    %s407 = sphi 0, %s406
    %s423 = sphi 0, %s407
    %s427 = sphi 0, %s427
    %s429 = sphi 0, %s427
    %s430 = sphi 0, %s429
    %s444 = sphi 0, %s430
    %s448 = sphi 0, %s448
    %s450 = sphi 0, %s448
    %s451 = sphi 0, %s450
    %s465 = sphi 0, %s451
    %s469 = sphi 0, %s469
    %s471 = sphi 0, %s469
    %s472 = sphi 0, %s471
    %s486 = sphi 0, %s472
    %s490 = sphi 0, %s490
    %s492 = sphi 0, %s490
    %s493 = sphi 0, %s492
    %s507 = sphi 0, %s493
    %s511 = sphi 0, %s511
    %s513 = sphi 0, %s511
    %s514 = sphi 0, %s513
    %s528 = sphi 0, %s514
    %s532 = sphi 0, %s532
    %s534 = sphi 0, %s532
    %s535 = sphi 0, %s534
    %s549 = sphi 0, %s535
    %s555 = sphi 0, %s557
    %s558 = sphi 0, %s555
    %s559 = sphi 0, %s558
    %s575 = sphi 0, %s559
  $region4: #{image_to_point_cloud.1} parent=0 // loop_header_branch
    %30 = sbr.rel (%p28) target = $region8
  $region5: #{image_to_point_cloud.1} parent=0 // loop_body
    %s32 = ssub.s32 %s27, 1
    %s33 = ssub.s32 %s27, 2
    %s40 = sadd.s32 1, %s35
    %p41 = scmp.ge.s32.totalorder %s40, 2
    %s42 = scalar_select %p41, 0, %s40
    %s43 = sadd.s32 1, %s34
    %s44 = scalar_select %p41, %s43, %s34
    %p45 = scmp.ge.s32.totalorder %s44, 2
    %s46 = scalar_select %p45, 0, %s44
    %s47 = ssub.s32 %s34, %s46
    %p48 = scmp.eq.s32.totalorder %s47, 0
    %s50 = sadd.s32 %s49, 1
    %s51 = scalar_select %p48, %s49, %s50
    %p54 = pneg %p48
    %p55 = scmp.eq.s32.totalorder %s27, 3
    %p56 = por %p54, %p55
    %p57 = scmp.ne.s32.totalorder %s49, %s52
    %p58 = scmp.eq.s32.totalorder %s27, 0
    %p59 = por %p57, %p58
    %p60 = scmp.ne.s32.totalorder %s49, %s52
    %p61 = scmp.eq.s32.totalorder %s32, 3
    %p62 = por %p60, %p61
    %p63 = scmp.ne.s32.totalorder %s52, %s53
    %p64 = scmp.eq.s32.totalorder %s32, 0
    %p65 = por %p63, %p64
    %p66 = scmp.ne.s32.totalorder %s52, %s53
    %p67 = scmp.eq.s32.totalorder %s33, 3
    %p68 = por %p66, %p67
    %p70 = scmp.ne.s32.totalorder %s53, %s69
    %p71 = scmp.eq.s32.totalorder %s33, 0
    %p72 = por %p70, %p71
    %s74 = sadd.s32 %s73, 1
    %p77 = scmp.eq.s32.totalorder %s27, 3
    %p78 = scmp.ne.s32.totalorder %s73, %s75
    %p79 = scmp.eq.s32.totalorder %s27, 0
    %p80 = por %p78, %p79
    %p81 = scmp.ne.s32.totalorder %s73, %s75
    %p82 = scmp.eq.s32.totalorder %s32, 3
    %p83 = por %p81, %p82
    %p84 = scmp.ne.s32.totalorder %s75, %s76
    %p85 = scmp.eq.s32.totalorder %s32, 0
    %p86 = por %p84, %p85
    %p87 = scmp.ne.s32.totalorder %s75, %s76
    %p88 = scmp.eq.s32.totalorder %s33, 3
    %p89 = por %p87, %p88
    %p91 = scmp.ne.s32.totalorder %s76, %s90
    %p92 = scmp.eq.s32.totalorder %s33, 0
    %p93 = por %p91, %p92
    %s95 = sadd.s32 %s94, 1
    %p98 = scmp.eq.s32.totalorder %s27, 3
    %p99 = scmp.ne.s32.totalorder %s94, %s96
    %p100 = scmp.eq.s32.totalorder %s27, 0
    %p101 = por %p99, %p100
    %p102 = scmp.ne.s32.totalorder %s94, %s96
    %p103 = scmp.eq.s32.totalorder %s32, 3
    %p104 = por %p102, %p103
    %p105 = scmp.ne.s32.totalorder %s96, %s97
    %p106 = scmp.eq.s32.totalorder %s32, 0
    %p107 = por %p105, %p106
    %p108 = scmp.ne.s32.totalorder %s96, %s97
    %p109 = scmp.eq.s32.totalorder %s33, 3
    %p110 = por %p108, %p109
    %p112 = scmp.ne.s32.totalorder %s97, %s111
    %p113 = scmp.eq.s32.totalorder %s33, 0
    %p114 = por %p112, %p113
    %s115 = ssub.s32 %s35, %s42
    %p116 = scmp.eq.s32.totalorder %s115, 0
    %s118 = sadd.s32 %s117, 1
    %s119 = scalar_select %p116, %s117, %s118
    %p122 = pneg %p116
    %p123 = scmp.eq.s32.totalorder %s27, 3
    %p124 = por %p122, %p123
    %p125 = scmp.ne.s32.totalorder %s117, %s120
    %p126 = scmp.eq.s32.totalorder %s27, 0
    %p127 = por %p125, %p126
    %p128 = scmp.ne.s32.totalorder %s117, %s120
    %p129 = scmp.eq.s32.totalorder %s32, 3
    %p130 = por %p128, %p129
    %p131 = scmp.ne.s32.totalorder %s120, %s121
    %p132 = scmp.eq.s32.totalorder %s32, 0
    %p133 = por %p131, %p132
    %p134 = scmp.ne.s32.totalorder %s120, %s121
    %p135 = scmp.eq.s32.totalorder %s33, 3
    %p136 = por %p134, %p135
    %p138 = scmp.ne.s32.totalorder %s121, %s137
    %p139 = scmp.eq.s32.totalorder %s33, 0
    %p140 = por %p138, %p139
    %s141 = ssub.s32 %s35, %s42
    %p142 = scmp.eq.s32.totalorder %s141, 0
    %s144 = sadd.s32 %s143, 1
    %s145 = scalar_select %p142, %s143, %s144
    %p148 = pneg %p142
    %p149 = scmp.eq.s32.totalorder %s27, 3
    %p150 = por %p148, %p149
    %p151 = scmp.ne.s32.totalorder %s143, %s146
    %p152 = scmp.eq.s32.totalorder %s27, 0
    %p153 = por %p151, %p152
    %p154 = scmp.ne.s32.totalorder %s143, %s146
    %p155 = scmp.eq.s32.totalorder %s32, 3
    %p156 = por %p154, %p155
    %p157 = scmp.ne.s32.totalorder %s146, %s147
    %p158 = scmp.eq.s32.totalorder %s32, 0
    %p159 = por %p157, %p158
    %p160 = scmp.ne.s32.totalorder %s146, %s147
    %p161 = scmp.eq.s32.totalorder %s33, 3
    %p162 = por %p160, %p161
    %p164 = scmp.ne.s32.totalorder %s147, %s163
    %p165 = scmp.eq.s32.totalorder %s33, 0
    %p166 = por %p164, %p165
    %s167 = ssub.s32 %s35, %s42
    %p168 = scmp.eq.s32.totalorder %s167, 0
    %s170 = sadd.s32 %s169, 1
    %s171 = scalar_select %p168, %s169, %s170
    %p174 = pneg %p168
    %p175 = scmp.eq.s32.totalorder %s27, 3
    %p176 = por %p174, %p175
    %p177 = scmp.ne.s32.totalorder %s169, %s172
    %p178 = scmp.eq.s32.totalorder %s27, 0
    %p179 = por %p177, %p178
    %p180 = scmp.ne.s32.totalorder %s169, %s172
    %p181 = scmp.eq.s32.totalorder %s32, 3
    %p182 = por %p180, %p181
    %p183 = scmp.ne.s32.totalorder %s172, %s173
    %p184 = scmp.eq.s32.totalorder %s32, 0
    %p185 = por %p183, %p184
    %p186 = scmp.ne.s32.totalorder %s172, %s173
    %p187 = scmp.eq.s32.totalorder %s33, 3
    %p188 = por %p186, %p187
    %p190 = scmp.ne.s32.totalorder %s173, %s189
    %p191 = scmp.eq.s32.totalorder %s33, 0
    %p192 = por %p190, %p191
    %s193 = ssub.s32 %s35, %s42
    %p194 = scmp.eq.s32.totalorder %s193, 0
    %s196 = sadd.s32 %s195, 1
    %s197 = scalar_select %p194, %s195, %s196
    %p200 = pneg %p194
    %p201 = scmp.eq.s32.totalorder %s27, 3
    %p202 = por %p200, %p201
    %p203 = scmp.ne.s32.totalorder %s195, %s198
    %p204 = scmp.eq.s32.totalorder %s27, 0
    %p205 = por %p203, %p204
    %p206 = scmp.ne.s32.totalorder %s195, %s198
    %p207 = scmp.eq.s32.totalorder %s32, 3
    %p208 = por %p206, %p207
    %p209 = scmp.ne.s32.totalorder %s198, %s199
    %p210 = scmp.eq.s32.totalorder %s32, 0
    %p211 = por %p209, %p210
    %p212 = scmp.ne.s32.totalorder %s198, %s199
    %p213 = scmp.eq.s32.totalorder %s33, 3
    %p214 = por %p212, %p213
    %p216 = scmp.ne.s32.totalorder %s199, %s215
    %p217 = scmp.eq.s32.totalorder %s33, 0
    %p218 = por %p216, %p217
    %s219 = ssub.s32 %s35, %s42
    %p220 = scmp.eq.s32.totalorder %s219, 0
    %s222 = sadd.s32 %s221, 1
    %s223 = scalar_select %p220, %s221, %s222
    %p226 = pneg %p220
    %p227 = scmp.eq.s32.totalorder %s27, 3
    %p228 = por %p226, %p227
    %p229 = scmp.ne.s32.totalorder %s221, %s224
    %p230 = scmp.eq.s32.totalorder %s27, 0
    %p231 = por %p229, %p230
    %p232 = scmp.ne.s32.totalorder %s221, %s224
    %p233 = scmp.eq.s32.totalorder %s32, 3
    %p234 = por %p232, %p233
    %p235 = scmp.ne.s32.totalorder %s224, %s225
    %p236 = scmp.eq.s32.totalorder %s32, 0
    %p237 = por %p235, %p236
    %p238 = scmp.ne.s32.totalorder %s224, %s225
    %p239 = scmp.eq.s32.totalorder %s33, 3
    %p240 = por %p238, %p239
    %p242 = scmp.ne.s32.totalorder %s225, %s241
    %p243 = scmp.eq.s32.totalorder %s33, 0
    %p244 = por %p242, %p243
    %s245 = ssub.s32 %s35, %s42
    %p246 = scmp.eq.s32.totalorder %s245, 0
    %s248 = sadd.s32 %s247, 1
    %s249 = scalar_select %p246, %s247, %s248
    %p252 = pneg %p246
    %p253 = scmp.eq.s32.totalorder %s27, 3
    %p254 = por %p252, %p253
    %p255 = scmp.ne.s32.totalorder %s247, %s250
    %p256 = scmp.eq.s32.totalorder %s27, 0
    %p257 = por %p255, %p256
    %p258 = scmp.ne.s32.totalorder %s247, %s250
    %p259 = scmp.eq.s32.totalorder %s32, 3
    %p260 = por %p258, %p259
    %p261 = scmp.ne.s32.totalorder %s250, %s251
    %p262 = scmp.eq.s32.totalorder %s32, 0
    %p263 = por %p261, %p262
    %p264 = scmp.ne.s32.totalorder %s250, %s251
    %p265 = scmp.eq.s32.totalorder %s33, 3
    %p266 = por %p264, %p265
    %p268 = scmp.ne.s32.totalorder %s251, %s267
    %p269 = scmp.eq.s32.totalorder %s33, 0
    %p270 = por %p268, %p269
    %s271 = ssub.s32 %s35, %s42
    %p272 = scmp.eq.s32.totalorder %s271, 0
    %s274 = sadd.s32 %s273, 1
    %s275 = scalar_select %p272, %s273, %s274
    %p278 = pneg %p272
    %p279 = scmp.eq.s32.totalorder %s27, 3
    %p280 = por %p278, %p279
    %p281 = scmp.ne.s32.totalorder %s273, %s276
    %p282 = scmp.eq.s32.totalorder %s27, 0
    %p283 = por %p281, %p282
    %p284 = scmp.ne.s32.totalorder %s273, %s276
    %p285 = scmp.eq.s32.totalorder %s32, 3
    %p286 = por %p284, %p285
    %p287 = scmp.ne.s32.totalorder %s276, %s277
    %p288 = scmp.eq.s32.totalorder %s32, 0
    %p289 = por %p287, %p288
    %p290 = scmp.ne.s32.totalorder %s276, %s277
    %p291 = scmp.eq.s32.totalorder %s33, 3
    %p292 = por %p290, %p291
    %p294 = scmp.ne.s32.totalorder %s277, %s293
    %p295 = scmp.eq.s32.totalorder %s33, 0
    %p296 = por %p294, %p295
    %s297 = ssub.s32 %s35, %s42
    %p298 = scmp.eq.s32.totalorder %s297, 0
    %s300 = sadd.s32 %s299, 1
    %s301 = scalar_select %p298, %s299, %s300
    %p304 = pneg %p298
    %p305 = scmp.eq.s32.totalorder %s27, 3
    %p306 = por %p304, %p305
    %p307 = scmp.ne.s32.totalorder %s299, %s302
    %p308 = scmp.eq.s32.totalorder %s27, 0
    %p309 = por %p307, %p308
    %p310 = scmp.ne.s32.totalorder %s299, %s302
    %p311 = scmp.eq.s32.totalorder %s32, 3
    %p312 = por %p310, %p311
    %p313 = scmp.ne.s32.totalorder %s302, %s303
    %p314 = scmp.eq.s32.totalorder %s32, 0
    %p315 = por %p313, %p314
    %p316 = scmp.ne.s32.totalorder %s302, %s303
    %p317 = scmp.eq.s32.totalorder %s33, 3
    %p318 = por %p316, %p317
    %p320 = scmp.ne.s32.totalorder %s303, %s319
    %p321 = scmp.eq.s32.totalorder %s33, 0
    %p322 = por %p320, %p321
    %s323 = ssub.s32 %s35, %s42
    %p324 = scmp.eq.s32.totalorder %s323, 0
    %s326 = sadd.s32 %s325, 1
    %s327 = scalar_select %p324, %s325, %s326
    %p330 = pneg %p324
    %p331 = scmp.eq.s32.totalorder %s27, 3
    %p332 = por %p330, %p331
    %p333 = scmp.ne.s32.totalorder %s325, %s328
    %p334 = scmp.eq.s32.totalorder %s27, 0
    %p335 = por %p333, %p334
    %p336 = scmp.ne.s32.totalorder %s325, %s328
    %p337 = scmp.eq.s32.totalorder %s32, 3
    %p338 = por %p336, %p337
    %p339 = scmp.ne.s32.totalorder %s328, %s329
    %p340 = scmp.eq.s32.totalorder %s32, 0
    %p341 = por %p339, %p340
    %p342 = scmp.ne.s32.totalorder %s328, %s329
    %p343 = scmp.eq.s32.totalorder %s33, 3
    %p344 = por %p342, %p343
    %p346 = scmp.ne.s32.totalorder %s329, %s345
    %p347 = scmp.eq.s32.totalorder %s33, 0
    %p348 = por %p346, %p347
    %s349 = ssub.s32 %s35, %s42
    %p350 = scmp.eq.s32.totalorder %s349, 0
    %s352 = sadd.s32 %s351, 1
    %s353 = scalar_select %p350, %s351, %s352
    %p356 = pneg %p350
    %p357 = scmp.eq.s32.totalorder %s27, 3
    %p358 = por %p356, %p357
    %p359 = scmp.ne.s32.totalorder %s351, %s354
    %p360 = scmp.eq.s32.totalorder %s27, 0
    %p361 = por %p359, %p360
    %p362 = scmp.ne.s32.totalorder %s351, %s354
    %p363 = scmp.eq.s32.totalorder %s32, 3
    %p364 = por %p362, %p363
    %p365 = scmp.ne.s32.totalorder %s354, %s355
    %p366 = scmp.eq.s32.totalorder %s32, 0
    %p367 = por %p365, %p366
    %p368 = scmp.ne.s32.totalorder %s354, %s355
    %p369 = scmp.eq.s32.totalorder %s33, 3
    %p370 = por %p368, %p369
    %p372 = scmp.ne.s32.totalorder %s355, %s371
    %p373 = scmp.eq.s32.totalorder %s33, 0
    %p374 = por %p372, %p373
    %s375 = ssub.s32 %s35, %s42
    %p376 = scmp.eq.s32.totalorder %s375, 0
    %s378 = sadd.s32 %s377, 1
    %s379 = scalar_select %p376, %s377, %s378
    %p382 = pneg %p376
    %p383 = scmp.eq.s32.totalorder %s27, 3
    %p384 = por %p382, %p383
    %p385 = scmp.ne.s32.totalorder %s377, %s380
    %p386 = scmp.eq.s32.totalorder %s27, 0
    %p387 = por %p385, %p386
    %p388 = scmp.ne.s32.totalorder %s377, %s380
    %p389 = scmp.eq.s32.totalorder %s32, 3
    %p390 = por %p388, %p389
    %p391 = scmp.ne.s32.totalorder %s380, %s381
    %p392 = scmp.eq.s32.totalorder %s32, 0
    %p393 = por %p391, %p392
    %p394 = scmp.ne.s32.totalorder %s380, %s381
    %p395 = scmp.eq.s32.totalorder %s33, 3
    %p396 = por %p394, %p395
    %p398 = scmp.ne.s32.totalorder %s381, %s397
    %p399 = scmp.eq.s32.totalorder %s33, 0
    %p400 = por %p398, %p399
    %s401 = ssub.s32 %s35, %s42
    %p402 = scmp.eq.s32.totalorder %s401, 0
    %s404 = sadd.s32 %s403, 1
    %s405 = scalar_select %p402, %s403, %s404
    %p408 = pneg %p402
    %p409 = scmp.eq.s32.totalorder %s27, 3
    %p410 = por %p408, %p409
    %p411 = scmp.ne.s32.totalorder %s403, %s406
    %p412 = scmp.eq.s32.totalorder %s27, 0
    %p413 = por %p411, %p412
    %p414 = scmp.ne.s32.totalorder %s403, %s406
    %p415 = scmp.eq.s32.totalorder %s32, 3
    %p416 = por %p414, %p415
    %p417 = scmp.ne.s32.totalorder %s406, %s407
    %p418 = scmp.eq.s32.totalorder %s32, 0
    %p419 = por %p417, %p418
    %p420 = scmp.ne.s32.totalorder %s406, %s407
    %p421 = scmp.eq.s32.totalorder %s33, 3
    %p422 = por %p420, %p421
    %p424 = scmp.ne.s32.totalorder %s407, %s423
    %p425 = scmp.eq.s32.totalorder %s33, 0
    %p426 = por %p424, %p425
    %s428 = sadd.s32 %s427, 1
    %p431 = scmp.eq.s32.totalorder %s27, 3
    %p432 = scmp.ne.s32.totalorder %s427, %s429
    %p433 = scmp.eq.s32.totalorder %s27, 0
    %p434 = por %p432, %p433
    %p435 = scmp.ne.s32.totalorder %s427, %s429
    %p436 = scmp.eq.s32.totalorder %s32, 3
    %p437 = por %p435, %p436
    %p438 = scmp.ne.s32.totalorder %s429, %s430
    %p439 = scmp.eq.s32.totalorder %s32, 0
    %p440 = por %p438, %p439
    %p441 = scmp.ne.s32.totalorder %s429, %s430
    %p442 = scmp.eq.s32.totalorder %s33, 3
    %p443 = por %p441, %p442
    %p445 = scmp.ne.s32.totalorder %s430, %s444
    %p446 = scmp.eq.s32.totalorder %s33, 0
    %p447 = por %p445, %p446
    %s449 = sadd.s32 %s448, 1
    %p452 = scmp.eq.s32.totalorder %s27, 3
    %p453 = scmp.ne.s32.totalorder %s448, %s450
    %p454 = scmp.eq.s32.totalorder %s27, 0
    %p455 = por %p453, %p454
    %p456 = scmp.ne.s32.totalorder %s448, %s450
    %p457 = scmp.eq.s32.totalorder %s32, 3
    %p458 = por %p456, %p457
    %p459 = scmp.ne.s32.totalorder %s450, %s451
    %p460 = scmp.eq.s32.totalorder %s32, 0
    %p461 = por %p459, %p460
    %p462 = scmp.ne.s32.totalorder %s450, %s451
    %p463 = scmp.eq.s32.totalorder %s33, 3
    %p464 = por %p462, %p463
    %p466 = scmp.ne.s32.totalorder %s451, %s465
    %p467 = scmp.eq.s32.totalorder %s33, 0
    %p468 = por %p466, %p467
    %s470 = sadd.s32 %s469, 1
    %p473 = scmp.eq.s32.totalorder %s27, 3
    %p474 = scmp.ne.s32.totalorder %s469, %s471
    %p475 = scmp.eq.s32.totalorder %s27, 0
    %p476 = por %p474, %p475
    %p477 = scmp.ne.s32.totalorder %s469, %s471
    %p478 = scmp.eq.s32.totalorder %s32, 3
    %p479 = por %p477, %p478
    %p480 = scmp.ne.s32.totalorder %s471, %s472
    %p481 = scmp.eq.s32.totalorder %s32, 0
    %p482 = por %p480, %p481
    %p483 = scmp.ne.s32.totalorder %s471, %s472
    %p484 = scmp.eq.s32.totalorder %s33, 3
    %p485 = por %p483, %p484
    %p487 = scmp.ne.s32.totalorder %s472, %s486
    %p488 = scmp.eq.s32.totalorder %s33, 0
    %p489 = por %p487, %p488
    %s491 = sadd.s32 %s490, 1
    %p494 = scmp.eq.s32.totalorder %s27, 3
    %p495 = scmp.ne.s32.totalorder %s490, %s492
    %p496 = scmp.eq.s32.totalorder %s27, 0
    %p497 = por %p495, %p496
    %p498 = scmp.ne.s32.totalorder %s490, %s492
    %p499 = scmp.eq.s32.totalorder %s32, 3
    %p500 = por %p498, %p499
    %p501 = scmp.ne.s32.totalorder %s492, %s493
    %p502 = scmp.eq.s32.totalorder %s32, 0
    %p503 = por %p501, %p502
    %p504 = scmp.ne.s32.totalorder %s492, %s493
    %p505 = scmp.eq.s32.totalorder %s33, 3
    %p506 = por %p504, %p505
    %p508 = scmp.ne.s32.totalorder %s493, %s507
    %p509 = scmp.eq.s32.totalorder %s33, 0
    %p510 = por %p508, %p509
    %s512 = sadd.s32 %s511, 1
    %p515 = scmp.eq.s32.totalorder %s27, 3
    %p516 = scmp.ne.s32.totalorder %s511, %s513
    %p517 = scmp.eq.s32.totalorder %s27, 0
    %p518 = por %p516, %p517
    %p519 = scmp.ne.s32.totalorder %s511, %s513
    %p520 = scmp.eq.s32.totalorder %s32, 3
    %p521 = por %p519, %p520
    %p522 = scmp.ne.s32.totalorder %s513, %s514
    %p523 = scmp.eq.s32.totalorder %s32, 0
    %p524 = por %p522, %p523
    %p525 = scmp.ne.s32.totalorder %s513, %s514
    %p526 = scmp.eq.s32.totalorder %s33, 3
    %p527 = por %p525, %p526
    %p529 = scmp.ne.s32.totalorder %s514, %s528
    %p530 = scmp.eq.s32.totalorder %s33, 0
    %p531 = por %p529, %p530
    %s533 = sadd.s32 %s532, 1
    %p536 = scmp.eq.s32.totalorder %s27, 3
    %p537 = scmp.ne.s32.totalorder %s532, %s534
    %p538 = scmp.eq.s32.totalorder %s27, 0
    %p539 = por %p537, %p538
    %p540 = scmp.ne.s32.totalorder %s532, %s534
    %p541 = scmp.eq.s32.totalorder %s32, 3
    %p542 = por %p540, %p541
    %p543 = scmp.ne.s32.totalorder %s534, %s535
    %p544 = scmp.eq.s32.totalorder %s32, 0
    %p545 = por %p543, %p544
    %p546 = scmp.ne.s32.totalorder %s534, %s535
    %p547 = scmp.eq.s32.totalorder %s33, 3
    %p548 = por %p546, %p547
    %p550 = scmp.ne.s32.totalorder %s535, %s549
    %p551 = scmp.eq.s32.totalorder %s33, 0
    %p552 = por %p550, %p551
    %s553 = ssub.s32 %s34, %s46
    %p554 = scmp.eq.s32.totalorder %s553, 0
    %s556 = sadd.s32 %s555, 1
    %s557 = scalar_select %p554, %s555, %s556
    %p560 = pneg %p554
    %p561 = scmp.eq.s32.totalorder %s27, 3
    %p562 = por %p560, %p561
    %p563 = scmp.ne.s32.totalorder %s555, %s558
    %p564 = scmp.eq.s32.totalorder %s27, 0
    %p565 = por %p563, %p564
    %p566 = scmp.ne.s32.totalorder %s555, %s558
    %p567 = scmp.eq.s32.totalorder %s32, 3
    %p568 = por %p566, %p567
    %p569 = scmp.ne.s32.totalorder %s558, %s559
    %p570 = scmp.eq.s32.totalorder %s32, 0
    %p571 = por %p569, %p570
    %p572 = scmp.ne.s32.totalorder %s558, %s559
    %p573 = scmp.eq.s32.totalorder %s33, 3
    %p574 = por %p572, %p573
    %p576 = scmp.ne.s32.totalorder %s559, %s575
    %p577 = scmp.eq.s32.totalorder %s33, 0
    %p578 = por %p576, %p577
    %p579 = scmp.le.s32.totalorder 1, %s27
    %p580 = scmp.lt.s32.totalorder %s27, 5
    %p581 = pnand %p579, %p580
    %p582 = pneg %p581
    // Predicated region
    $region9: #{image_to_point_cloud.1} parent=5 // pred_check
      _
    $region10: #{image_to_point_cloud.1} parent=5 // pred_check_branch
      %584 = sbr.rel (%p581) target = $region12
    $region11: #{image_to_point_cloud.1} parent=5 // pred_region
      %s585 = ssub.s32 %s27, 1
      // Predicated region
      $region13: #{image_to_point_cloud.1} parent=11 // pred_check
        %p586 = pneg %p86
      $region14: #{image_to_point_cloud.1} parent=11 // pred_check_branch
        %588 = sbr.rel (%p586) target = $region16
      $region15: #{image_to_point_cloud.1} parent=11 // pred_region
        _
      $region16: #{image_to_point_cloud.1} parent=11 // pred_fallthru
        _
      // Predicated region
      $region17: #{image_to_point_cloud.1} parent=11 // pred_check
        %p589 = pneg %p107
      $region18: #{image_to_point_cloud.1} parent=11 // pred_check_branch
        %591 = sbr.rel (%p589) target = $region20
      $region19: #{image_to_point_cloud.1} parent=11 // pred_region
        _
      $region20: #{image_to_point_cloud.1} parent=11 // pred_fallthru
        _
      // Predicated region
      $region21: #{image_to_point_cloud.1} parent=11 // pred_check
        %p592 = pneg %p440
      $region22: #{image_to_point_cloud.1} parent=11 // pred_check_branch
        %594 = sbr.rel (%p592) target = $region24
      $region23: #{image_to_point_cloud.1} parent=11 // pred_region
        _
      $region24: #{image_to_point_cloud.1} parent=11 // pred_fallthru
        _
      // Predicated region
      $region25: #{image_to_point_cloud.1} parent=11 // pred_check
        %p595 = pneg %p461
      $region26: #{image_to_point_cloud.1} parent=11 // pred_check_branch
        %597 = sbr.rel (%p595) target = $region28
      $region27: #{image_to_point_cloud.1} parent=11 // pred_region
        _
      $region28: #{image_to_point_cloud.1} parent=11 // pred_fallthru
        _
      // Predicated region
      $region29: #{image_to_point_cloud.1} parent=11 // pred_check
        %p598 = pneg %p482
      $region30: #{image_to_point_cloud.1} parent=11 // pred_check_branch
        %600 = sbr.rel (%p598) target = $region32
      $region31: #{image_to_point_cloud.1} parent=11 // pred_region
        _
      $region32: #{image_to_point_cloud.1} parent=11 // pred_fallthru
        _
      // Predicated region
      $region33: #{image_to_point_cloud.1} parent=11 // pred_check
        %p601 = pneg %p503
      $region34: #{image_to_point_cloud.1} parent=11 // pred_check_branch
        %603 = sbr.rel (%p601) target = $region36
      $region35: #{image_to_point_cloud.1} parent=11 // pred_region
        _
      $region36: #{image_to_point_cloud.1} parent=11 // pred_fallthru
        _
      // Predicated region
      $region37: #{image_to_point_cloud.1} parent=11 // pred_check
        %p604 = pneg %p524
      $region38: #{image_to_point_cloud.1} parent=11 // pred_check_branch
        %606 = sbr.rel (%p604) target = $region40
      $region39: #{image_to_point_cloud.1} parent=11 // pred_region
        _
      $region40: #{image_to_point_cloud.1} parent=11 // pred_fallthru
        _
      // Predicated region
      $region41: #{image_to_point_cloud.1} parent=11 // pred_check
        %p607 = pneg %p545
      $region42: #{image_to_point_cloud.1} parent=11 // pred_check_branch
        %609 = sbr.rel (%p607) target = $region44
      $region43: #{image_to_point_cloud.1} parent=11 // pred_region
        _
      $region44: #{image_to_point_cloud.1} parent=11 // pred_fallthru
        _
    $region12: #{image_to_point_cloud.1} parent=5 // pred_fallthru
      _
    %p610 = scmp.lt.s32.totalorder %s27, 4
    // Predicated region
    $region45: #{image_to_point_cloud.1} parent=5 // pred_check
      %p611 = pneg %p610
    $region46: #{image_to_point_cloud.1} parent=5 // pred_check_branch
      %613 = sbr.rel (%p611) target = $region48
    $region47: #{image_to_point_cloud.1} parent=5 // pred_region
      // Predicated region
      $region49: #{image_to_point_cloud.1} parent=47 // pred_check
        %p614 = pneg %p59
      $region50: #{image_to_point_cloud.1} parent=47 // pred_check_branch
        %616 = sbr.rel (%p614) target = $region52
      $region51: #{image_to_point_cloud.1} parent=47 // pred_region
        %p617 = scmp.lt.s32.totalorder %s34, 1
        %s618 = scalar_select %p617, %s34, 1
        %s619 = smul.addr %s618, 6
        %s620 = smul.addr %s619, 8
        %s621 = scalar_lea.vmem %s0, %s620
      $region52: #{image_to_point_cloud.1} parent=47 // pred_fallthru
        _
      // Predicated region
      $region53: #{image_to_point_cloud.1} parent=47 // pred_check
        %p622 = pneg %p127
      $region54: #{image_to_point_cloud.1} parent=47 // pred_check_branch
        %624 = sbr.rel (%p622) target = $region56
      $region55: #{image_to_point_cloud.1} parent=47 // pred_region
        %p625 = scmp.lt.s32.totalorder %s35, 1
        %s626 = scalar_select %p625, %s35, 1
        %s627 = scalar_lea.vmem %s3, %s626
      $region56: #{image_to_point_cloud.1} parent=47 // pred_fallthru
        _
      // Predicated region
      $region57: #{image_to_point_cloud.1} parent=47 // pred_check
        %p628 = pneg %p153
      $region58: #{image_to_point_cloud.1} parent=47 // pred_check_branch
        %630 = sbr.rel (%p628) target = $region60
      $region59: #{image_to_point_cloud.1} parent=47 // pred_region
        %p631 = scmp.lt.s32.totalorder %s35, 1
        %s632 = scalar_select %p631, %s35, 1
        %s633 = scalar_lea.vmem %s4, %s632
      $region60: #{image_to_point_cloud.1} parent=47 // pred_fallthru
        _
      // Predicated region
      $region61: #{image_to_point_cloud.1} parent=47 // pred_check
        %p634 = pneg %p179
      $region62: #{image_to_point_cloud.1} parent=47 // pred_check_branch
        %636 = sbr.rel (%p634) target = $region64
      $region63: #{image_to_point_cloud.1} parent=47 // pred_region
        %p637 = scmp.lt.s32.totalorder %s35, 1
        %s638 = scalar_select %p637, %s35, 1
        %s639 = smul.addr %s638, 48
        %s640 = smul.addr %s639, 4
        %s641 = scalar_lea.vmem %s5, %s640
      $region64: #{image_to_point_cloud.1} parent=47 // pred_fallthru
        _
      // Predicated region
      $region65: #{image_to_point_cloud.1} parent=47 // pred_check
        %p642 = pneg %p205
      $region66: #{image_to_point_cloud.1} parent=47 // pred_check_branch
        %644 = sbr.rel (%p642) target = $region68
      $region67: #{image_to_point_cloud.1} parent=47 // pred_region
        %p645 = scmp.lt.s32.totalorder %s35, 1
        %s646 = scalar_select %p645, %s35, 1
        %s647 = smul.addr %s646, 3
        %s648 = scalar_lea.vmem %s6, %s647
      $region68: #{image_to_point_cloud.1} parent=47 // pred_fallthru
        _
      // Predicated region
      $region69: #{image_to_point_cloud.1} parent=47 // pred_check
        %p649 = pneg %p231
      $region70: #{image_to_point_cloud.1} parent=47 // pred_check_branch
        %651 = sbr.rel (%p649) target = $region72
      $region71: #{image_to_point_cloud.1} parent=47 // pred_region
        %p652 = scmp.lt.s32.totalorder %s35, 1
        %s653 = scalar_select %p652, %s35, 1
        %s654 = smul.addr %s653, 16
        %s655 = smul.addr %s654, 4
        %s656 = scalar_lea.vmem %s7, %s655
      $region72: #{image_to_point_cloud.1} parent=47 // pred_fallthru
        _
      // Predicated region
      $region73: #{image_to_point_cloud.1} parent=47 // pred_check
        %p657 = pneg %p257
      $region74: #{image_to_point_cloud.1} parent=47 // pred_check_branch
        %659 = sbr.rel (%p657) target = $region76
      $region75: #{image_to_point_cloud.1} parent=47 // pred_region
        %p660 = scmp.lt.s32.totalorder %s35, 1
        %s661 = scalar_select %p660, %s35, 1
        %s662 = scalar_lea.vmem %s8, %s661
      $region76: #{image_to_point_cloud.1} parent=47 // pred_fallthru
        _
      // Predicated region
      $region77: #{image_to_point_cloud.1} parent=47 // pred_check
        %p663 = pneg %p283
      $region78: #{image_to_point_cloud.1} parent=47 // pred_check_branch
        %665 = sbr.rel (%p663) target = $region80
      $region79: #{image_to_point_cloud.1} parent=47 // pred_region
        %p666 = scmp.lt.s32.totalorder %s35, 1
        %s667 = scalar_select %p666, %s35, 1
        %s668 = scalar_lea.vmem %s9, %s667
      $region80: #{image_to_point_cloud.1} parent=47 // pred_fallthru
        _
      // Predicated region
      $region81: #{image_to_point_cloud.1} parent=47 // pred_check
        %p669 = pneg %p309
      $region82: #{image_to_point_cloud.1} parent=47 // pred_check_branch
        %671 = sbr.rel (%p669) target = $region84
      $region83: #{image_to_point_cloud.1} parent=47 // pred_region
        %p672 = scmp.lt.s32.totalorder %s35, 1
        %s673 = scalar_select %p672, %s35, 1
        %s674 = scalar_lea.vmem %s10, %s673
      $region84: #{image_to_point_cloud.1} parent=47 // pred_fallthru
        _
      // Predicated region
      $region85: #{image_to_point_cloud.1} parent=47 // pred_check
        %p675 = pneg %p335
      $region86: #{image_to_point_cloud.1} parent=47 // pred_check_branch
        %677 = sbr.rel (%p675) target = $region88
      $region87: #{image_to_point_cloud.1} parent=47 // pred_region
        %p678 = scmp.lt.s32.totalorder %s35, 1
        %s679 = scalar_select %p678, %s35, 1
        %s680 = smul.addr %s679, 32
        %s681 = smul.addr %s680, 4
        %s682 = scalar_lea.vmem %s11, %s681
      $region88: #{image_to_point_cloud.1} parent=47 // pred_fallthru
        _
      // Predicated region
      $region89: #{image_to_point_cloud.1} parent=47 // pred_check
        %p683 = pneg %p361
      $region90: #{image_to_point_cloud.1} parent=47 // pred_check_branch
        %685 = sbr.rel (%p683) target = $region92
      $region91: #{image_to_point_cloud.1} parent=47 // pred_region
        %p686 = scmp.lt.s32.totalorder %s35, 1
        %s687 = scalar_select %p686, %s35, 1
        %s688 = smul.addr %s687, 2
        %s689 = scalar_lea.vmem %s12, %s688
      $region92: #{image_to_point_cloud.1} parent=47 // pred_fallthru
        _
      // Predicated region
      $region93: #{image_to_point_cloud.1} parent=47 // pred_check
        %p690 = pneg %p387
      $region94: #{image_to_point_cloud.1} parent=47 // pred_check_branch
        %692 = sbr.rel (%p690) target = $region96
      $region95: #{image_to_point_cloud.1} parent=47 // pred_region
        %p693 = scmp.lt.s32.totalorder %s35, 1
        %s694 = scalar_select %p693, %s35, 1
        %s695 = smul.addr %s694, 32
        %s696 = smul.addr %s695, 4
        %s697 = scalar_lea.vmem %s13, %s696
      $region96: #{image_to_point_cloud.1} parent=47 // pred_fallthru
        _
      // Predicated region
      $region97: #{image_to_point_cloud.1} parent=47 // pred_check
        %p698 = pneg %p413
      $region98: #{image_to_point_cloud.1} parent=47 // pred_check_branch
        %700 = sbr.rel (%p698) target = $region100
      $region99: #{image_to_point_cloud.1} parent=47 // pred_region
        %p701 = scmp.lt.s32.totalorder %s35, 1
        %s702 = scalar_select %p701, %s35, 1
        %s703 = scalar_lea.vmem %s14, %s702
      $region100: #{image_to_point_cloud.1} parent=47 // pred_fallthru
        _
    $region48: #{image_to_point_cloud.1} parent=5 // pred_fallthru
      _
    %p704 = scmp.le.s32.totalorder 1, %s27
    %p705 = scmp.lt.s32.totalorder %s27, 5
    %p706 = pnand %p704, %p705
    %p707 = pneg %p706
    // Predicated region
    $region101: #{image_to_point_cloud.1} parent=5 // pred_check
      _
    $region102: #{image_to_point_cloud.1} parent=5 // pred_check_branch
      %709 = sbr.rel (%p706) target = $region104
    $region103: #{image_to_point_cloud.1} parent=5 // pred_region
      %s710 = ssub.s32 %s27, 1
      %p711 = scmp.lt.s32.totalorder %s36, 1
      %s712 = scalar_select %p711, %s36, 1
      %s713 = smul.addr %s712, 6
      %s714 = smul.addr %s713, 8
      %s715 = scalar_lea.vmem %s0, %s714
      %p716 = pneg %p65
      %p717 = pneg %p62
      %p718 = pneg %p86
      %p719 = pneg %p83
      %p720 = pneg %p107
      %p721 = pneg %p104
      %p722 = scmp.lt.s32.totalorder %s37, 1
      %s723 = scalar_select %p722, %s37, 1
      %s724 = scalar_lea.vmem %s3, %s723
      %p725 = pneg %p133
      %p726 = pneg %p130
      %p727 = scmp.lt.s32.totalorder %s37, 1
      %s728 = scalar_select %p727, %s37, 1
      %s729 = scalar_lea.vmem %s4, %s728
      %p730 = pneg %p159
      %p731 = pneg %p156
      %p732 = scmp.lt.s32.totalorder %s37, 1
      %s733 = scalar_select %p732, %s37, 1
      %s734 = smul.addr %s733, 48
      %s735 = smul.addr %s734, 4
      %s736 = scalar_lea.vmem %s5, %s735
      %p737 = pneg %p185
      %p738 = pneg %p182
      %p739 = scmp.lt.s32.totalorder %s37, 1
      %s740 = scalar_select %p739, %s37, 1
      %s741 = smul.addr %s740, 3
      %s742 = scalar_lea.vmem %s6, %s741
      %p743 = pneg %p211
      %p744 = pneg %p208
      %p745 = scmp.lt.s32.totalorder %s37, 1
      %s746 = scalar_select %p745, %s37, 1
      %s747 = smul.addr %s746, 16
      %s748 = smul.addr %s747, 4
      %s749 = scalar_lea.vmem %s7, %s748
      %p750 = pneg %p237
      %p751 = pneg %p234
      %p752 = scmp.lt.s32.totalorder %s37, 1
      %s753 = scalar_select %p752, %s37, 1
      %s754 = scalar_lea.vmem %s8, %s753
      %p755 = pneg %p263
      %p756 = pneg %p260
      %p757 = scmp.lt.s32.totalorder %s37, 1
      %s758 = scalar_select %p757, %s37, 1
      %s759 = scalar_lea.vmem %s9, %s758
      %p760 = pneg %p289
      %p761 = pneg %p286
      %p762 = scmp.lt.s32.totalorder %s37, 1
      %s763 = scalar_select %p762, %s37, 1
      %s764 = scalar_lea.vmem %s10, %s763
      %p765 = pneg %p315
      %p766 = pneg %p312
      %p767 = scmp.lt.s32.totalorder %s37, 1
      %s768 = scalar_select %p767, %s37, 1
      %s769 = smul.addr %s768, 32
      %s770 = smul.addr %s769, 4
      %s771 = scalar_lea.vmem %s11, %s770
      %p772 = pneg %p341
      %p773 = pneg %p338
      %p774 = scmp.lt.s32.totalorder %s37, 1
      %s775 = scalar_select %p774, %s37, 1
      %s776 = smul.addr %s775, 2
      %s777 = scalar_lea.vmem %s12, %s776
      %p778 = pneg %p367
      %p779 = pneg %p364
      %p780 = scmp.lt.s32.totalorder %s37, 1
      %s781 = scalar_select %p780, %s37, 1
      %s782 = smul.addr %s781, 32
      %s783 = smul.addr %s782, 4
      %s784 = scalar_lea.vmem %s13, %s783
      %p785 = pneg %p393
      %p786 = pneg %p390
      %p787 = scmp.lt.s32.totalorder %s37, 1
      %s788 = scalar_select %p787, %s37, 1
      %s789 = scalar_lea.vmem %s14, %s788
      %p790 = pneg %p419
      %p791 = pneg %p416
      %p792 = pneg %p440
      %p793 = pneg %p437
      %p794 = pneg %p461
      %p795 = pneg %p458
      %p796 = pneg %p482
      %p797 = pneg %p479
      %p798 = pneg %p503
      %p799 = pneg %p500
      %p800 = pneg %p524
      %p801 = pneg %p521
      %p802 = pneg %p545
      %p803 = pneg %p542
      %p804 = pneg %p571
      %p805 = pneg %p568
      %p806 = scmp.lt.s32.totalorder %s36, 1
      %s807 = scalar_select %p806, %s36, 1
      %s808 = scalar_lea.vmem %s21, %s807
      %p809 = scmp.lt.s32.totalorder %s36, 1
      %s810 = scalar_select %p809, %s36, 1
      %s811 = smul.addr %s810, 6
      %s812 = smul.addr %s811, 8
      %s813 = scalar_lea.vmem %s0, %s812
      %p814 = scmp.lt.s32.totalorder %s37, 1
      %s815 = scalar_select %p814, %s37, 1
      %s816 = scalar_lea.vmem %s3, %s815
      %p817 = scmp.lt.s32.totalorder %s37, 1
      %s818 = scalar_select %p817, %s37, 1
      %s819 = scalar_lea.vmem %s4, %s818
      %p820 = scmp.lt.s32.totalorder %s37, 1
      %s821 = scalar_select %p820, %s37, 1
      %s822 = smul.addr %s821, 48
      %s823 = smul.addr %s822, 4
      %s824 = scalar_lea.vmem %s5, %s823
      %p825 = scmp.lt.s32.totalorder %s37, 1
      %s826 = scalar_select %p825, %s37, 1
      %s827 = smul.addr %s826, 3
      %s828 = scalar_lea.vmem %s6, %s827
      %p829 = scmp.lt.s32.totalorder %s37, 1
      %s830 = scalar_select %p829, %s37, 1
      %s831 = smul.addr %s830, 16
      %s832 = smul.addr %s831, 4
      %s833 = scalar_lea.vmem %s7, %s832
      %p834 = scmp.lt.s32.totalorder %s37, 1
      %s835 = scalar_select %p834, %s37, 1
      %s836 = scalar_lea.vmem %s8, %s835
      %p837 = scmp.lt.s32.totalorder %s37, 1
      %s838 = scalar_select %p837, %s37, 1
      %s839 = scalar_lea.vmem %s9, %s838
      %p840 = scmp.lt.s32.totalorder %s37, 1
      %s841 = scalar_select %p840, %s37, 1
      %s842 = scalar_lea.vmem %s10, %s841
      %p843 = scmp.lt.s32.totalorder %s37, 1
      %s844 = scalar_select %p843, %s37, 1
      %s845 = smul.addr %s844, 32
      %s846 = smul.addr %s845, 4
      %s847 = scalar_lea.vmem %s11, %s846
      %p848 = scmp.lt.s32.totalorder %s37, 1
      %s849 = scalar_select %p848, %s37, 1
      %s850 = smul.addr %s849, 2
      %s851 = scalar_lea.vmem %s12, %s850
      %p852 = scmp.lt.s32.totalorder %s37, 1
      %s853 = scalar_select %p852, %s37, 1
      %s854 = smul.addr %s853, 32
      %s855 = smul.addr %s854, 4
      %s856 = scalar_lea.vmem %s13, %s855
      %p857 = scmp.lt.s32.totalorder %s37, 1
      %s858 = scalar_select %p857, %s37, 1
      %s859 = scalar_lea.vmem %s14, %s858
      %p860 = scmp.lt.s32.totalorder %s36, 1
      %s861 = scalar_select %p860, %s36, 1
      %s862 = scalar_lea.vmem %s21, %s861
      %p864 = scmp.eq.s32.totalorder %s37, 0
      // Predicated region
      $region105: #{image_to_point_cloud.1} parent=103 // pred_check
        %p865 = pneg %p864
      $region106: #{image_to_point_cloud.1} parent=103 // pred_check_branch
        %867 = sbr.rel (%p865) target = $region108
      $region107: #{image_to_point_cloud.1} parent=103 // pred_region
        %v868 = vld [vmem:[%s813] sm:$0x1f]
        %v869 = vld [vmem:[%s813 + $0x8] sm:$0x1f]
        %v870 = vld [vmem:[%s813 + $0x10] sm:$0x1f]
        %v871 = vld [vmem:[%s813 + $0x18] sm:$0x1f]
        %v872 = vld [vmem:[%s813 + $0x20] sm:$0x1f]
        %v873 = vld [vmem:[%s813 + $0x28] sm:$0x1f]
        %v874 = vpack.c.bf16 %v868, %v868
        %v875 = vpack.c.bf16 %v869, %v869
        %v876 = vpack.c.bf16 %v870, %v870
        %v877 = vpack.c.bf16 %v871, %v871
        %v878 = vpack.c.bf16 %v872, %v872
        %v879 = vpack.c.bf16 %v873, %v873
        %v880 = vld [vmem:[%s1] sm:$0xf]
        %v881 = vld [vmem:[%s1 + $0x4] sm:$0xf]
        %v882 = vld [vmem:[%s1 + $0x8] sm:$0xf]
        %v883 = vld [vmem:[%s1 + $0xc] sm:$0xf]
        %v884 = vld [vmem:[%s1 + $0x10] sm:$0xf]
        %v885 = vld [vmem:[%s1 + $0x14] sm:$0xf]
        %v886 = vld [vmem:[%s1 + $0x18] sm:$0xf]
        %v887 = vld [vmem:[%s1 + $0x1c] sm:$0xf]
        %v888 = vld [vmem:[%s1 + $0x20] sm:$0xf]
        %v889 = vld [vmem:[%s1 + $0x24] sm:$0xf]
        %v890 = vld [vmem:[%s1 + $0x28] sm:$0xf]
        %v891 = vld [vmem:[%s1 + $0x2c] sm:$0xf]
        %v892 = vld [vmem:[%s1 + $0x30] sm:$0xf]
        %v893 = vld [vmem:[%s1 + $0x34] sm:$0xf]
        %v894 = vld [vmem:[%s1 + $0x38] sm:$0xf]
        %v895 = vld [vmem:[%s1 + $0x3c] sm:$0xf]
        %v896 = vld [vmem:[%s1 + $0x40] sm:$0xf]
        %v897 = vld [vmem:[%s1 + $0x44] sm:$0xf]
        %v898 = vld [vmem:[%s1 + $0x48] sm:$0xf]
        %v899 = vld [vmem:[%s1 + $0x4c] sm:$0xf]
        %v900 = vld [vmem:[%s1 + $0x50] sm:$0xf]
        %v901 = vld [vmem:[%s1 + $0x54] sm:$0xf]
        %v902 = vld [vmem:[%s1 + $0x58] sm:$0xf]
        %v903 = vld [vmem:[%s1 + $0x5c] sm:$0xf]
        %v904 = vld [vmem:[%s1 + $0x60] sm:$0xf]
        %v905 = vld [vmem:[%s1 + $0x64] sm:$0xf]
        %v906 = vld [vmem:[%s1 + $0x68] sm:$0xf]
        %v907 = vld [vmem:[%s1 + $0x6c] sm:$0xf]
        %v908 = vld [vmem:[%s1 + $0x70] sm:$0xf]
        %v909 = vld [vmem:[%s1 + $0x74] sm:$0xf]
        %v910 = vld [vmem:[%s1 + $0x78] sm:$0xf]
        %v911 = vld [vmem:[%s1 + $0x7c] sm:$0xf]
        %v912 = vld [vmem:[%s1 + $0x80] sm:$0xf]
        %v913 = vld [vmem:[%s1 + $0x84] sm:$0xf]
        %v914 = vld [vmem:[%s1 + $0x88] sm:$0xf]
        %v915 = vld [vmem:[%s1 + $0x8c] sm:$0xf]
        %v916 = vld [vmem:[%s1 + $0x90] sm:$0xf]
        %v917 = vld [vmem:[%s1 + $0x94] sm:$0xf]
        %v918 = vld [vmem:[%s1 + $0x98] sm:$0xf]
        %v919 = vld [vmem:[%s1 + $0x9c] sm:$0xf]
        %v920 = vld [vmem:[%s1 + $0xa0] sm:$0xf]
        %v921 = vld [vmem:[%s1 + $0xa4] sm:$0xf]
        %v922 = vld [vmem:[%s1 + $0xa8] sm:$0xf]
        %v923 = vld [vmem:[%s1 + $0xac] sm:$0xf]
        %v924 = vld [vmem:[%s1 + $0xb0] sm:$0xf]
        %v925 = vld [vmem:[%s1 + $0xb4] sm:$0xf]
        %v926 = vld [vmem:[%s1 + $0xb8] sm:$0xf]
        %v927 = vld [vmem:[%s1 + $0xbc] sm:$0xf]
        %v928 = vld [vmem:[%s1 + $0xc0] sm:$0xf]
        %v929 = vld [vmem:[%s1 + $0xc4] sm:$0xf]
        %v930 = vld [vmem:[%s1 + $0xc8] sm:$0xf]
        %v931 = vld [vmem:[%s1 + $0xcc] sm:$0xf]
        %v932 = vld [vmem:[%s1 + $0xd0] sm:$0xf]
        %v933 = vld [vmem:[%s1 + $0xd4] sm:$0xf]
        %v934 = vld [vmem:[%s1 + $0xd8] sm:$0xf]
        %v935 = vld [vmem:[%s1 + $0xdc] sm:$0xf]
        %v936 = vld [vmem:[%s1 + $0xe0] sm:$0xf]
        %v937 = vld [vmem:[%s1 + $0xe4] sm:$0xf]
        %v938 = vld [vmem:[%s1 + $0xe8] sm:$0xf]
        %v939 = vld [vmem:[%s1 + $0xec] sm:$0xf]
        %v940 = vld [vmem:[%s1 + $0xf0] sm:$0xf]
        %v941 = vld [vmem:[%s1 + $0xf4] sm:$0xf]
        %v942 = vld [vmem:[%s1 + $0xf8] sm:$0xf]
        %v943 = vld [vmem:[%s1 + $0xfc] sm:$0xf]
        %v944 = vld [vmem:[%s1 + $0x100] sm:$0xf]
        %v945 = vld [vmem:[%s1 + $0x104] sm:$0xf]
        %v946 = vld [vmem:[%s1 + $0x108] sm:$0xf]
        %v947 = vld [vmem:[%s1 + $0x10c] sm:$0xf]
        %v948 = vld [vmem:[%s1 + $0x110] sm:$0xf]
        %v949 = vld [vmem:[%s1 + $0x114] sm:$0xf]
        %v950 = vld [vmem:[%s1 + $0x118] sm:$0xf]
        %v951 = vld [vmem:[%s1 + $0x11c] sm:$0xf]
        %v952 = vld [vmem:[%s1 + $0x120] sm:$0xf]
        %v953 = vld [vmem:[%s1 + $0x124] sm:$0xf]
        %v954 = vld [vmem:[%s1 + $0x128] sm:$0xf]
        %v955 = vld [vmem:[%s1 + $0x12c] sm:$0xf]
        %v956 = vld [vmem:[%s1 + $0x130] sm:$0xf]
        %v957 = vld [vmem:[%s1 + $0x134] sm:$0xf]
        %v958 = vld [vmem:[%s1 + $0x138] sm:$0xf]
        %v959 = vld [vmem:[%s1 + $0x13c] sm:$0xf]
        %v960 = vld [vmem:[%s1 + $0x140] sm:$0xf]
        %v961 = vld [vmem:[%s1 + $0x144] sm:$0xf]
        %v962 = vld [vmem:[%s1 + $0x148] sm:$0xf]
        %v963 = vld [vmem:[%s1 + $0x14c] sm:$0xf]
        %v964 = vld [vmem:[%s1 + $0x150] sm:$0xf]
        %v965 = vld [vmem:[%s1 + $0x154] sm:$0xf]
        %v966 = vld [vmem:[%s1 + $0x158] sm:$0xf]
        %v967 = vld [vmem:[%s1 + $0x15c] sm:$0xf]
        %v968 = vld [vmem:[%s1 + $0x160] sm:$0xf]
        %v969 = vld [vmem:[%s1 + $0x164] sm:$0xf]
        %v970 = vld [vmem:[%s1 + $0x168] sm:$0xf]
        %v971 = vld [vmem:[%s1 + $0x16c] sm:$0xf]
        %v972 = vld [vmem:[%s1 + $0x170] sm:$0xf]
        %v973 = vld [vmem:[%s1 + $0x174] sm:$0xf]
        %v974 = vld [vmem:[%s1 + $0x178] sm:$0xf]
        %v975 = vld [vmem:[%s1 + $0x17c] sm:$0xf]
        %v976 = vld [vmem:[%s2] sm:$0x1f]
        %v1073 = vunpack.c.l.b16 %v880
        %v1074 = vunpack.c.l.b16 %v881
        %v1075 = vunpack.c.l.b16 %v882
        %v1076 = vunpack.c.l.b16 %v883
        %v1077 = vunpack.c.l.b16 %v884
        %v1078 = vunpack.c.l.b16 %v885
        %v1079 = vunpack.c.l.b16 %v886
        %v1080 = vunpack.c.l.b16 %v887
        %v1081 = vunpack.c.l.b16 %v888
        %v1082 = vunpack.c.l.b16 %v889
        %v1083 = vunpack.c.l.b16 %v890
        %v1084 = vunpack.c.l.b16 %v891
        %v1085 = vunpack.c.l.b16 %v892
        %v1086 = vunpack.c.l.b16 %v893
        %v1087 = vunpack.c.l.b16 %v894
        %v1088 = vunpack.c.l.b16 %v895
        %v1089 = vunpack.c.l.b16 %v896
        %v1090 = vunpack.c.l.b16 %v897
        %v1091 = vunpack.c.l.b16 %v898
        %v1092 = vunpack.c.l.b16 %v899
        %v1093 = vunpack.c.l.b16 %v900
        %v1094 = vunpack.c.l.b16 %v901
        %v1095 = vunpack.c.l.b16 %v902
        %v1096 = vunpack.c.l.b16 %v903
        %v1097 = vunpack.c.l.b16 %v904
        %v1098 = vunpack.c.l.b16 %v905
        %v1099 = vunpack.c.l.b16 %v906
        %v1100 = vunpack.c.l.b16 %v907
        %v1101 = vunpack.c.l.b16 %v908
        %v1102 = vunpack.c.l.b16 %v909
        %v1103 = vunpack.c.l.b16 %v910
        %v1104 = vunpack.c.l.b16 %v911
        %v1105 = vunpack.c.l.b16 %v912
        %v1106 = vunpack.c.l.b16 %v913
        %v1107 = vunpack.c.l.b16 %v914
        %v1108 = vunpack.c.l.b16 %v915
        %v1109 = vunpack.c.l.b16 %v916
        %v1110 = vunpack.c.l.b16 %v917
        %v1111 = vunpack.c.l.b16 %v918
        %v1112 = vunpack.c.l.b16 %v919
        %v1113 = vunpack.c.l.b16 %v920
        %v1114 = vunpack.c.l.b16 %v921
        %v1115 = vunpack.c.l.b16 %v922
        %v1116 = vunpack.c.l.b16 %v923
        %v1117 = vunpack.c.l.b16 %v924
        %v1118 = vunpack.c.l.b16 %v925
        %v1119 = vunpack.c.l.b16 %v926
        %v1120 = vunpack.c.l.b16 %v927
        %v1121 = vunpack.c.l.b16 %v928
        %v1122 = vunpack.c.l.b16 %v929
        %v1123 = vunpack.c.l.b16 %v930
        %v1124 = vunpack.c.l.b16 %v931
        %v1125 = vunpack.c.l.b16 %v932
        %v1126 = vunpack.c.l.b16 %v933
        %v1127 = vunpack.c.l.b16 %v934
        %v1128 = vunpack.c.l.b16 %v935
        %v1129 = vunpack.c.l.b16 %v936
        %v1130 = vunpack.c.l.b16 %v937
        %v1131 = vunpack.c.l.b16 %v938
        %v1132 = vunpack.c.l.b16 %v939
        %v1133 = vunpack.c.l.b16 %v940
        %v1134 = vunpack.c.l.b16 %v941
        %v1135 = vunpack.c.l.b16 %v942
        %v1136 = vunpack.c.l.b16 %v943
        %v1137 = vunpack.c.l.b16 %v944
        %v1138 = vunpack.c.l.b16 %v945
        %v1139 = vunpack.c.l.b16 %v946
        %v1140 = vunpack.c.l.b16 %v947
        %v1141 = vunpack.c.l.b16 %v948
        %v1142 = vunpack.c.l.b16 %v949
        %v1143 = vunpack.c.l.b16 %v950
        %v1144 = vunpack.c.l.b16 %v951
        %v1145 = vunpack.c.l.b16 %v952
        %v1146 = vunpack.c.l.b16 %v953
        %v1147 = vunpack.c.l.b16 %v954
        %v1148 = vunpack.c.l.b16 %v955
        %v1149 = vunpack.c.l.b16 %v956
        %v1150 = vunpack.c.l.b16 %v957
        %v1151 = vunpack.c.l.b16 %v958
        %v1152 = vunpack.c.l.b16 %v959
        %v1153 = vunpack.c.l.b16 %v960
        %v1154 = vunpack.c.l.b16 %v961
        %v1155 = vunpack.c.l.b16 %v962
        %v1156 = vunpack.c.l.b16 %v963
        %v1157 = vunpack.c.l.b16 %v964
        %v1158 = vunpack.c.l.b16 %v965
        %v1159 = vunpack.c.l.b16 %v966
        %v1160 = vunpack.c.l.b16 %v967
        %v1161 = vunpack.c.l.b16 %v968
        %v1162 = vunpack.c.l.b16 %v969
        %v1163 = vunpack.c.l.b16 %v970
        %v1164 = vunpack.c.l.b16 %v971
        %v1165 = vunpack.c.l.b16 %v972
        %v1166 = vunpack.c.l.b16 %v973
        %v1167 = vunpack.c.l.b16 %v974
        %v1168 = vunpack.c.l.b16 %v975
        %v1169 = vpack.c.b16 %v1074, %v1073
        %v1170 = vpack.c.b16 %v1076, %v1075
        %v1171 = vpack.c.b16 %v1078, %v1077
        %v1172 = vpack.c.b16 %v1080, %v1079
        %v1173 = vpack.c.b16 %v1082, %v1081
        %v1174 = vpack.c.b16 %v1084, %v1083
        %v1175 = vpack.c.b16 %v1086, %v1085
        %v1176 = vpack.c.b16 %v1088, %v1087
        %v1177 = vpack.c.b16 %v1090, %v1089
        %v1178 = vpack.c.b16 %v1092, %v1091
        %v1179 = vpack.c.b16 %v1094, %v1093
        %v1180 = vpack.c.b16 %v1096, %v1095
        %v1181 = vpack.c.b16 %v1098, %v1097
        %v1182 = vpack.c.b16 %v1100, %v1099
        %v1183 = vpack.c.b16 %v1102, %v1101
        %v1184 = vpack.c.b16 %v1104, %v1103
        %v1185 = vpack.c.b16 %v1106, %v1105
        %v1186 = vpack.c.b16 %v1108, %v1107
        %v1187 = vpack.c.b16 %v1110, %v1109
        %v1188 = vpack.c.b16 %v1112, %v1111
        %v1189 = vpack.c.b16 %v1114, %v1113
        %v1190 = vpack.c.b16 %v1116, %v1115
        %v1191 = vpack.c.b16 %v1118, %v1117
        %v1192 = vpack.c.b16 %v1120, %v1119
        %v1193 = vpack.c.b16 %v1122, %v1121
        %v1194 = vpack.c.b16 %v1124, %v1123
        %v1195 = vpack.c.b16 %v1126, %v1125
        %v1196 = vpack.c.b16 %v1128, %v1127
        %v1197 = vpack.c.b16 %v1130, %v1129
        %v1198 = vpack.c.b16 %v1132, %v1131
        %v1199 = vpack.c.b16 %v1134, %v1133
        %v1200 = vpack.c.b16 %v1136, %v1135
        %v1201 = vpack.c.b16 %v1138, %v1137
        %v1202 = vpack.c.b16 %v1140, %v1139
        %v1203 = vpack.c.b16 %v1142, %v1141
        %v1204 = vpack.c.b16 %v1144, %v1143
        %v1205 = vpack.c.b16 %v1146, %v1145
        %v1206 = vpack.c.b16 %v1148, %v1147
        %v1207 = vpack.c.b16 %v1150, %v1149
        %v1208 = vpack.c.b16 %v1152, %v1151
        %v1209 = vpack.c.b16 %v1154, %v1153
        %v1210 = vpack.c.b16 %v1156, %v1155
        %v1211 = vpack.c.b16 %v1158, %v1157
        %v1212 = vpack.c.b16 %v1160, %v1159
        %v1213 = vpack.c.b16 %v1162, %v1161
        %v1214 = vpack.c.b16 %v1164, %v1163
        %v1215 = vpack.c.b16 %v1166, %v1165
        %v1216 = vpack.c.b16 %v1168, %v1167
        %1265 = vmatprep.subr.bf16.mxu0 0
        %1266 = vmatpush1.bf16.msra.mxu0 %v1169
        %1267 = vmatprep.subr.bf16.mxu0 0
        %1268 = vmatpush1.bf16.msra.mxu0 %v1170
        %1269 = vmatprep.subr.bf16.mxu0 0
        %1270 = vmatpush1.bf16.msra.mxu0 %v1171
        %1271 = vmatprep.subr.bf16.mxu0 0
        %1272 = vmatpush1.bf16.msra.mxu0 %v1172
        %1273 = vmatprep.subr.bf16.mxu0 0
        %1274 = vmatpush1.bf16.msra.mxu0 %v1173
        %1275 = vmatprep.subr.bf16.mxu0 0
        %1276 = vmatpush1.bf16.msra.mxu0 %v1174
        %1277 = vmatprep.subr.bf16.mxu0 0
        %1278 = vmatpush1.bf16.msra.mxu0 %v1175
        %1279 = vmatprep.subr.bf16.mxu0 0
        %1280 = vmatpush1.bf16.msra.mxu0 %v1176
        %1281 = vmatprep.subr.bf16.mxu0 0
        %1282 = vmatpush1.bf16.msra.mxu0 %v1177
        %1283 = vmatprep.subr.bf16.mxu0 0
        %1284 = vmatpush1.bf16.msra.mxu0 %v1178
        %1285 = vmatprep.subr.bf16.mxu0 0
        %1286 = vmatpush1.bf16.msra.mxu0 %v1179
        %1287 = vmatprep.subr.bf16.mxu0 0
        %1288 = vmatpush1.bf16.msra.mxu0 %v1180
        %1289 = vmatprep.subr.bf16.mxu0 0
        %1290 = vmatpush1.bf16.msra.mxu0 %v1181
        %1291 = vmatprep.subr.bf16.mxu0 0
        %1292 = vmatpush1.bf16.msra.mxu0 %v1182
        %1293 = vmatprep.subr.bf16.mxu0 0
        %1294 = vmatpush1.bf16.msra.mxu0 %v1183
        %1295 = vmatprep.subr.bf16.mxu0 0
        %1296 = vmatpush1.bf16.msra.mxu0 %v1184
        %1297 = vmatprep.mubr.bf16.mxu0 %v875
        %1298 = vmatmul.mubr.bf16.gmra.mrb[0].mxu0 %v874
        %v1299 = vpop.f32.mrb[0].mxu0
        %v1300 = vadd.f32 %v976, %v1299
        %v1301 = vpop.f32.mrb[0].mxu0
        %v1302 = vpop.f32.mrb[0].mxu0
        %v1303 = vpop.f32.mrb[0].mxu0
        %1304 = vdwg.mxu0
        %1305 = vmatprep.subr.bf16.mxu0 0
        %1306 = vmatpush1.bf16.msra.mxu0 %v1185
        %1307 = vmatprep.subr.bf16.mxu0 0
        %1308 = vmatpush1.bf16.msra.mxu0 %v1186
        %1309 = vmatprep.subr.bf16.mxu0 0
        %1310 = vmatpush1.bf16.msra.mxu0 %v1187
        %1311 = vmatprep.subr.bf16.mxu0 0
        %1312 = vmatpush1.bf16.msra.mxu0 %v1188
        %1313 = vmatprep.subr.bf16.mxu0 0
        %1314 = vmatpush1.bf16.msra.mxu0 %v1189
        %1315 = vmatprep.subr.bf16.mxu0 0
        %1316 = vmatpush1.bf16.msra.mxu0 %v1190
        %1317 = vmatprep.subr.bf16.mxu0 0
        %1318 = vmatpush1.bf16.msra.mxu0 %v1191
        %1319 = vmatprep.subr.bf16.mxu0 0
        %1320 = vmatpush1.bf16.msra.mxu0 %v1192
        %1321 = vmatprep.subr.bf16.mxu0 0
        %1322 = vmatpush1.bf16.msra.mxu0 %v1193
        %1323 = vmatprep.subr.bf16.mxu0 0
        %1324 = vmatpush1.bf16.msra.mxu0 %v1194
        %1325 = vmatprep.subr.bf16.mxu0 0
        %1326 = vmatpush1.bf16.msra.mxu0 %v1195
        %1327 = vmatprep.subr.bf16.mxu0 0
        %1328 = vmatpush1.bf16.msra.mxu0 %v1196
        %1329 = vmatprep.subr.bf16.mxu0 0
        %1330 = vmatpush1.bf16.msra.mxu0 %v1197
        %1331 = vmatprep.subr.bf16.mxu0 0
        %1332 = vmatpush1.bf16.msra.mxu0 %v1198
        %1333 = vmatprep.subr.bf16.mxu0 0
        %1334 = vmatpush1.bf16.msra.mxu0 %v1199
        %1335 = vmatprep.subr.bf16.mxu0 0
        %1336 = vmatpush1.bf16.msra.mxu0 %v1200
        %1337 = vmatprep.mubr.bf16.mxu0 %v877
        %1338 = vmatmul.mubr.bf16.gmra.mrb[0].mxu0 %v876
        %v1339 = vpop.f32.mrb[0].mxu0
        %v1340 = vadd.f32 %v1300, %v1339
        %v1341 = vpop.f32.mrb[0].mxu0
        %v1342 = vpop.f32.mrb[0].mxu0
        %v1343 = vpop.f32.mrb[0].mxu0
        %1344 = vdwg.mxu0
        %1345 = vmatprep.subr.bf16.mxu0 0
        %1346 = vmatpush1.bf16.msra.mxu0 %v1201
        %1347 = vmatprep.subr.bf16.mxu0 0
        %1348 = vmatpush1.bf16.msra.mxu0 %v1202
        %1349 = vmatprep.subr.bf16.mxu0 0
        %1350 = vmatpush1.bf16.msra.mxu0 %v1203
        %1351 = vmatprep.subr.bf16.mxu0 0
        %1352 = vmatpush1.bf16.msra.mxu0 %v1204
        %1353 = vmatprep.subr.bf16.mxu0 0
        %1354 = vmatpush1.bf16.msra.mxu0 %v1205
        %1355 = vmatprep.subr.bf16.mxu0 0
        %1356 = vmatpush1.bf16.msra.mxu0 %v1206
        %1357 = vmatprep.subr.bf16.mxu0 0
        %1358 = vmatpush1.bf16.msra.mxu0 %v1207
        %1359 = vmatprep.subr.bf16.mxu0 0
        %1360 = vmatpush1.bf16.msra.mxu0 %v1208
        %1361 = vmatprep.subr.bf16.mxu0 0
        %1362 = vmatpush1.bf16.msra.mxu0 %v1209
        %1363 = vmatprep.subr.bf16.mxu0 0
        %1364 = vmatpush1.bf16.msra.mxu0 %v1210
        %1365 = vmatprep.subr.bf16.mxu0 0
        %1366 = vmatpush1.bf16.msra.mxu0 %v1211
        %1367 = vmatprep.subr.bf16.mxu0 0
        %1368 = vmatpush1.bf16.msra.mxu0 %v1212
        %1369 = vmatprep.subr.bf16.mxu0 0
        %1370 = vmatpush1.bf16.msra.mxu0 %v1213
        %1371 = vmatprep.subr.bf16.mxu0 0
        %1372 = vmatpush1.bf16.msra.mxu0 %v1214
        %1373 = vmatprep.subr.bf16.mxu0 0
        %1374 = vmatpush1.bf16.msra.mxu0 %v1215
        %1375 = vmatprep.subr.bf16.mxu0 0
        %1376 = vmatpush1.bf16.msra.mxu0 %v1216
        %1377 = vmatprep.mubr.bf16.mxu0 %v879
        %1378 = vmatmul.mubr.bf16.gmra.mrb[0].mxu0 %v878
        %v1379 = vpop.f32.mrb[0].mxu0
        %v1380 = vadd.f32 %v1340, %v1379
        %v1381 = vpop.f32.mrb[0].mxu0
        %v1382 = vpop.f32.mrb[0].mxu0
        %v1383 = vpop.f32.mrb[0].mxu0
        %1384 = vdwg.mxu0
        %1385 = vst [vmem:[#allocation2] sm:$0x1f] %v1380
      $region108: #{image_to_point_cloud.1} parent=103 // pred_fallthru
        _
      %v1386 = vld [vmem:[#allocation2] sm:$0x1f]
      %v1387 = vld [vmem:[%s816] sm:$0x1]
      %v1388 = vld [vmem:[%s819] sm:$0x1]
      %vm1389 = vcmask 1044480
      %v1390 = vsel %vm1389, %v1386, 0.0
      %1391 = vadd.xlane.f32.xlu0 %v1390
      %v1392 = vpop.xlane.xlu0 %1391
      %v1393 = vrcp.pop 128.0
      %v1394 = vmul.f32 %v1392, %v1393
      %v1395 = vsub.f32 %v1386, %v1394
      %v1396 = vmul.f32 %v1395, %v1395
      %v1397 = vsel %vm1389, %v1396, 0.0
      %1398 = vadd.xlane.f32.xlu0 %v1397
      %v1399 = vpop.xlane.xlu0 %1398
      %v1400 = vmul.f32 %v1399, %v1393
      %v1401 = vadd.f32 %v1400, 1e-06
      %v1402 = vrsqrt.pop %v1401
      %v1403 = vmul.f32 %v1395, %v1402
      %v1405 = vlaneseq
      %v1406 = vshrl.u32 %v1405, 7
      %v1407 = vsub.s32 0, %v1406
      %v1408 = vrot.slane %v1387, %v1407
      %v1410 = vmul.f32 %v1403, %v1408
      %v1412 = vlaneseq
      %v1413 = vshrl.u32 %v1412, 7
      %v1414 = vsub.s32 0, %v1413
      %v1415 = vrot.slane %v1388, %v1414
      %v1417 = vadd.f32 %v1410, %v1415
      %v1418 = vpack.c.bf16 %v1417, %v1417
      %v1419 = vld [vmem:[%s824] sm:$0xff]
      %v1420 = vld [vmem:[%s824 + $0x8] sm:$0xf]
      %v1421 = vld [vmem:[%s824 + $0xc] sm:$0xff]
      %v1422 = vld [vmem:[%s824 + $0x14] sm:$0xf]
      %v1423 = vld [vmem:[%s824 + $0x18] sm:$0xff]
      %v1424 = vld [vmem:[%s824 + $0x20] sm:$0xf]
      %v1425 = vld [vmem:[%s824 + $0x24] sm:$0xff]
      %v1426 = vld [vmem:[%s824 + $0x2c] sm:$0xf]
      %v1427 = vld [vmem:[%s824 + $0x30] sm:$0xff]
      %v1428 = vld [vmem:[%s824 + $0x38] sm:$0xf]
      %v1429 = vld [vmem:[%s824 + $0x3c] sm:$0xff]
      %v1430 = vld [vmem:[%s824 + $0x44] sm:$0xf]
      %v1431 = vld [vmem:[%s824 + $0x48] sm:$0xff]
      %v1432 = vld [vmem:[%s824 + $0x50] sm:$0xf]
      %v1433 = vld [vmem:[%s824 + $0x54] sm:$0xff]
      %v1434 = vld [vmem:[%s824 + $0x5c] sm:$0xf]
      %v1435 = vld [vmem:[%s824 + $0x60] sm:$0xff]
      %v1436 = vld [vmem:[%s824 + $0x68] sm:$0xf]
      %v1437 = vld [vmem:[%s824 + $0x6c] sm:$0xff]
      %v1438 = vld [vmem:[%s824 + $0x74] sm:$0xf]
      %v1439 = vld [vmem:[%s824 + $0x78] sm:$0xff]
      %v1440 = vld [vmem:[%s824 + $0x80] sm:$0xf]
      %v1441 = vld [vmem:[%s824 + $0x84] sm:$0xff]
      %v1442 = vld [vmem:[%s824 + $0x8c] sm:$0xf]
      %v1443 = vld [vmem:[%s824 + $0x90] sm:$0xff]
      %v1444 = vld [vmem:[%s824 + $0x98] sm:$0xf]
      %v1445 = vld [vmem:[%s824 + $0x9c] sm:$0xff]
      %v1446 = vld [vmem:[%s824 + $0xa4] sm:$0xf]
      %v1447 = vld [vmem:[%s824 + $0xa8] sm:$0xff]
      %v1448 = vld [vmem:[%s824 + $0xb0] sm:$0xf]
      %v1449 = vld [vmem:[%s824 + $0xb4] sm:$0xff]
      %v1450 = vld [vmem:[%s824 + $0xbc] sm:$0xf]
      %v1451 = vld [vmem:[%s828] sm:$0x7]
      %v1453 = vlaneseq
      %v1454 = vshrl.u32 %v1453, 7
      %v1455 = vsub.s32 0, %v1454
      %v1456 = vrot.slane %v1451, %v1455
      %v1457 = vlaneseq
      %v1458 = vshrl.u32 %v1457, 7
      %v1459 = vsub.s32 1, %v1458
      %v1460 = vrot.slane %v1451, %v1459
      %v1461 = vlaneseq
      %v1462 = vshrl.u32 %v1461, 7
      %v1463 = vsub.s32 2, %v1462
      %v1464 = vrot.slane %v1451, %v1463
      %v1500 = vunpack.c.l.b16 %v1419
      %v1501 = vunpack.c.h.b16 %v1419
      %v1502 = vunpack.c.l.b16 %v1420
      %v1503 = vunpack.c.l.b16 %v1421
      %v1504 = vunpack.c.h.b16 %v1421
      %v1505 = vunpack.c.l.b16 %v1422
      %v1506 = vunpack.c.l.b16 %v1423
      %v1507 = vunpack.c.h.b16 %v1423
      %v1508 = vunpack.c.l.b16 %v1424
      %v1509 = vunpack.c.l.b16 %v1425
      %v1510 = vunpack.c.h.b16 %v1425
      %v1511 = vunpack.c.l.b16 %v1426
      %v1512 = vunpack.c.l.b16 %v1427
      %v1513 = vunpack.c.h.b16 %v1427
      %v1514 = vunpack.c.l.b16 %v1428
      %v1515 = vunpack.c.l.b16 %v1429
      %v1516 = vunpack.c.h.b16 %v1429
      %v1517 = vunpack.c.l.b16 %v1430
      %v1518 = vunpack.c.l.b16 %v1431
      %v1519 = vunpack.c.h.b16 %v1431
      %v1520 = vunpack.c.l.b16 %v1432
      %v1521 = vunpack.c.l.b16 %v1433
      %v1522 = vunpack.c.h.b16 %v1433
      %v1523 = vunpack.c.l.b16 %v1434
      %v1524 = vunpack.c.l.b16 %v1435
      %v1525 = vunpack.c.h.b16 %v1435
      %v1526 = vunpack.c.l.b16 %v1436
      %v1527 = vunpack.c.l.b16 %v1437
      %v1528 = vunpack.c.h.b16 %v1437
      %v1529 = vunpack.c.l.b16 %v1438
      %v1530 = vunpack.c.l.b16 %v1439
      %v1531 = vunpack.c.h.b16 %v1439
      %v1532 = vunpack.c.l.b16 %v1440
      %v1533 = vunpack.c.l.b16 %v1441
      %v1534 = vunpack.c.h.b16 %v1441
      %v1535 = vunpack.c.l.b16 %v1442
      %v1536 = vunpack.c.l.b16 %v1443
      %v1537 = vunpack.c.h.b16 %v1443
      %v1538 = vunpack.c.l.b16 %v1444
      %v1539 = vunpack.c.l.b16 %v1445
      %v1540 = vunpack.c.h.b16 %v1445
      %v1541 = vunpack.c.l.b16 %v1446
      %v1542 = vunpack.c.l.b16 %v1447
      %v1543 = vunpack.c.h.b16 %v1447
      %v1544 = vunpack.c.l.b16 %v1448
      %v1545 = vunpack.c.l.b16 %v1449
      %v1546 = vunpack.c.h.b16 %v1449
      %v1547 = vunpack.c.l.b16 %v1450
      %v1548 = vpack.c.b16 %v1503, %v1500
      %v1549 = vpack.c.b16 %v1504, %v1501
      %v1550 = vpack.c.b16 %v1505, %v1502
      %v1551 = vpack.c.b16 %v1509, %v1506
      %v1552 = vpack.c.b16 %v1510, %v1507
      %v1553 = vpack.c.b16 %v1511, %v1508
      %v1554 = vpack.c.b16 %v1515, %v1512
      %v1555 = vpack.c.b16 %v1516, %v1513
      %v1556 = vpack.c.b16 %v1517, %v1514
      %v1557 = vpack.c.b16 %v1521, %v1518
      %v1558 = vpack.c.b16 %v1522, %v1519
      %v1559 = vpack.c.b16 %v1523, %v1520
      %v1560 = vpack.c.b16 %v1527, %v1524
      %v1561 = vpack.c.b16 %v1528, %v1525
      %v1562 = vpack.c.b16 %v1529, %v1526
      %v1563 = vpack.c.b16 %v1533, %v1530
      %v1564 = vpack.c.b16 %v1534, %v1531
      %v1565 = vpack.c.b16 %v1535, %v1532
      %v1566 = vpack.c.b16 %v1539, %v1536
      %v1567 = vpack.c.b16 %v1540, %v1537
      %v1568 = vpack.c.b16 %v1541, %v1538
      %v1569 = vpack.c.b16 %v1545, %v1542
      %v1570 = vpack.c.b16 %v1546, %v1543
      %v1571 = vpack.c.b16 %v1547, %v1544
      %1596 = vmatprep.subr.bf16.mxu0 %v1549
      %1597 = vmatpush1.bf16.msra.mxu0 %v1548
      %1598 = vmatprep.subr.bf16.mxu0 %v1552
      %1599 = vmatpush1.bf16.msra.mxu0 %v1551
      %1600 = vmatprep.subr.bf16.mxu0 %v1555
      %1601 = vmatpush1.bf16.msra.mxu0 %v1554
      %1602 = vmatprep.subr.bf16.mxu0 %v1558
      %1603 = vmatpush1.bf16.msra.mxu0 %v1557
      %1604 = vmatprep.subr.bf16.mxu0 %v1561
      %1605 = vmatpush1.bf16.msra.mxu0 %v1560
      %1606 = vmatprep.subr.bf16.mxu0 %v1564
      %1607 = vmatpush1.bf16.msra.mxu0 %v1563
      %1608 = vmatprep.subr.bf16.mxu0 %v1567
      %1609 = vmatpush1.bf16.msra.mxu0 %v1566
      %1610 = vmatprep.subr.bf16.mxu0 %v1570
      %1611 = vmatpush1.bf16.msra.mxu0 %v1569
      %1612 = vmatprep.subr.bf16.mxu0 0
      %1613 = vmatpush1.bf16.msra.mxu0 0
      %1614 = vmatprep.subr.bf16.mxu0 0
      %1615 = vmatpush1.bf16.msra.mxu0 0
      %1616 = vmatprep.subr.bf16.mxu0 0
      %1617 = vmatpush1.bf16.msra.mxu0 0
      %1618 = vmatprep.subr.bf16.mxu0 0
      %1619 = vmatpush1.bf16.msra.mxu0 0
      %1620 = vmatprep.subr.bf16.mxu0 0
      %1621 = vmatpush1.bf16.msra.mxu0 0
      %1622 = vmatprep.subr.bf16.mxu0 0
      %1623 = vmatpush1.bf16.msra.mxu0 0
      %1624 = vmatprep.subr.bf16.mxu0 0
      %1625 = vmatpush1.bf16.msra.mxu0 0
      %1626 = vmatprep.subr.bf16.mxu0 0
      %1627 = vmatpush1.bf16.msra.mxu0 0
      %1628 = vmatprep.mubr.bf16.mxu0 0
      %1629 = vmatmul.mubr.bf16.gmra.mrb[0].mxu0 %v1418
      %v1630 = vpop.f32.mrb[0].mxu0
      %v1631 = vadd.f32 %v1456, %v1630
      %v1632 = vpop.f32.mrb[0].mxu0
      %v1633 = vadd.f32 %v1460, %v1632
      %v1634 = vpop.f32.mrb[0].mxu0
      %v1635 = vpop.f32.mrb[0].mxu0
      %1636 = vdwg.mxu0
      %1637 = vmatprep.subr.bf16.mxu0 0
      %1638 = vmatpush1.bf16.msra.mxu0 %v1550
      %1639 = vmatprep.subr.bf16.mxu0 0
      %1640 = vmatpush1.bf16.msra.mxu0 %v1553
      %1641 = vmatprep.subr.bf16.mxu0 0
      %1642 = vmatpush1.bf16.msra.mxu0 %v1556
      %1643 = vmatprep.subr.bf16.mxu0 0
      %1644 = vmatpush1.bf16.msra.mxu0 %v1559
      %1645 = vmatprep.subr.bf16.mxu0 0
      %1646 = vmatpush1.bf16.msra.mxu0 %v1562
      %1647 = vmatprep.subr.bf16.mxu0 0
      %1648 = vmatpush1.bf16.msra.mxu0 %v1565
      %1649 = vmatprep.subr.bf16.mxu0 0
      %1650 = vmatpush1.bf16.msra.mxu0 %v1568
      %1651 = vmatprep.subr.bf16.mxu0 0
      %1652 = vmatpush1.bf16.msra.mxu0 %v1571
      %1653 = vmatprep.subr.bf16.mxu0 0
      %1654 = vmatpush1.bf16.msra.mxu0 0
      %1655 = vmatprep.subr.bf16.mxu0 0
      %1656 = vmatpush1.bf16.msra.mxu0 0
      %1657 = vmatprep.subr.bf16.mxu0 0
      %1658 = vmatpush1.bf16.msra.mxu0 0
      %1659 = vmatprep.subr.bf16.mxu0 0
      %1660 = vmatpush1.bf16.msra.mxu0 0
      %1661 = vmatprep.subr.bf16.mxu0 0
      %1662 = vmatpush1.bf16.msra.mxu0 0
      %1663 = vmatprep.subr.bf16.mxu0 0
      %1664 = vmatpush1.bf16.msra.mxu0 0
      %1665 = vmatprep.subr.bf16.mxu0 0
      %1666 = vmatpush1.bf16.msra.mxu0 0
      %1667 = vmatprep.subr.bf16.mxu0 0
      %1668 = vmatpush1.bf16.msra.mxu0 0
      %1669 = vmatprep.mubr.bf16.mxu0 0
      %1670 = vmatmul.mubr.bf16.gmra.mrb[0].mxu0 %v1418
      %v1671 = vpop.f32.mrb[0].mxu0
      %v1672 = vadd.f32 %v1464, %v1671
      %v1673 = vpop.f32.mrb[0].mxu0
      %v1674 = vpop.f32.mrb[0].mxu0
      %v1675 = vpop.f32.mrb[0].mxu0
      %1676 = vdwg.mxu0
      %v1677 = vld [vmem:[%s833] sm:$0xf]
      %v1678 = vld [vmem:[%s833 + $0x4] sm:$0xf]
      %v1679 = vld [vmem:[%s833 + $0x8] sm:$0xf]
      %v1680 = vld [vmem:[%s833 + $0xc] sm:$0xf]
      %v1681 = vld [vmem:[%s833 + $0x10] sm:$0xf]
      %v1682 = vld [vmem:[%s833 + $0x14] sm:$0xf]
      %v1683 = vld [vmem:[%s833 + $0x18] sm:$0xf]
      %v1684 = vld [vmem:[%s833 + $0x1c] sm:$0xf]
      %v1685 = vld [vmem:[%s833 + $0x20] sm:$0xf]
      %v1686 = vld [vmem:[%s833 + $0x24] sm:$0xf]
      %v1687 = vld [vmem:[%s833 + $0x28] sm:$0xf]
      %v1688 = vld [vmem:[%s833 + $0x2c] sm:$0xf]
      %v1689 = vld [vmem:[%s833 + $0x30] sm:$0xf]
      %v1690 = vld [vmem:[%s833 + $0x34] sm:$0xf]
      %v1691 = vld [vmem:[%s833 + $0x38] sm:$0xf]
      %v1692 = vld [vmem:[%s833 + $0x3c] sm:$0xf]
      %v1693 = vmul.f32 %v1631, 0.17677669
      %v1694 = vpack.c.bf16 %v1693, %v1693
      %v1695 = vpack.c.bf16 %v1633, %v1633
      %v1696 = vpack.c.bf16 %v1672, %v1672
      %vm1697 = vcmask 261120
      %v1699 = vsel %vm1697, %v1694, 0
      %v1702 = vsel %vm1697, %v1695, 0
      %1704 = vmatprep.subr.bf16.mxu0 0
      %1705 = vmatpush1.bf16.xpose.msra.mxu0 %v1702
      %1706 = vmatprep.subr.bf16.mxu0 0
      %1707 = vmatpush1.bf16.xpose.msra.mxu0 0
      %1708 = vmatprep.subr.bf16.mxu0 0
      %1709 = vmatpush1.bf16.xpose.msra.mxu0 0
      %1710 = vmatprep.subr.bf16.mxu0 0
      %1711 = vmatpush1.bf16.xpose.msra.mxu0 0
      %1712 = vmatprep.subr.bf16.mxu0 0
      %1713 = vmatpush1.bf16.xpose.msra.mxu0 0
      %1714 = vmatprep.subr.bf16.mxu0 0
      %1715 = vmatpush1.bf16.xpose.msra.mxu0 0
      %1716 = vmatprep.subr.bf16.mxu0 0
      %1717 = vmatpush1.bf16.xpose.msra.mxu0 0
      %1718 = vmatprep.subr.bf16.mxu0 0
      %1719 = vmatpush1.bf16.xpose.msra.mxu0 0
      %1720 = vmatprep.subr.bf16.mxu0 0
      %1721 = vmatpush1.bf16.xpose.msra.mxu0 0
      %1722 = vmatprep.subr.bf16.mxu0 0
      %1723 = vmatpush1.bf16.xpose.msra.mxu0 0
      %1724 = vmatprep.subr.bf16.mxu0 0
      %1725 = vmatpush1.bf16.xpose.msra.mxu0 0
      %1726 = vmatprep.subr.bf16.mxu0 0
      %1727 = vmatpush1.bf16.xpose.msra.mxu0 0
      %1728 = vmatprep.subr.bf16.mxu0 0
      %1729 = vmatpush1.bf16.xpose.msra.mxu0 0
      %1730 = vmatprep.subr.bf16.mxu0 0
      %1731 = vmatpush1.bf16.xpose.msra.mxu0 0
      %1732 = vmatprep.subr.bf16.mxu0 0
      %1733 = vmatpush1.bf16.xpose.msra.mxu0 0
      %1734 = vmatprep.subr.bf16.mxu0 0
      %1735 = vmatpush1.bf16.xpose.msra.mxu0 0
      %1736 = vmatprep.mubr.bf16.mxu0 0
      %1737 = vmatmul.mubr.bf16.gmra.mrb[0].mxu0 %v1699
      %v1738 = vpop.f32.mrb[0].mxu0
      %v1739 = vadd.f32 0.0, %v1738
      %v1740 = vpop.f32.mrb[0].mxu0
      %v1741 = vpop.f32.mrb[0].mxu0
      %v1742 = vpop.f32.mrb[0].mxu0
      %1743 = vdwg.mxu0
      %vm1744 = vcmask 36864
      %v1745 = vsel %vm1744, %v1739, -inf
      %1746 = vmax.xlane.f32.xlu0 %v1745
      %v1747 = vpop.xlane.xlu0 %1746
      %v1748 = vsub.f32 %v1739, %v1747
      %v1749 = vmul.f32 %v1748, 1.442695
      %v1750 = vpow.pop %v1749
      %v1751 = vsel %vm1744, %v1750, 0.0
      %1752 = vadd.xlane.f32.xlu0 %v1751
      %v1753 = vpop.xlane.xlu0 %1752
      %v1754 = vrcp.pop %v1753
      %v1755 = vmul.f32 %v1750, %v1754
      %v1756 = vpack.c.bf16 %v1755, %v1755
      %vm1757 = vcmask 39936
      %v1759 = vsel %vm1757, %v1756, 0
      %vm1761 = vcmask 1041408
      %vm1762 = vcmask 1042432
      %v1763 = vsel %vm1761, 4294967295, 65535
      %v1764 = vsel %vm1762, %v1763, 0
      %v1766 = vand.u32 %v1696, %v1764
      %1768 = vmatprep.subr.bf16.mxu0 0
      %1769 = vmatpush1.bf16.msra.mxu0 %v1766
      %1770 = vmatprep.subr.bf16.mxu0 0
      %1771 = vmatpush1.bf16.msra.mxu0 0
      %1772 = vmatprep.subr.bf16.mxu0 0
      %1773 = vmatpush1.bf16.msra.mxu0 0
      %1774 = vmatprep.subr.bf16.mxu0 0
      %1775 = vmatpush1.bf16.msra.mxu0 0
      %1776 = vmatprep.subr.bf16.mxu0 0
      %1777 = vmatpush1.bf16.msra.mxu0 0
      %1778 = vmatprep.subr.bf16.mxu0 0
      %1779 = vmatpush1.bf16.msra.mxu0 0
      %1780 = vmatprep.subr.bf16.mxu0 0
      %1781 = vmatpush1.bf16.msra.mxu0 0
      %1782 = vmatprep.subr.bf16.mxu0 0
      %1783 = vmatpush1.bf16.msra.mxu0 0
      %1784 = vmatprep.subr.bf16.mxu0 0
      %1785 = vmatpush1.bf16.msra.mxu0 0
      %1786 = vmatprep.subr.bf16.mxu0 0
      %1787 = vmatpush1.bf16.msra.mxu0 0
      %1788 = vmatprep.subr.bf16.mxu0 0
      %1789 = vmatpush1.bf16.msra.mxu0 0
      %1790 = vmatprep.subr.bf16.mxu0 0
      %1791 = vmatpush1.bf16.msra.mxu0 0
      %1792 = vmatprep.subr.bf16.mxu0 0
      %1793 = vmatpush1.bf16.msra.mxu0 0
      %1794 = vmatprep.subr.bf16.mxu0 0
      %1795 = vmatpush1.bf16.msra.mxu0 0
      %1796 = vmatprep.subr.bf16.mxu0 0
      %1797 = vmatpush1.bf16.msra.mxu0 0
      %1798 = vmatprep.subr.bf16.mxu0 0
      %1799 = vmatpush1.bf16.msra.mxu0 0
      %1800 = vmatprep.mubr.bf16.mxu0 0
      %1801 = vmatmul.mubr.bf16.gmra.mrb[0].mxu0 %v1759
      %v1802 = vpop.f32.mrb[0].mxu0
      %v1803 = vadd.f32 0.0, %v1802
      %v1804 = vpop.f32.mrb[0].mxu0
      %v1805 = vpop.f32.mrb[0].mxu0
      %v1806 = vpop.f32.mrb[0].mxu0
      %1807 = vdwg.mxu0
      %v1808 = vpack.c.bf16 %v1803, %v1803
      %1810 = vrot.lane.b32.xlu0 %v1694, 96
      %v1811 = vpop.permute.xlu0 %1810
      %1813 = vrot.lane.b32.xlu0 %v1695, 96
      %v1814 = vpop.permute.xlu0 %1813
      %v1816 = vsel %vm1697, %v1811, 0
      %v1819 = vsel %vm1697, %v1814, 0
      %1821 = vmatprep.subr.bf16.mxu0 0
      %1822 = vmatpush1.bf16.xpose.msra.mxu0 %v1819
      %1823 = vmatprep.subr.bf16.mxu0 0
      %1824 = vmatpush1.bf16.xpose.msra.mxu0 0
      %1825 = vmatprep.subr.bf16.mxu0 0
      %1826 = vmatpush1.bf16.xpose.msra.mxu0 0
      %1827 = vmatprep.subr.bf16.mxu0 0
      %1828 = vmatpush1.bf16.xpose.msra.mxu0 0
      %1829 = vmatprep.subr.bf16.mxu0 0
      %1830 = vmatpush1.bf16.xpose.msra.mxu0 0
      %1831 = vmatprep.subr.bf16.mxu0 0
      %1832 = vmatpush1.bf16.xpose.msra.mxu0 0
      %1833 = vmatprep.subr.bf16.mxu0 0
      %1834 = vmatpush1.bf16.xpose.msra.mxu0 0
      %1835 = vmatprep.subr.bf16.mxu0 0
      %1836 = vmatpush1.bf16.xpose.msra.mxu0 0
      %1837 = vmatprep.subr.bf16.mxu0 0
      %1838 = vmatpush1.bf16.xpose.msra.mxu0 0
      %1839 = vmatprep.subr.bf16.mxu0 0
      %1840 = vmatpush1.bf16.xpose.msra.mxu0 0
      %1841 = vmatprep.subr.bf16.mxu0 0
      %1842 = vmatpush1.bf16.xpose.msra.mxu0 0
      %1843 = vmatprep.subr.bf16.mxu0 0
      %1844 = vmatpush1.bf16.xpose.msra.mxu0 0
      %1845 = vmatprep.subr.bf16.mxu0 0
      %1846 = vmatpush1.bf16.xpose.msra.mxu0 0
      %1847 = vmatprep.subr.bf16.mxu0 0
      %1848 = vmatpush1.bf16.xpose.msra.mxu0 0
      %1849 = vmatprep.subr.bf16.mxu0 0
      %1850 = vmatpush1.bf16.xpose.msra.mxu0 0
      %1851 = vmatprep.subr.bf16.mxu0 0
      %1852 = vmatpush1.bf16.xpose.msra.mxu0 0
      %1853 = vmatprep.mubr.bf16.mxu0 0
      %1854 = vmatmul.mubr.bf16.gmra.mrb[0].mxu0 %v1816
      %v1855 = vpop.f32.mrb[0].mxu0
      %v1856 = vadd.f32 0.0, %v1855
      %v1857 = vpop.f32.mrb[0].mxu0
      %v1858 = vpop.f32.mrb[0].mxu0
      %v1859 = vpop.f32.mrb[0].mxu0
      %1860 = vdwg.mxu0
      %v1861 = vsel %vm1744, %v1856, -inf
      %1862 = vmax.xlane.f32.xlu0 %v1861
      %v1863 = vpop.xlane.xlu0 %1862
      %v1864 = vsub.f32 %v1856, %v1863
      %v1865 = vmul.f32 %v1864, 1.442695
      %v1866 = vpow.pop %v1865
      %v1867 = vsel %vm1744, %v1866, 0.0
      %1868 = vadd.xlane.f32.xlu0 %v1867
      %v1869 = vpop.xlane.xlu0 %1868
      %v1870 = vrcp.pop %v1869
      %v1871 = vmul.f32 %v1866, %v1870
      %v1872 = vpack.c.bf16 %v1871, %v1871
      %1874 = vrot.lane.b32.xlu0 %v1696, 96
      %v1875 = vpop.permute.xlu0 %1874
      %v1877 = vsel %vm1757, %v1872, 0
      %v1880 = vand.u32 %v1875, %v1764
      %1882 = vmatprep.subr.bf16.mxu0 0
      %1883 = vmatpush1.bf16.msra.mxu0 %v1880
      %1884 = vmatprep.subr.bf16.mxu0 0
      %1885 = vmatpush1.bf16.msra.mxu0 0
      %1886 = vmatprep.subr.bf16.mxu0 0
      %1887 = vmatpush1.bf16.msra.mxu0 0
      %1888 = vmatprep.subr.bf16.mxu0 0
      %1889 = vmatpush1.bf16.msra.mxu0 0
      %1890 = vmatprep.subr.bf16.mxu0 0
      %1891 = vmatpush1.bf16.msra.mxu0 0
      %1892 = vmatprep.subr.bf16.mxu0 0
      %1893 = vmatpush1.bf16.msra.mxu0 0
      %1894 = vmatprep.subr.bf16.mxu0 0
      %1895 = vmatpush1.bf16.msra.mxu0 0
      %1896 = vmatprep.subr.bf16.mxu0 0
      %1897 = vmatpush1.bf16.msra.mxu0 0
      %1898 = vmatprep.subr.bf16.mxu0 0
      %1899 = vmatpush1.bf16.msra.mxu0 0
      %1900 = vmatprep.subr.bf16.mxu0 0
      %1901 = vmatpush1.bf16.msra.mxu0 0
      %1902 = vmatprep.subr.bf16.mxu0 0
      %1903 = vmatpush1.bf16.msra.mxu0 0
      %1904 = vmatprep.subr.bf16.mxu0 0
      %1905 = vmatpush1.bf16.msra.mxu0 0
      %1906 = vmatprep.subr.bf16.mxu0 0
      %1907 = vmatpush1.bf16.msra.mxu0 0
      %1908 = vmatprep.subr.bf16.mxu0 0
      %1909 = vmatpush1.bf16.msra.mxu0 0
      %1910 = vmatprep.subr.bf16.mxu0 0
      %1911 = vmatpush1.bf16.msra.mxu0 0
      %1912 = vmatprep.subr.bf16.mxu0 0
      %1913 = vmatpush1.bf16.msra.mxu0 0
      %1914 = vmatprep.mubr.bf16.mxu0 0
      %1915 = vmatmul.mubr.bf16.gmra.mrb[0].mxu0 %v1877
      %v1916 = vpop.f32.mrb[0].mxu0
      %v1917 = vadd.f32 0.0, %v1916
      %v1918 = vpop.f32.mrb[0].mxu0
      %v1919 = vpop.f32.mrb[0].mxu0
      %v1920 = vpop.f32.mrb[0].mxu0
      %1921 = vdwg.mxu0
      %v1922 = vpack.c.bf16 %v1917, %v1917
      %v1927 = vunpack.c.l.b16 %v1681
      %v1928 = vunpack.c.l.b16 %v1682
      %v1929 = vunpack.c.l.b16 %v1683
      %v1930 = vunpack.c.l.b16 %v1684
      %v1931 = vpack.c.b16 %v1928, %v1927
      %v1932 = vpack.c.b16 %v1930, %v1929
      %v1936 = vsel %vm1697, %v1922, 0
      %1938 = vmatprep.subr.bf16.mxu0 0
      %1939 = vmatpush1.bf16.msra.mxu0 %v1931
      %1940 = vmatprep.subr.bf16.mxu0 0
      %1941 = vmatpush1.bf16.msra.mxu0 %v1932
      %1942 = vmatprep.subr.bf16.mxu0 0
      %1943 = vmatpush1.bf16.msra.mxu0 0
      %1944 = vmatprep.subr.bf16.mxu0 0
      %1945 = vmatpush1.bf16.msra.mxu0 0
      %1946 = vmatprep.subr.bf16.mxu0 0
      %1947 = vmatpush1.bf16.msra.mxu0 0
      %1948 = vmatprep.subr.bf16.mxu0 0
      %1949 = vmatpush1.bf16.msra.mxu0 0
      %1950 = vmatprep.subr.bf16.mxu0 0
      %1951 = vmatpush1.bf16.msra.mxu0 0
      %1952 = vmatprep.subr.bf16.mxu0 0
      %1953 = vmatpush1.bf16.msra.mxu0 0
      %1954 = vmatprep.subr.bf16.mxu0 0
      %1955 = vmatpush1.bf16.msra.mxu0 0
      %1956 = vmatprep.subr.bf16.mxu0 0
      %1957 = vmatpush1.bf16.msra.mxu0 0
      %1958 = vmatprep.subr.bf16.mxu0 0
      %1959 = vmatpush1.bf16.msra.mxu0 0
      %1960 = vmatprep.subr.bf16.mxu0 0
      %1961 = vmatpush1.bf16.msra.mxu0 0
      %1962 = vmatprep.subr.bf16.mxu0 0
      %1963 = vmatpush1.bf16.msra.mxu0 0
      %1964 = vmatprep.subr.bf16.mxu0 0
      %1965 = vmatpush1.bf16.msra.mxu0 0
      %1966 = vmatprep.subr.bf16.mxu0 0
      %1967 = vmatpush1.bf16.msra.mxu0 0
      %1968 = vmatprep.subr.bf16.mxu0 0
      %1969 = vmatpush1.bf16.msra.mxu0 0
      %1970 = vmatprep.mubr.bf16.mxu0 0
      %1971 = vmatmul.mubr.bf16.gmra.mrb[0].mxu0 %v1936
      %v1972 = vpop.f32.mrb[0].mxu0
      %v1973 = vadd.f32 0.0, %v1972
      %v1974 = vpop.f32.mrb[0].mxu0
      %v1975 = vpop.f32.mrb[0].mxu0
      %v1976 = vpop.f32.mrb[0].mxu0
      %1977 = vdwg.mxu0
      %v1982 = vunpack.c.l.b16 %v1677
      %v1983 = vunpack.c.l.b16 %v1678
      %v1984 = vunpack.c.l.b16 %v1679
      %v1985 = vunpack.c.l.b16 %v1680
      %v1986 = vpack.c.b16 %v1983, %v1982
      %v1987 = vpack.c.b16 %v1985, %v1984
      %v1991 = vsel %vm1697, %v1808, 0
      %1993 = vmatprep.subr.bf16.mxu0 0
      %1994 = vmatpush1.bf16.msra.mxu0 %v1986
      %1995 = vmatprep.subr.bf16.mxu0 0
      %1996 = vmatpush1.bf16.msra.mxu0 %v1987
      %1997 = vmatprep.subr.bf16.mxu0 0
      %1998 = vmatpush1.bf16.msra.mxu0 0
      %1999 = vmatprep.subr.bf16.mxu0 0
      %2000 = vmatpush1.bf16.msra.mxu0 0
      %2001 = vmatprep.subr.bf16.mxu0 0
      %2002 = vmatpush1.bf16.msra.mxu0 0
      %2003 = vmatprep.subr.bf16.mxu0 0
      %2004 = vmatpush1.bf16.msra.mxu0 0
      %2005 = vmatprep.subr.bf16.mxu0 0
      %2006 = vmatpush1.bf16.msra.mxu0 0
      %2007 = vmatprep.subr.bf16.mxu0 0
      %2008 = vmatpush1.bf16.msra.mxu0 0
      %2009 = vmatprep.subr.bf16.mxu0 0
      %2010 = vmatpush1.bf16.msra.mxu0 0
      %2011 = vmatprep.subr.bf16.mxu0 0
      %2012 = vmatpush1.bf16.msra.mxu0 0
      %2013 = vmatprep.subr.bf16.mxu0 0
      %2014 = vmatpush1.bf16.msra.mxu0 0
      %2015 = vmatprep.subr.bf16.mxu0 0
      %2016 = vmatpush1.bf16.msra.mxu0 0
      %2017 = vmatprep.subr.bf16.mxu0 0
      %2018 = vmatpush1.bf16.msra.mxu0 0
      %2019 = vmatprep.subr.bf16.mxu0 0
      %2020 = vmatpush1.bf16.msra.mxu0 0
      %2021 = vmatprep.subr.bf16.mxu0 0
      %2022 = vmatpush1.bf16.msra.mxu0 0
      %2023 = vmatprep.subr.bf16.mxu0 0
      %2024 = vmatpush1.bf16.msra.mxu0 0
      %2025 = vmatprep.mubr.bf16.mxu0 0
      %2026 = vmatmul.mubr.bf16.gmra.mrb[0].mxu0 %v1991
      %v2027 = vpop.f32.mrb[0].mxu0
      %v2028 = vadd.f32 %v1973, %v2027
      %v2029 = vpop.f32.mrb[0].mxu0
      %v2030 = vpop.f32.mrb[0].mxu0
      %v2031 = vpop.f32.mrb[0].mxu0
      %2032 = vdwg.mxu0
      %2033 = vrot.lane.b32.xlu0 %v1694, 64
      %v2034 = vpop.permute.xlu0 %2033
      %2035 = vrot.lane.b32.xlu0 %v1695, 64
      %v2036 = vpop.permute.xlu0 %2035
      %v2038 = vsel %vm1697, %v2034, 0
      %v2041 = vsel %vm1697, %v2036, 0
      %2043 = vmatprep.subr.bf16.mxu0 0
      %2044 = vmatpush1.bf16.xpose.msra.mxu0 %v2041
      %2045 = vmatprep.subr.bf16.mxu0 0
      %2046 = vmatpush1.bf16.xpose.msra.mxu0 0
      %2047 = vmatprep.subr.bf16.mxu0 0
      %2048 = vmatpush1.bf16.xpose.msra.mxu0 0
      %2049 = vmatprep.subr.bf16.mxu0 0
      %2050 = vmatpush1.bf16.xpose.msra.mxu0 0
      %2051 = vmatprep.subr.bf16.mxu0 0
      %2052 = vmatpush1.bf16.xpose.msra.mxu0 0
      %2053 = vmatprep.subr.bf16.mxu0 0
      %2054 = vmatpush1.bf16.xpose.msra.mxu0 0
      %2055 = vmatprep.subr.bf16.mxu0 0
      %2056 = vmatpush1.bf16.xpose.msra.mxu0 0
      %2057 = vmatprep.subr.bf16.mxu0 0
      %2058 = vmatpush1.bf16.xpose.msra.mxu0 0
      %2059 = vmatprep.subr.bf16.mxu0 0
      %2060 = vmatpush1.bf16.xpose.msra.mxu0 0
      %2061 = vmatprep.subr.bf16.mxu0 0
      %2062 = vmatpush1.bf16.xpose.msra.mxu0 0
      %2063 = vmatprep.subr.bf16.mxu0 0
      %2064 = vmatpush1.bf16.xpose.msra.mxu0 0
      %2065 = vmatprep.subr.bf16.mxu0 0
      %2066 = vmatpush1.bf16.xpose.msra.mxu0 0
      %2067 = vmatprep.subr.bf16.mxu0 0
      %2068 = vmatpush1.bf16.xpose.msra.mxu0 0
      %2069 = vmatprep.subr.bf16.mxu0 0
      %2070 = vmatpush1.bf16.xpose.msra.mxu0 0
      %2071 = vmatprep.subr.bf16.mxu0 0
      %2072 = vmatpush1.bf16.xpose.msra.mxu0 0
      %2073 = vmatprep.subr.bf16.mxu0 0
      %2074 = vmatpush1.bf16.xpose.msra.mxu0 0
      %2075 = vmatprep.mubr.bf16.mxu0 0
      %2076 = vmatmul.mubr.bf16.gmra.mrb[0].mxu0 %v2038
      %v2077 = vpop.f32.mrb[0].mxu0
      %v2078 = vadd.f32 0.0, %v2077
      %v2079 = vpop.f32.mrb[0].mxu0
      %v2080 = vpop.f32.mrb[0].mxu0
      %v2081 = vpop.f32.mrb[0].mxu0
      %2082 = vdwg.mxu0
      %v2083 = vsel %vm1744, %v2078, -inf
      %2084 = vmax.xlane.f32.xlu0 %v2083
      %v2085 = vpop.xlane.xlu0 %2084
      %v2086 = vsub.f32 %v2078, %v2085
      %v2087 = vmul.f32 %v2086, 1.442695
      %v2088 = vpow.pop %v2087
      %v2089 = vsel %vm1744, %v2088, 0.0
      %2090 = vadd.xlane.f32.xlu0 %v2089
      %v2091 = vpop.xlane.xlu0 %2090
      %v2092 = vrcp.pop %v2091
      %v2093 = vmul.f32 %v2088, %v2092
      %v2094 = vpack.c.bf16 %v2093, %v2093
      %2095 = vrot.lane.b32.xlu0 %v1696, 64
      %v2096 = vpop.permute.xlu0 %2095
      %v2098 = vsel %vm1757, %v2094, 0
      %v2101 = vand.u32 %v2096, %v1764
      %2103 = vmatprep.subr.bf16.mxu0 0
      %2104 = vmatpush1.bf16.msra.mxu0 %v2101
      %2105 = vmatprep.subr.bf16.mxu0 0
      %2106 = vmatpush1.bf16.msra.mxu0 0
      %2107 = vmatprep.subr.bf16.mxu0 0
      %2108 = vmatpush1.bf16.msra.mxu0 0
      %2109 = vmatprep.subr.bf16.mxu0 0
      %2110 = vmatpush1.bf16.msra.mxu0 0
      %2111 = vmatprep.subr.bf16.mxu0 0
      %2112 = vmatpush1.bf16.msra.mxu0 0
      %2113 = vmatprep.subr.bf16.mxu0 0
      %2114 = vmatpush1.bf16.msra.mxu0 0
      %2115 = vmatprep.subr.bf16.mxu0 0
      %2116 = vmatpush1.bf16.msra.mxu0 0
      %2117 = vmatprep.subr.bf16.mxu0 0
      %2118 = vmatpush1.bf16.msra.mxu0 0
      %2119 = vmatprep.subr.bf16.mxu0 0
      %2120 = vmatpush1.bf16.msra.mxu0 0
      %2121 = vmatprep.subr.bf16.mxu0 0
      %2122 = vmatpush1.bf16.msra.mxu0 0
      %2123 = vmatprep.subr.bf16.mxu0 0
      %2124 = vmatpush1.bf16.msra.mxu0 0
      %2125 = vmatprep.subr.bf16.mxu0 0
      %2126 = vmatpush1.bf16.msra.mxu0 0
      %2127 = vmatprep.subr.bf16.mxu0 0
      %2128 = vmatpush1.bf16.msra.mxu0 0
      %2129 = vmatprep.subr.bf16.mxu0 0
      %2130 = vmatpush1.bf16.msra.mxu0 0
      %2131 = vmatprep.subr.bf16.mxu0 0
      %2132 = vmatpush1.bf16.msra.mxu0 0
      %2133 = vmatprep.subr.bf16.mxu0 0
      %2134 = vmatpush1.bf16.msra.mxu0 0
      %2135 = vmatprep.mubr.bf16.mxu0 0
      %2136 = vmatmul.mubr.bf16.gmra.mrb[0].mxu0 %v2098
      %v2137 = vpop.f32.mrb[0].mxu0
      %v2138 = vadd.f32 0.0, %v2137
      %v2139 = vpop.f32.mrb[0].mxu0
      %v2140 = vpop.f32.mrb[0].mxu0
      %v2141 = vpop.f32.mrb[0].mxu0
      %2142 = vdwg.mxu0
      %v2143 = vpack.c.bf16 %v2138, %v2138
      %v2148 = vunpack.c.l.b16 %v1685
      %v2149 = vunpack.c.l.b16 %v1686
      %v2150 = vunpack.c.l.b16 %v1687
      %v2151 = vunpack.c.l.b16 %v1688
      %v2152 = vpack.c.b16 %v2149, %v2148
      %v2153 = vpack.c.b16 %v2151, %v2150
      %v2157 = vsel %vm1697, %v2143, 0
      %2159 = vmatprep.subr.bf16.mxu0 0
      %2160 = vmatpush1.bf16.msra.mxu0 %v2152
      %2161 = vmatprep.subr.bf16.mxu0 0
      %2162 = vmatpush1.bf16.msra.mxu0 %v2153
      %2163 = vmatprep.subr.bf16.mxu0 0
      %2164 = vmatpush1.bf16.msra.mxu0 0
      %2165 = vmatprep.subr.bf16.mxu0 0
      %2166 = vmatpush1.bf16.msra.mxu0 0
      %2167 = vmatprep.subr.bf16.mxu0 0
      %2168 = vmatpush1.bf16.msra.mxu0 0
      %2169 = vmatprep.subr.bf16.mxu0 0
      %2170 = vmatpush1.bf16.msra.mxu0 0
      %2171 = vmatprep.subr.bf16.mxu0 0
      %2172 = vmatpush1.bf16.msra.mxu0 0
      %2173 = vmatprep.subr.bf16.mxu0 0
      %2174 = vmatpush1.bf16.msra.mxu0 0
      %2175 = vmatprep.subr.bf16.mxu0 0
      %2176 = vmatpush1.bf16.msra.mxu0 0
      %2177 = vmatprep.subr.bf16.mxu0 0
      %2178 = vmatpush1.bf16.msra.mxu0 0
      %2179 = vmatprep.subr.bf16.mxu0 0
      %2180 = vmatpush1.bf16.msra.mxu0 0
      %2181 = vmatprep.subr.bf16.mxu0 0
      %2182 = vmatpush1.bf16.msra.mxu0 0
      %2183 = vmatprep.subr.bf16.mxu0 0
      %2184 = vmatpush1.bf16.msra.mxu0 0
      %2185 = vmatprep.subr.bf16.mxu0 0
      %2186 = vmatpush1.bf16.msra.mxu0 0
      %2187 = vmatprep.subr.bf16.mxu0 0
      %2188 = vmatpush1.bf16.msra.mxu0 0
      %2189 = vmatprep.subr.bf16.mxu0 0
      %2190 = vmatpush1.bf16.msra.mxu0 0
      %2191 = vmatprep.mubr.bf16.mxu0 0
      %2192 = vmatmul.mubr.bf16.gmra.mrb[0].mxu0 %v2157
      %v2193 = vpop.f32.mrb[0].mxu0
      %v2194 = vadd.f32 0.0, %v2193
      %v2195 = vpop.f32.mrb[0].mxu0
      %v2196 = vpop.f32.mrb[0].mxu0
      %v2197 = vpop.f32.mrb[0].mxu0
      %2198 = vdwg.mxu0
      %v2199 = vadd.f32 %v2028, %v2194
      %2200 = vrot.lane.b32.xlu0 %v1694, 32
      %v2201 = vpop.permute.xlu0 %2200
      %2202 = vrot.lane.b32.xlu0 %v1695, 32
      %v2203 = vpop.permute.xlu0 %2202
      %v2205 = vsel %vm1697, %v2201, 0
      %v2208 = vsel %vm1697, %v2203, 0
      %2210 = vmatprep.subr.bf16.mxu0 0
      %2211 = vmatpush1.bf16.xpose.msra.mxu0 %v2208
      %2212 = vmatprep.subr.bf16.mxu0 0
      %2213 = vmatpush1.bf16.xpose.msra.mxu0 0
      %2214 = vmatprep.subr.bf16.mxu0 0
      %2215 = vmatpush1.bf16.xpose.msra.mxu0 0
      %2216 = vmatprep.subr.bf16.mxu0 0
      %2217 = vmatpush1.bf16.xpose.msra.mxu0 0
      %2218 = vmatprep.subr.bf16.mxu0 0
      %2219 = vmatpush1.bf16.xpose.msra.mxu0 0
      %2220 = vmatprep.subr.bf16.mxu0 0
      %2221 = vmatpush1.bf16.xpose.msra.mxu0 0
      %2222 = vmatprep.subr.bf16.mxu0 0
      %2223 = vmatpush1.bf16.xpose.msra.mxu0 0
      %2224 = vmatprep.subr.bf16.mxu0 0
      %2225 = vmatpush1.bf16.xpose.msra.mxu0 0
      %2226 = vmatprep.subr.bf16.mxu0 0
      %2227 = vmatpush1.bf16.xpose.msra.mxu0 0
      %2228 = vmatprep.subr.bf16.mxu0 0
      %2229 = vmatpush1.bf16.xpose.msra.mxu0 0
      %2230 = vmatprep.subr.bf16.mxu0 0
      %2231 = vmatpush1.bf16.xpose.msra.mxu0 0
      %2232 = vmatprep.subr.bf16.mxu0 0
      %2233 = vmatpush1.bf16.xpose.msra.mxu0 0
      %2234 = vmatprep.subr.bf16.mxu0 0
      %2235 = vmatpush1.bf16.xpose.msra.mxu0 0
      %2236 = vmatprep.subr.bf16.mxu0 0
      %2237 = vmatpush1.bf16.xpose.msra.mxu0 0
      %2238 = vmatprep.subr.bf16.mxu0 0
      %2239 = vmatpush1.bf16.xpose.msra.mxu0 0
      %2240 = vmatprep.subr.bf16.mxu0 0
      %2241 = vmatpush1.bf16.xpose.msra.mxu0 0
      %2242 = vmatprep.mubr.bf16.mxu0 0
      %2243 = vmatmul.mubr.bf16.gmra.mrb[0].mxu0 %v2205
      %v2244 = vpop.f32.mrb[0].mxu0
      %v2245 = vadd.f32 0.0, %v2244
      %v2246 = vpop.f32.mrb[0].mxu0
      %v2247 = vpop.f32.mrb[0].mxu0
      %v2248 = vpop.f32.mrb[0].mxu0
      %2249 = vdwg.mxu0
      %v2250 = vsel %vm1744, %v2245, -inf
      %2251 = vmax.xlane.f32.xlu0 %v2250
      %v2252 = vpop.xlane.xlu0 %2251
      %v2253 = vsub.f32 %v2245, %v2252
      %v2254 = vmul.f32 %v2253, 1.442695
      %v2255 = vpow.pop %v2254
      %v2256 = vsel %vm1744, %v2255, 0.0
      %2257 = vadd.xlane.f32.xlu0 %v2256
      %v2258 = vpop.xlane.xlu0 %2257
      %v2259 = vrcp.pop %v2258
      %v2260 = vmul.f32 %v2255, %v2259
      %v2261 = vpack.c.bf16 %v2260, %v2260
      %2262 = vrot.lane.b32.xlu0 %v1696, 32
      %v2263 = vpop.permute.xlu0 %2262
      %v2265 = vsel %vm1757, %v2261, 0
      %v2268 = vand.u32 %v2263, %v1764
      %2270 = vmatprep.subr.bf16.mxu0 0
      %2271 = vmatpush1.bf16.msra.mxu0 %v2268
      %2272 = vmatprep.subr.bf16.mxu0 0
      %2273 = vmatpush1.bf16.msra.mxu0 0
      %2274 = vmatprep.subr.bf16.mxu0 0
      %2275 = vmatpush1.bf16.msra.mxu0 0
      %2276 = vmatprep.subr.bf16.mxu0 0
      %2277 = vmatpush1.bf16.msra.mxu0 0
      %2278 = vmatprep.subr.bf16.mxu0 0
      %2279 = vmatpush1.bf16.msra.mxu0 0
      %2280 = vmatprep.subr.bf16.mxu0 0
      %2281 = vmatpush1.bf16.msra.mxu0 0
      %2282 = vmatprep.subr.bf16.mxu0 0
      %2283 = vmatpush1.bf16.msra.mxu0 0
      %2284 = vmatprep.subr.bf16.mxu0 0
      %2285 = vmatpush1.bf16.msra.mxu0 0
      %2286 = vmatprep.subr.bf16.mxu0 0
      %2287 = vmatpush1.bf16.msra.mxu0 0
      %2288 = vmatprep.subr.bf16.mxu0 0
      %2289 = vmatpush1.bf16.msra.mxu0 0
      %2290 = vmatprep.subr.bf16.mxu0 0
      %2291 = vmatpush1.bf16.msra.mxu0 0
      %2292 = vmatprep.subr.bf16.mxu0 0
      %2293 = vmatpush1.bf16.msra.mxu0 0
      %2294 = vmatprep.subr.bf16.mxu0 0
      %2295 = vmatpush1.bf16.msra.mxu0 0
      %2296 = vmatprep.subr.bf16.mxu0 0
      %2297 = vmatpush1.bf16.msra.mxu0 0
      %2298 = vmatprep.subr.bf16.mxu0 0
      %2299 = vmatpush1.bf16.msra.mxu0 0
      %2300 = vmatprep.subr.bf16.mxu0 0
      %2301 = vmatpush1.bf16.msra.mxu0 0
      %2302 = vmatprep.mubr.bf16.mxu0 0
      %2303 = vmatmul.mubr.bf16.gmra.mrb[0].mxu0 %v2265
      %v2304 = vpop.f32.mrb[0].mxu0
      %v2305 = vadd.f32 0.0, %v2304
      %v2306 = vpop.f32.mrb[0].mxu0
      %v2307 = vpop.f32.mrb[0].mxu0
      %v2308 = vpop.f32.mrb[0].mxu0
      %2309 = vdwg.mxu0
      %v2310 = vpack.c.bf16 %v2305, %v2305
      %v2315 = vunpack.c.l.b16 %v1689
      %v2316 = vunpack.c.l.b16 %v1690
      %v2317 = vunpack.c.l.b16 %v1691
      %v2318 = vunpack.c.l.b16 %v1692
      %v2319 = vpack.c.b16 %v2316, %v2315
      %v2320 = vpack.c.b16 %v2318, %v2317
      %v2324 = vsel %vm1697, %v2310, 0
      %2326 = vmatprep.subr.bf16.mxu0 0
      %2327 = vmatpush1.bf16.msra.mxu0 %v2319
      %2328 = vmatprep.subr.bf16.mxu0 0
      %2329 = vmatpush1.bf16.msra.mxu0 %v2320
      %2330 = vmatprep.subr.bf16.mxu0 0
      %2331 = vmatpush1.bf16.msra.mxu0 0
      %2332 = vmatprep.subr.bf16.mxu0 0
      %2333 = vmatpush1.bf16.msra.mxu0 0
      %2334 = vmatprep.subr.bf16.mxu0 0
      %2335 = vmatpush1.bf16.msra.mxu0 0
      %2336 = vmatprep.subr.bf16.mxu0 0
      %2337 = vmatpush1.bf16.msra.mxu0 0
      %2338 = vmatprep.subr.bf16.mxu0 0
      %2339 = vmatpush1.bf16.msra.mxu0 0
      %2340 = vmatprep.subr.bf16.mxu0 0
      %2341 = vmatpush1.bf16.msra.mxu0 0
      %2342 = vmatprep.subr.bf16.mxu0 0
      %2343 = vmatpush1.bf16.msra.mxu0 0
      %2344 = vmatprep.subr.bf16.mxu0 0
      %2345 = vmatpush1.bf16.msra.mxu0 0
      %2346 = vmatprep.subr.bf16.mxu0 0
      %2347 = vmatpush1.bf16.msra.mxu0 0
      %2348 = vmatprep.subr.bf16.mxu0 0
      %2349 = vmatpush1.bf16.msra.mxu0 0
      %2350 = vmatprep.subr.bf16.mxu0 0
      %2351 = vmatpush1.bf16.msra.mxu0 0
      %2352 = vmatprep.subr.bf16.mxu0 0
      %2353 = vmatpush1.bf16.msra.mxu0 0
      %2354 = vmatprep.subr.bf16.mxu0 0
      %2355 = vmatpush1.bf16.msra.mxu0 0
      %2356 = vmatprep.subr.bf16.mxu0 0
      %2357 = vmatpush1.bf16.msra.mxu0 0
      %2358 = vmatprep.mubr.bf16.mxu0 0
      %2359 = vmatmul.mubr.bf16.gmra.mrb[0].mxu0 %v2324
      %v2360 = vpop.f32.mrb[0].mxu0
      %v2361 = vadd.f32 0.0, %v2360
      %v2362 = vpop.f32.mrb[0].mxu0
      %v2363 = vpop.f32.mrb[0].mxu0
      %v2364 = vpop.f32.mrb[0].mxu0
      %2365 = vdwg.mxu0
      %v2366 = vadd.f32 %v2199, %v2361
      %v2367 = vadd.f32 %v1386, %v2366
      %v2368 = vld [vmem:[%s836] sm:$0x1]
      %v2370 = vlaneseq
      %v2371 = vshrl.u32 %v2370, 7
      %v2372 = vsub.s32 0, %v2371
      %v2373 = vrot.slane %v2368, %v2372
      %v2375 = vadd.f32 %v2367, %v2373
      %v2376 = vld [vmem:[%s839] sm:$0x1]
      %v2377 = vld [vmem:[%s842] sm:$0x1]
      %v2378 = vsel %vm1389, %v2375, 0.0
      %2379 = vadd.xlane.f32.xlu0 %v2378
      %v2380 = vpop.xlane.xlu0 %2379
      %v2381 = vmul.f32 %v2380, %v1393
      %v2382 = vsub.f32 %v2375, %v2381
      %v2383 = vmul.f32 %v2382, %v2382
      %v2384 = vsel %vm1389, %v2383, 0.0
      %2385 = vadd.xlane.f32.xlu0 %v2384
      %v2386 = vpop.xlane.xlu0 %2385
      %v2387 = vmul.f32 %v2386, %v1393
      %v2388 = vadd.f32 %v2387, 1e-06
      %v2389 = vrsqrt.pop %v2388
      %v2390 = vmul.f32 %v2382, %v2389
      %v2392 = vlaneseq
      %v2393 = vshrl.u32 %v2392, 7
      %v2394 = vsub.s32 0, %v2393
      %v2395 = vrot.slane %v2376, %v2394
      %v2397 = vmul.f32 %v2390, %v2395
      %v2399 = vlaneseq
      %v2400 = vshrl.u32 %v2399, 7
      %v2401 = vsub.s32 0, %v2400
      %v2402 = vrot.slane %v2377, %v2401
      %v2404 = vadd.f32 %v2397, %v2402
      %v2405 = vpack.c.bf16 %v2404, %v2404
      %v2406 = vld [vmem:[%s847] sm:$0xff]
      %v2407 = vld [vmem:[%s847 + $0x8] sm:$0xff]
      %v2408 = vld [vmem:[%s847 + $0x10] sm:$0xff]
      %v2409 = vld [vmem:[%s847 + $0x18] sm:$0xff]
      %v2410 = vld [vmem:[%s847 + $0x20] sm:$0xff]
      %v2411 = vld [vmem:[%s847 + $0x28] sm:$0xff]
      %v2412 = vld [vmem:[%s847 + $0x30] sm:$0xff]
      %v2413 = vld [vmem:[%s847 + $0x38] sm:$0xff]
      %v2414 = vld [vmem:[%s847 + $0x40] sm:$0xff]
      %v2415 = vld [vmem:[%s847 + $0x48] sm:$0xff]
      %v2416 = vld [vmem:[%s847 + $0x50] sm:$0xff]
      %v2417 = vld [vmem:[%s847 + $0x58] sm:$0xff]
      %v2418 = vld [vmem:[%s847 + $0x60] sm:$0xff]
      %v2419 = vld [vmem:[%s847 + $0x68] sm:$0xff]
      %v2420 = vld [vmem:[%s847 + $0x70] sm:$0xff]
      %v2421 = vld [vmem:[%s847 + $0x78] sm:$0xff]
      %v2422 = vld [vmem:[%s851] sm:$0x3]
      %v2424 = vlaneseq
      %v2425 = vshrl.u32 %v2424, 7
      %v2426 = vsub.s32 0, %v2425
      %v2427 = vrot.slane %v2422, %v2426
      %v2428 = vlaneseq
      %v2429 = vshrl.u32 %v2428, 7
      %v2430 = vsub.s32 1, %v2429
      %v2431 = vrot.slane %v2422, %v2430
      %v2450 = vunpack.c.l.b16 %v2406
      %v2451 = vunpack.c.h.b16 %v2406
      %v2452 = vunpack.c.l.b16 %v2407
      %v2453 = vunpack.c.h.b16 %v2407
      %v2454 = vunpack.c.l.b16 %v2408
      %v2455 = vunpack.c.h.b16 %v2408
      %v2456 = vunpack.c.l.b16 %v2409
      %v2457 = vunpack.c.h.b16 %v2409
      %v2458 = vunpack.c.l.b16 %v2410
      %v2459 = vunpack.c.h.b16 %v2410
      %v2460 = vunpack.c.l.b16 %v2411
      %v2461 = vunpack.c.h.b16 %v2411
      %v2462 = vunpack.c.l.b16 %v2412
      %v2463 = vunpack.c.h.b16 %v2412
      %v2464 = vunpack.c.l.b16 %v2413
      %v2465 = vunpack.c.h.b16 %v2413
      %v2466 = vunpack.c.l.b16 %v2414
      %v2467 = vunpack.c.h.b16 %v2414
      %v2468 = vunpack.c.l.b16 %v2415
      %v2469 = vunpack.c.h.b16 %v2415
      %v2470 = vunpack.c.l.b16 %v2416
      %v2471 = vunpack.c.h.b16 %v2416
      %v2472 = vunpack.c.l.b16 %v2417
      %v2473 = vunpack.c.h.b16 %v2417
      %v2474 = vunpack.c.l.b16 %v2418
      %v2475 = vunpack.c.h.b16 %v2418
      %v2476 = vunpack.c.l.b16 %v2419
      %v2477 = vunpack.c.h.b16 %v2419
      %v2478 = vunpack.c.l.b16 %v2420
      %v2479 = vunpack.c.h.b16 %v2420
      %v2480 = vunpack.c.l.b16 %v2421
      %v2481 = vunpack.c.h.b16 %v2421
      %v2482 = vpack.c.b16 %v2452, %v2450
      %v2483 = vpack.c.b16 %v2453, %v2451
      %v2484 = vpack.c.b16 %v2456, %v2454
      %v2485 = vpack.c.b16 %v2457, %v2455
      %v2486 = vpack.c.b16 %v2460, %v2458
      %v2487 = vpack.c.b16 %v2461, %v2459
      %v2488 = vpack.c.b16 %v2464, %v2462
      %v2489 = vpack.c.b16 %v2465, %v2463
      %v2490 = vpack.c.b16 %v2468, %v2466
      %v2491 = vpack.c.b16 %v2469, %v2467
      %v2492 = vpack.c.b16 %v2472, %v2470
      %v2493 = vpack.c.b16 %v2473, %v2471
      %v2494 = vpack.c.b16 %v2476, %v2474
      %v2495 = vpack.c.b16 %v2477, %v2475
      %v2496 = vpack.c.b16 %v2480, %v2478
      %v2497 = vpack.c.b16 %v2481, %v2479
      %2514 = vmatprep.subr.bf16.mxu0 %v2483
      %2515 = vmatpush1.bf16.msra.mxu0 %v2482
      %2516 = vmatprep.subr.bf16.mxu0 %v2485
      %2517 = vmatpush1.bf16.msra.mxu0 %v2484
      %2518 = vmatprep.subr.bf16.mxu0 %v2487
      %2519 = vmatpush1.bf16.msra.mxu0 %v2486
      %2520 = vmatprep.subr.bf16.mxu0 %v2489
      %2521 = vmatpush1.bf16.msra.mxu0 %v2488
      %2522 = vmatprep.subr.bf16.mxu0 %v2491
      %2523 = vmatpush1.bf16.msra.mxu0 %v2490
      %2524 = vmatprep.subr.bf16.mxu0 %v2493
      %2525 = vmatpush1.bf16.msra.mxu0 %v2492
      %2526 = vmatprep.subr.bf16.mxu0 %v2495
      %2527 = vmatpush1.bf16.msra.mxu0 %v2494
      %2528 = vmatprep.subr.bf16.mxu0 %v2497
      %2529 = vmatpush1.bf16.msra.mxu0 %v2496
      %2530 = vmatprep.subr.bf16.mxu0 0
      %2531 = vmatpush1.bf16.msra.mxu0 0
      %2532 = vmatprep.subr.bf16.mxu0 0
      %2533 = vmatpush1.bf16.msra.mxu0 0
      %2534 = vmatprep.subr.bf16.mxu0 0
      %2535 = vmatpush1.bf16.msra.mxu0 0
      %2536 = vmatprep.subr.bf16.mxu0 0
      %2537 = vmatpush1.bf16.msra.mxu0 0
      %2538 = vmatprep.subr.bf16.mxu0 0
      %2539 = vmatpush1.bf16.msra.mxu0 0
      %2540 = vmatprep.subr.bf16.mxu0 0
      %2541 = vmatpush1.bf16.msra.mxu0 0
      %2542 = vmatprep.subr.bf16.mxu0 0
      %2543 = vmatpush1.bf16.msra.mxu0 0
      %2544 = vmatprep.subr.bf16.mxu0 0
      %2545 = vmatpush1.bf16.msra.mxu0 0
      %2546 = vmatprep.mubr.bf16.mxu0 0
      %2547 = vmatmul.mubr.bf16.gmra.mrb[0].mxu0 %v2405
      %v2548 = vpop.f32.mrb[0].mxu0
      %v2549 = vadd.f32 %v2427, %v2548
      %v2550 = vpop.f32.mrb[0].mxu0
      %v2551 = vadd.f32 %v2431, %v2550
      %v2552 = vpop.f32.mrb[0].mxu0
      %v2553 = vpop.f32.mrb[0].mxu0
      %2554 = vdwg.mxu0
      %v2555 = vmul.f32 %v2549, %v2549
      %v2556 = vmul.f32 %v2551, %v2551
      %v2557 = vmul.f32 %v2549, %v2555
      %v2558 = vmul.f32 %v2551, %v2556
      %v2559 = vmul.f32 %v2557, 0.044715
      %v2560 = vmul.f32 %v2558, 0.044715
      %v2561 = vadd.f32 %v2549, %v2559
      %v2562 = vadd.f32 %v2551, %v2560
      %v2563 = vmul.f32 %v2561, 0.7978846
      %v2564 = vmul.f32 %v2562, 0.7978846
      %v2565 = vtanh.pop %v2563
      %v2566 = vtanh.pop %v2564
      %v2567 = vadd.f32 %v2565, 1.0
      %v2568 = vadd.f32 %v2566, 1.0
      %v2569 = vmul.f32 %v2567, 0.5
      %v2570 = vmul.f32 %v2568, 0.5
      %v2571 = vmul.f32 %v2549, %v2569
      %v2572 = vmul.f32 %v2551, %v2570
      %v2573 = vpack.c.bf16 %v2571, %v2571
      %v2574 = vpack.c.bf16 %v2572, %v2572
      %v2575 = vld [vmem:[%s856] sm:$0xf]
      %v2576 = vld [vmem:[%s856 + $0x4] sm:$0xf]
      %v2577 = vld [vmem:[%s856 + $0x8] sm:$0xf]
      %v2578 = vld [vmem:[%s856 + $0xc] sm:$0xf]
      %v2579 = vld [vmem:[%s856 + $0x10] sm:$0xf]
      %v2580 = vld [vmem:[%s856 + $0x14] sm:$0xf]
      %v2581 = vld [vmem:[%s856 + $0x18] sm:$0xf]
      %v2582 = vld [vmem:[%s856 + $0x1c] sm:$0xf]
      %v2583 = vld [vmem:[%s856 + $0x20] sm:$0xf]
      %v2584 = vld [vmem:[%s856 + $0x24] sm:$0xf]
      %v2585 = vld [vmem:[%s856 + $0x28] sm:$0xf]
      %v2586 = vld [vmem:[%s856 + $0x2c] sm:$0xf]
      %v2587 = vld [vmem:[%s856 + $0x30] sm:$0xf]
      %v2588 = vld [vmem:[%s856 + $0x34] sm:$0xf]
      %v2589 = vld [vmem:[%s856 + $0x38] sm:$0xf]
      %v2590 = vld [vmem:[%s856 + $0x3c] sm:$0xf]
      %v2591 = vld [vmem:[%s856 + $0x40] sm:$0xf]
      %v2592 = vld [vmem:[%s856 + $0x44] sm:$0xf]
      %v2593 = vld [vmem:[%s856 + $0x48] sm:$0xf]
      %v2594 = vld [vmem:[%s856 + $0x4c] sm:$0xf]
      %v2595 = vld [vmem:[%s856 + $0x50] sm:$0xf]
      %v2596 = vld [vmem:[%s856 + $0x54] sm:$0xf]
      %v2597 = vld [vmem:[%s856 + $0x58] sm:$0xf]
      %v2598 = vld [vmem:[%s856 + $0x5c] sm:$0xf]
      %v2599 = vld [vmem:[%s856 + $0x60] sm:$0xf]
      %v2600 = vld [vmem:[%s856 + $0x64] sm:$0xf]
      %v2601 = vld [vmem:[%s856 + $0x68] sm:$0xf]
      %v2602 = vld [vmem:[%s856 + $0x6c] sm:$0xf]
      %v2603 = vld [vmem:[%s856 + $0x70] sm:$0xf]
      %v2604 = vld [vmem:[%s856 + $0x74] sm:$0xf]
      %v2605 = vld [vmem:[%s856 + $0x78] sm:$0xf]
      %v2606 = vld [vmem:[%s856 + $0x7c] sm:$0xf]
      %v2607 = vld [vmem:[%s859] sm:$0x1]
      %v2609 = vlaneseq
      %v2610 = vshrl.u32 %v2609, 7
      %v2611 = vsub.s32 0, %v2610
      %v2612 = vrot.slane %v2607, %v2611
      %v2646 = vunpack.c.l.b16 %v2575
      %v2647 = vunpack.c.l.b16 %v2576
      %v2648 = vunpack.c.l.b16 %v2577
      %v2649 = vunpack.c.l.b16 %v2578
      %v2650 = vunpack.c.l.b16 %v2579
      %v2651 = vunpack.c.l.b16 %v2580
      %v2652 = vunpack.c.l.b16 %v2581
      %v2653 = vunpack.c.l.b16 %v2582
      %v2654 = vunpack.c.l.b16 %v2583
      %v2655 = vunpack.c.l.b16 %v2584
      %v2656 = vunpack.c.l.b16 %v2585
      %v2657 = vunpack.c.l.b16 %v2586
      %v2658 = vunpack.c.l.b16 %v2587
      %v2659 = vunpack.c.l.b16 %v2588
      %v2660 = vunpack.c.l.b16 %v2589
      %v2661 = vunpack.c.l.b16 %v2590
      %v2662 = vunpack.c.l.b16 %v2591
      %v2663 = vunpack.c.l.b16 %v2592
      %v2664 = vunpack.c.l.b16 %v2593
      %v2665 = vunpack.c.l.b16 %v2594
      %v2666 = vunpack.c.l.b16 %v2595
      %v2667 = vunpack.c.l.b16 %v2596
      %v2668 = vunpack.c.l.b16 %v2597
      %v2669 = vunpack.c.l.b16 %v2598
      %v2670 = vunpack.c.l.b16 %v2599
      %v2671 = vunpack.c.l.b16 %v2600
      %v2672 = vunpack.c.l.b16 %v2601
      %v2673 = vunpack.c.l.b16 %v2602
      %v2674 = vunpack.c.l.b16 %v2603
      %v2675 = vunpack.c.l.b16 %v2604
      %v2676 = vunpack.c.l.b16 %v2605
      %v2677 = vunpack.c.l.b16 %v2606
      %v2678 = vpack.c.b16 %v2647, %v2646
      %v2679 = vpack.c.b16 %v2649, %v2648
      %v2680 = vpack.c.b16 %v2651, %v2650
      %v2681 = vpack.c.b16 %v2653, %v2652
      %v2682 = vpack.c.b16 %v2655, %v2654
      %v2683 = vpack.c.b16 %v2657, %v2656
      %v2684 = vpack.c.b16 %v2659, %v2658
      %v2685 = vpack.c.b16 %v2661, %v2660
      %v2686 = vpack.c.b16 %v2663, %v2662
      %v2687 = vpack.c.b16 %v2665, %v2664
      %v2688 = vpack.c.b16 %v2667, %v2666
      %v2689 = vpack.c.b16 %v2669, %v2668
      %v2690 = vpack.c.b16 %v2671, %v2670
      %v2691 = vpack.c.b16 %v2673, %v2672
      %v2692 = vpack.c.b16 %v2675, %v2674
      %v2693 = vpack.c.b16 %v2677, %v2676
      %2710 = vmatprep.subr.bf16.mxu0 0
      %2711 = vmatpush1.bf16.msra.mxu0 %v2678
      %2712 = vmatprep.subr.bf16.mxu0 0
      %2713 = vmatpush1.bf16.msra.mxu0 %v2679
      %2714 = vmatprep.subr.bf16.mxu0 0
      %2715 = vmatpush1.bf16.msra.mxu0 %v2680
      %2716 = vmatprep.subr.bf16.mxu0 0
      %2717 = vmatpush1.bf16.msra.mxu0 %v2681
      %2718 = vmatprep.subr.bf16.mxu0 0
      %2719 = vmatpush1.bf16.msra.mxu0 %v2682
      %2720 = vmatprep.subr.bf16.mxu0 0
      %2721 = vmatpush1.bf16.msra.mxu0 %v2683
      %2722 = vmatprep.subr.bf16.mxu0 0
      %2723 = vmatpush1.bf16.msra.mxu0 %v2684
      %2724 = vmatprep.subr.bf16.mxu0 0
      %2725 = vmatpush1.bf16.msra.mxu0 %v2685
      %2726 = vmatprep.subr.bf16.mxu0 0
      %2727 = vmatpush1.bf16.msra.mxu0 %v2686
      %2728 = vmatprep.subr.bf16.mxu0 0
      %2729 = vmatpush1.bf16.msra.mxu0 %v2687
      %2730 = vmatprep.subr.bf16.mxu0 0
      %2731 = vmatpush1.bf16.msra.mxu0 %v2688
      %2732 = vmatprep.subr.bf16.mxu0 0
      %2733 = vmatpush1.bf16.msra.mxu0 %v2689
      %2734 = vmatprep.subr.bf16.mxu0 0
      %2735 = vmatpush1.bf16.msra.mxu0 %v2690
      %2736 = vmatprep.subr.bf16.mxu0 0
      %2737 = vmatpush1.bf16.msra.mxu0 %v2691
      %2738 = vmatprep.subr.bf16.mxu0 0
      %2739 = vmatpush1.bf16.msra.mxu0 %v2692
      %2740 = vmatprep.subr.bf16.mxu0 0
      %2741 = vmatpush1.bf16.msra.mxu0 %v2693
      %2742 = vmatprep.mubr.bf16.mxu0 %v2574
      %2743 = vmatmul.mubr.bf16.gmra.mrb[0].mxu0 %v2573
      %v2744 = vpop.f32.mrb[0].mxu0
      %v2745 = vadd.f32 %v2612, %v2744
      %v2746 = vpop.f32.mrb[0].mxu0
      %v2747 = vpop.f32.mrb[0].mxu0
      %v2748 = vpop.f32.mrb[0].mxu0
      %2749 = vdwg.mxu0
      %v2750 = vadd.f32 %v2375, %v2745
      %2751 = vst [vmem:[#allocation2] sm:$0x1f] %v2750
      %p2752 = scmp.eq.s32.totalorder %s37, 1
      // Predicated region
      $region109: #{image_to_point_cloud.1} parent=103 // pred_check
        %p2753 = pneg %p2752
      $region110: #{image_to_point_cloud.1} parent=103 // pred_check_branch
        %2755 = sbr.rel (%p2753) target = $region112
      $region111: #{image_to_point_cloud.1} parent=103 // pred_region
        %v2756 = vld [vmem:[%s15] sm:$0x1]
        %v2757 = vld [vmem:[%s16] sm:$0x1]
        %vm2758 = vcmask 1040384
        %v2759 = vsel %vm2758, %v2750, 0.0
        %2760 = vadd.xlane.f32.xlu0 %v2759
        %v2761 = vpop.xlane.xlu0 %2760
        %v2762 = vmul.f32 %v2761, %v1393
        %v2763 = vsub.f32 %v2750, %v2762
        %v2764 = vmul.f32 %v2763, %v2763
        %v2765 = vsel %vm2758, %v2764, 0.0
        %2766 = vadd.xlane.f32.xlu0 %v2765
        %v2767 = vpop.xlane.xlu0 %2766
        %v2768 = vmul.f32 %v2767, %v1393
        %v2769 = vadd.f32 %v2768, 1e-06
        %v2770 = vrsqrt.pop %v2769
        %v2771 = vmul.f32 %v2763, %v2770
        %v2772 = vmul.f32 %v2771, %v2756
        %v2773 = vadd.f32 %v2772, %v2757
        %v2774 = vpack.c.bf16 %v2773, %v2773
        %v2775 = vld [vmem:[%s17] sm:$0xff]
        %v2776 = vld [vmem:[%s17 + $0x8] sm:$0xff]
        %v2777 = vld [vmem:[%s17 + $0x10] sm:$0xff]
        %v2778 = vld [vmem:[%s17 + $0x18] sm:$0xff]
        %v2779 = vld [vmem:[%s17 + $0x20] sm:$0xff]
        %v2780 = vld [vmem:[%s17 + $0x28] sm:$0xff]
        %v2781 = vld [vmem:[%s17 + $0x30] sm:$0xff]
        %v2782 = vld [vmem:[%s17 + $0x38] sm:$0xff]
        %v2783 = vld [vmem:[%s17 + $0x40] sm:$0xff]
        %v2784 = vld [vmem:[%s17 + $0x48] sm:$0xff]
        %v2785 = vld [vmem:[%s17 + $0x50] sm:$0xff]
        %v2786 = vld [vmem:[%s17 + $0x58] sm:$0xff]
        %v2787 = vld [vmem:[%s17 + $0x60] sm:$0xff]
        %v2788 = vld [vmem:[%s17 + $0x68] sm:$0xff]
        %v2789 = vld [vmem:[%s17 + $0x70] sm:$0xff]
        %v2790 = vld [vmem:[%s17 + $0x78] sm:$0xff]
        %v2791 = vld [vmem:[%s18] sm:$0x3]
        %v2808 = vunpack.c.l.b16 %v2775
        %v2809 = vunpack.c.h.b16 %v2775
        %v2810 = vunpack.c.l.b16 %v2776
        %v2811 = vunpack.c.h.b16 %v2776
        %v2812 = vunpack.c.l.b16 %v2777
        %v2813 = vunpack.c.h.b16 %v2777
        %v2814 = vunpack.c.l.b16 %v2778
        %v2815 = vunpack.c.h.b16 %v2778
        %v2816 = vunpack.c.l.b16 %v2779
        %v2817 = vunpack.c.h.b16 %v2779
        %v2818 = vunpack.c.l.b16 %v2780
        %v2819 = vunpack.c.h.b16 %v2780
        %v2820 = vunpack.c.l.b16 %v2781
        %v2821 = vunpack.c.h.b16 %v2781
        %v2822 = vunpack.c.l.b16 %v2782
        %v2823 = vunpack.c.h.b16 %v2782
        %v2824 = vunpack.c.l.b16 %v2783
        %v2825 = vunpack.c.h.b16 %v2783
        %v2826 = vunpack.c.l.b16 %v2784
        %v2827 = vunpack.c.h.b16 %v2784
        %v2828 = vunpack.c.l.b16 %v2785
        %v2829 = vunpack.c.h.b16 %v2785
        %v2830 = vunpack.c.l.b16 %v2786
        %v2831 = vunpack.c.h.b16 %v2786
        %v2832 = vunpack.c.l.b16 %v2787
        %v2833 = vunpack.c.h.b16 %v2787
        %v2834 = vunpack.c.l.b16 %v2788
        %v2835 = vunpack.c.h.b16 %v2788
        %v2836 = vunpack.c.l.b16 %v2789
        %v2837 = vunpack.c.h.b16 %v2789
        %v2838 = vunpack.c.l.b16 %v2790
        %v2839 = vunpack.c.h.b16 %v2790
        %v2840 = vpack.c.b16 %v2810, %v2808
        %v2841 = vpack.c.b16 %v2811, %v2809
        %v2842 = vpack.c.b16 %v2814, %v2812
        %v2843 = vpack.c.b16 %v2815, %v2813
        %v2844 = vpack.c.b16 %v2818, %v2816
        %v2845 = vpack.c.b16 %v2819, %v2817
        %v2846 = vpack.c.b16 %v2822, %v2820
        %v2847 = vpack.c.b16 %v2823, %v2821
        %v2848 = vpack.c.b16 %v2826, %v2824
        %v2849 = vpack.c.b16 %v2827, %v2825
        %v2850 = vpack.c.b16 %v2830, %v2828
        %v2851 = vpack.c.b16 %v2831, %v2829
        %v2852 = vpack.c.b16 %v2834, %v2832
        %v2853 = vpack.c.b16 %v2835, %v2833
        %v2854 = vpack.c.b16 %v2838, %v2836
        %v2855 = vpack.c.b16 %v2839, %v2837
        %v2873 = vlaneseq
        %v2874 = vshrl.u32 %v2873, 7
        %v2875 = vsub.s32 0, %v2874
        %v2876 = vrot.slane %v2791, %v2875
        %v2877 = vlaneseq
        %v2878 = vshrl.u32 %v2877, 7
        %v2879 = vsub.s32 1, %v2878
        %v2880 = vrot.slane %v2791, %v2879
        %2883 = vmatprep.subr.bf16.mxu0 %v2841
        %2884 = vmatpush1.bf16.msra.mxu0 %v2840
        %2885 = vmatprep.subr.bf16.mxu0 %v2843
        %2886 = vmatpush1.bf16.msra.mxu0 %v2842
        %2887 = vmatprep.subr.bf16.mxu0 %v2845
        %2888 = vmatpush1.bf16.msra.mxu0 %v2844
        %2889 = vmatprep.subr.bf16.mxu0 %v2847
        %2890 = vmatpush1.bf16.msra.mxu0 %v2846
        %2891 = vmatprep.subr.bf16.mxu0 %v2849
        %2892 = vmatpush1.bf16.msra.mxu0 %v2848
        %2893 = vmatprep.subr.bf16.mxu0 %v2851
        %2894 = vmatpush1.bf16.msra.mxu0 %v2850
        %2895 = vmatprep.subr.bf16.mxu0 %v2853
        %2896 = vmatpush1.bf16.msra.mxu0 %v2852
        %2897 = vmatprep.subr.bf16.mxu0 %v2855
        %2898 = vmatpush1.bf16.msra.mxu0 %v2854
        %2899 = vmatprep.subr.bf16.mxu0 0
        %2900 = vmatpush1.bf16.msra.mxu0 0
        %2901 = vmatprep.subr.bf16.mxu0 0
        %2902 = vmatpush1.bf16.msra.mxu0 0
        %2903 = vmatprep.subr.bf16.mxu0 0
        %2904 = vmatpush1.bf16.msra.mxu0 0
        %2905 = vmatprep.subr.bf16.mxu0 0
        %2906 = vmatpush1.bf16.msra.mxu0 0
        %2907 = vmatprep.subr.bf16.mxu0 0
        %2908 = vmatpush1.bf16.msra.mxu0 0
        %2909 = vmatprep.subr.bf16.mxu0 0
        %2910 = vmatpush1.bf16.msra.mxu0 0
        %2911 = vmatprep.subr.bf16.mxu0 0
        %2912 = vmatpush1.bf16.msra.mxu0 0
        %2913 = vmatprep.subr.bf16.mxu0 0
        %2914 = vmatpush1.bf16.msra.mxu0 0
        %2915 = vmatprep.mubr.bf16.mxu0 0
        %2916 = vmatmul.mubr.bf16.gmra.mrb[0].mxu0 %v2774
        %v2917 = vpop.f32.mrb[0].mxu0
        %v2918 = vadd.f32 %v2876, %v2917
        %v2919 = vpop.f32.mrb[0].mxu0
        %v2920 = vadd.f32 %v2880, %v2919
        %v2921 = vpop.f32.mrb[0].mxu0
        %v2922 = vpop.f32.mrb[0].mxu0
        %2923 = vdwg.mxu0
        %v2924 = vmax.f32 %v2918, 0.0
        %v2925 = vmax.f32 %v2920, 0.0
        %v2926 = vpack.c.bf16 %v2924, %v2924
        %v2927 = vpack.c.bf16 %v2925, %v2925
        %v2928 = vld [vmem:[%s19] sm:$0xf]
        %v2929 = vld [vmem:[%s19 + $0x4] sm:$0xf]
        %v2930 = vld [vmem:[%s19 + $0x8] sm:$0xf]
        %v2931 = vld [vmem:[%s19 + $0xc] sm:$0xf]
        %v2932 = vld [vmem:[%s19 + $0x10] sm:$0xf]
        %v2933 = vld [vmem:[%s19 + $0x14] sm:$0xf]
        %v2934 = vld [vmem:[%s19 + $0x18] sm:$0xf]
        %v2935 = vld [vmem:[%s19 + $0x1c] sm:$0xf]
        %v2936 = vld [vmem:[%s19 + $0x20] sm:$0xf]
        %v2937 = vld [vmem:[%s19 + $0x24] sm:$0xf]
        %v2938 = vld [vmem:[%s19 + $0x28] sm:$0xf]
        %v2939 = vld [vmem:[%s19 + $0x2c] sm:$0xf]
        %v2940 = vld [vmem:[%s19 + $0x30] sm:$0xf]
        %v2941 = vld [vmem:[%s19 + $0x34] sm:$0xf]
        %v2942 = vld [vmem:[%s19 + $0x38] sm:$0xf]
        %v2943 = vld [vmem:[%s19 + $0x3c] sm:$0xf]
        %v2944 = vld [vmem:[%s19 + $0x40] sm:$0xf]
        %v2945 = vld [vmem:[%s19 + $0x44] sm:$0xf]
        %v2946 = vld [vmem:[%s19 + $0x48] sm:$0xf]
        %v2947 = vld [vmem:[%s19 + $0x4c] sm:$0xf]
        %v2948 = vld [vmem:[%s19 + $0x50] sm:$0xf]
        %v2949 = vld [vmem:[%s19 + $0x54] sm:$0xf]
        %v2950 = vld [vmem:[%s19 + $0x58] sm:$0xf]
        %v2951 = vld [vmem:[%s19 + $0x5c] sm:$0xf]
        %v2952 = vld [vmem:[%s19 + $0x60] sm:$0xf]
        %v2953 = vld [vmem:[%s19 + $0x64] sm:$0xf]
        %v2954 = vld [vmem:[%s19 + $0x68] sm:$0xf]
        %v2955 = vld [vmem:[%s19 + $0x6c] sm:$0xf]
        %v2956 = vld [vmem:[%s19 + $0x70] sm:$0xf]
        %v2957 = vld [vmem:[%s19 + $0x74] sm:$0xf]
        %v2958 = vld [vmem:[%s19 + $0x78] sm:$0xf]
        %v2959 = vld [vmem:[%s19 + $0x7c] sm:$0xf]
        %v2960 = vld [vmem:[%s20] sm:$0x1]
        %v2993 = vunpack.c.l.b16 %v2928
        %v2994 = vunpack.c.l.b16 %v2929
        %v2995 = vunpack.c.l.b16 %v2930
        %v2996 = vunpack.c.l.b16 %v2931
        %v2997 = vunpack.c.l.b16 %v2932
        %v2998 = vunpack.c.l.b16 %v2933
        %v2999 = vunpack.c.l.b16 %v2934
        %v3000 = vunpack.c.l.b16 %v2935
        %v3001 = vunpack.c.l.b16 %v2936
        %v3002 = vunpack.c.l.b16 %v2937
        %v3003 = vunpack.c.l.b16 %v2938
        %v3004 = vunpack.c.l.b16 %v2939
        %v3005 = vunpack.c.l.b16 %v2940
        %v3006 = vunpack.c.l.b16 %v2941
        %v3007 = vunpack.c.l.b16 %v2942
        %v3008 = vunpack.c.l.b16 %v2943
        %v3009 = vunpack.c.l.b16 %v2944
        %v3010 = vunpack.c.l.b16 %v2945
        %v3011 = vunpack.c.l.b16 %v2946
        %v3012 = vunpack.c.l.b16 %v2947
        %v3013 = vunpack.c.l.b16 %v2948
        %v3014 = vunpack.c.l.b16 %v2949
        %v3015 = vunpack.c.l.b16 %v2950
        %v3016 = vunpack.c.l.b16 %v2951
        %v3017 = vunpack.c.l.b16 %v2952
        %v3018 = vunpack.c.l.b16 %v2953
        %v3019 = vunpack.c.l.b16 %v2954
        %v3020 = vunpack.c.l.b16 %v2955
        %v3021 = vunpack.c.l.b16 %v2956
        %v3022 = vunpack.c.l.b16 %v2957
        %v3023 = vunpack.c.l.b16 %v2958
        %v3024 = vunpack.c.l.b16 %v2959
        %v3025 = vpack.c.b16 %v2994, %v2993
        %v3026 = vpack.c.b16 %v2996, %v2995
        %v3027 = vpack.c.b16 %v2998, %v2997
        %v3028 = vpack.c.b16 %v3000, %v2999
        %v3029 = vpack.c.b16 %v3002, %v3001
        %v3030 = vpack.c.b16 %v3004, %v3003
        %v3031 = vpack.c.b16 %v3006, %v3005
        %v3032 = vpack.c.b16 %v3008, %v3007
        %v3033 = vpack.c.b16 %v3010, %v3009
        %v3034 = vpack.c.b16 %v3012, %v3011
        %v3035 = vpack.c.b16 %v3014, %v3013
        %v3036 = vpack.c.b16 %v3016, %v3015
        %v3037 = vpack.c.b16 %v3018, %v3017
        %v3038 = vpack.c.b16 %v3020, %v3019
        %v3039 = vpack.c.b16 %v3022, %v3021
        %v3040 = vpack.c.b16 %v3024, %v3023
        %3057 = vmatprep.subr.bf16.mxu0 0
        %3058 = vmatpush1.bf16.msra.mxu0 %v3025
        %3059 = vmatprep.subr.bf16.mxu0 0
        %3060 = vmatpush1.bf16.msra.mxu0 %v3026
        %3061 = vmatprep.subr.bf16.mxu0 0
        %3062 = vmatpush1.bf16.msra.mxu0 %v3027
        %3063 = vmatprep.subr.bf16.mxu0 0
        %3064 = vmatpush1.bf16.msra.mxu0 %v3028
        %3065 = vmatprep.subr.bf16.mxu0 0
        %3066 = vmatpush1.bf16.msra.mxu0 %v3029
        %3067 = vmatprep.subr.bf16.mxu0 0
        %3068 = vmatpush1.bf16.msra.mxu0 %v3030
        %3069 = vmatprep.subr.bf16.mxu0 0
        %3070 = vmatpush1.bf16.msra.mxu0 %v3031
        %3071 = vmatprep.subr.bf16.mxu0 0
        %3072 = vmatpush1.bf16.msra.mxu0 %v3032
        %3073 = vmatprep.subr.bf16.mxu0 0
        %3074 = vmatpush1.bf16.msra.mxu0 %v3033
        %3075 = vmatprep.subr.bf16.mxu0 0
        %3076 = vmatpush1.bf16.msra.mxu0 %v3034
        %3077 = vmatprep.subr.bf16.mxu0 0
        %3078 = vmatpush1.bf16.msra.mxu0 %v3035
        %3079 = vmatprep.subr.bf16.mxu0 0
        %3080 = vmatpush1.bf16.msra.mxu0 %v3036
        %3081 = vmatprep.subr.bf16.mxu0 0
        %3082 = vmatpush1.bf16.msra.mxu0 %v3037
        %3083 = vmatprep.subr.bf16.mxu0 0
        %3084 = vmatpush1.bf16.msra.mxu0 %v3038
        %3085 = vmatprep.subr.bf16.mxu0 0
        %3086 = vmatpush1.bf16.msra.mxu0 %v3039
        %3087 = vmatprep.subr.bf16.mxu0 0
        %3088 = vmatpush1.bf16.msra.mxu0 %v3040
        %3089 = vmatprep.mubr.bf16.mxu0 %v2927
        %3090 = vmatmul.mubr.bf16.gmra.mrb[0].mxu0 %v2926
        %v3091 = vpop.f32.mrb[0].mxu0
        %v3092 = vadd.f32 %v2960, %v3091
        %v3093 = vpop.f32.mrb[0].mxu0
        %v3094 = vpop.f32.mrb[0].mxu0
        %v3095 = vpop.f32.mrb[0].mxu0
        %3096 = vdwg.mxu0
        %3097 = vst [vmem:[%s862] sm:$0x1] %v3092
      $region112: #{image_to_point_cloud.1} parent=103 // pred_fallthru
        _
      %p3098 = scmp.lt.s32.totalorder %s36, 1
      %s3099 = scalar_select %p3098, %s36, 1
      %s3100 = scalar_lea.vmem %s21, %s3099
      // Predicated region
      $region113: #{image_to_point_cloud.1} parent=103 // pred_check
        %p3101 = pneg %p568
      $region114: #{image_to_point_cloud.1} parent=103 // pred_check_branch
        %3103 = sbr.rel (%p3101) target = $region116
      $region115: #{image_to_point_cloud.1} parent=103 // pred_region
        _
      $region116: #{image_to_point_cloud.1} parent=103 // pred_fallthru
        _
    $region104: #{image_to_point_cloud.1} parent=5 // pred_fallthru
      _
    %p3104 = scmp.le.s32.totalorder 2, %s27
    // Predicated region
    $region117: #{image_to_point_cloud.1} parent=5 // pred_check
      %p3105 = pneg %p3104
    $region118: #{image_to_point_cloud.1} parent=5 // pred_check_branch
      %3107 = sbr.rel (%p3105) target = $region120
    $region119: #{image_to_point_cloud.1} parent=5 // pred_region
      %s3108 = ssub.s32 %s27, 2
      // Predicated region
      $region121: #{image_to_point_cloud.1} parent=119 // pred_check
        %p3109 = pneg %p574
      $region122: #{image_to_point_cloud.1} parent=119 // pred_check_branch
        %3111 = sbr.rel (%p3109) target = $region124
      $region123: #{image_to_point_cloud.1} parent=119 // pred_region
        %p3112 = scmp.lt.s32.totalorder %s38, 1
        %s3113 = scalar_select %p3112, %s38, 1
        %s3114 = scalar_lea.vmem %s21, %s3113
      $region124: #{image_to_point_cloud.1} parent=119 // pred_fallthru
        _
    $region120: #{image_to_point_cloud.1} parent=5 // pred_fallthru
      _
  $region6: #{image_to_point_cloud.1} parent=0 // loop_footer
    %s31 = sadd.s32 1, %s27
  $region7: #{image_to_point_cloud.1} parent=0 // loop_footer_branch
    %26 = sbr.rel target = $region3
  $region8: #{image_to_point_cloud.1} parent=0 // loop_exit
    _

</llo_original>
